<compile_context>
chip_gen: v7x
topology: tpu7x:2x2x1
jax: 0.10.0
libtpu: 0.0.40
codegen_flags: <defaults>
</compile_context>

<pallas_src>
import functools

import jax
import jax.numpy as jnp
from jax import lax
from jax.experimental import pallas as pl
from jax.experimental.pallas import tpu as pltpu


# ------------------------------ helpers -------------------------------------

def _row_tile(m):
    """Pick a row-tile: big enough for lane/sublane efficiency, >=2 blocks when possible."""
    cap = max(8, min(512, m // 2 if m >= 16 else m))
    for t in (512, 256, 128, 64, 32, 16, 8):
        if t <= cap and m % t == 0:
            return t
    return m


def _layernorm(z, g, b):
    mu = jnp.mean(z, axis=-1, keepdims=True)
    var = jnp.mean(jnp.square(z - mu), axis=-1, keepdims=True)
    return (z - mu) * lax.rsqrt(var + 1e-5) * g + b


def _attn_core(q, k, v, *, num_heads, head_dim, causal, need_weights):
    """All-heads attention on (T,E)/(S,E) activations; returns (ctx (T,E), summed weights)."""
    T, S = q.shape[0], k.shape[0]
    qb = q.astype(jnp.bfloat16)
    kb = k.astype(jnp.bfloat16)
    vb = v.astype(jnp.bfloat16)

    if causal:
        row = lax.broadcasted_iota(jnp.int32, (T, S), 0)
        col = lax.broadcasted_iota(jnp.int32, (T, S), 1)
        keep = row >= col

    ctx_parts = []
    p_acc = None
    for h in range(num_heads):                     # static unroll over heads
        sl = slice(h * head_dim, (h + 1) * head_dim)
        s = lax.dot_general(qb[:, sl], kb[:, sl], (((1,), (1,)), ((), ())),
                            preferred_element_type=jnp.float32)        # (T, S) f32
        if causal:
            s = jnp.where(keep, s, -1e9)
        s = s - jnp.max(s, axis=-1, keepdims=True)
        e = jnp.exp(s)
        p = e * pl.reciprocal(jnp.sum(e, axis=-1, keepdims=True), approx=True)
        if need_weights:
            p_acc = p if p_acc is None else p_acc + p
        ctx_parts.append(jnp.dot(p.astype(jnp.bfloat16), vb[:, sl],
                                 preferred_element_type=jnp.float32))   # (T, Dh)
    ctx = jnp.concatenate(ctx_parts, axis=-1)       # (T, E) lane-dense
    return ctx, p_acc


# ------------------------------ kernels --------------------------------------

def _self_attn_kernel(x_ref, wqkv_ref, bqkv_ref, wo_ref, bo_ref, g_ref, b_ref, o_ref,
                      *, num_heads, head_dim):
    """Per-batch fused self-attention block: QKV proj -> causal attn -> out proj -> +res -> LN."""
    E = num_heads * head_dim
    scale = float(head_dim) ** -0.5

    x = x_ref[0]                                    # (T, E) f32 — also the residual
    xb = x.astype(jnp.bfloat16)
    qkv = jnp.dot(xb, wqkv_ref[...], preferred_element_type=jnp.float32) + bqkv_ref[...]
    q = qkv[:, :E] * scale
    k = qkv[:, E:2 * E]
    v = qkv[:, 2 * E:]

    ctx, _ = _attn_core(q, k, v, num_heads=num_heads, head_dim=head_dim,
                        causal=True, need_weights=False)
    out = jnp.dot(ctx.astype(jnp.bfloat16), wo_ref[...],
                  preferred_element_type=jnp.float32) + bo_ref[...]
    o_ref[0] = _layernorm(out + x, g_ref[...], b_ref[...])


def _cross_attn_ffn_kernel(xq_ref, xkv_ref, wq_ref, bq_ref, wkv_ref, bkv_ref,
                           wo_ref, bo_ref, ga_ref, ba_ref,
                           w1_ref, b1_ref, w2_ref, b2_ref, gf_ref, bf_ref,
                           o_ref, attn_ref, *, num_heads, head_dim):
    """Per-batch fused encoder-attn + final-FFN block:
       Q/KV proj -> attn (avg weights out) -> out proj -> +res -> LN
       -> fc1 -> relu -> fc2 -> +res -> final LN."""
    E = num_heads * head_dim
    scale = float(head_dim) ** -0.5

    x = xq_ref[0]                                   # (T, E) f32 — residual
    xb = x.astype(jnp.bfloat16)
    kv_in = xkv_ref[0].astype(jnp.bfloat16)         # (S, E)

    q = (jnp.dot(xb, wq_ref[...], preferred_element_type=jnp.float32) + bq_ref[...]) * scale
    kv = jnp.dot(kv_in, wkv_ref[...], preferred_element_type=jnp.float32) + bkv_ref[...]
    k = kv[:, :E]
    v = kv[:, E:]

    ctx, p_acc = _attn_core(q, k, v, num_heads=num_heads, head_dim=head_dim,
                            causal=False, need_weights=True)
    attn_ref[0] = p_acc * (1.0 / num_heads)         # head-averaged attention weights

    out = jnp.dot(ctx.astype(jnp.bfloat16), wo_ref[...],
                  preferred_element_type=jnp.float32) + bo_ref[...]
    y = _layernorm(out + x, ga_ref[...], ba_ref[...])        # encoder_attn_layer_norm

    # fused final FFN block (fc1 + relu + fc2 + residual + final_layer_norm)
    h = jnp.dot(y.astype(jnp.bfloat16), w1_ref[...],
                preferred_element_type=jnp.float32) + b1_ref[...]
    h = jnp.maximum(h, 0.0)                         # activation_fn = relu
    z = jnp.dot(h.astype(jnp.bfloat16), w2_ref[...],
                preferred_element_type=jnp.float32) + b2_ref[...]
    o_ref[0] = _layernorm(z + y, gf_ref[...], bf_ref[...])


def _agg_ffn_kernel(w_ref, enc_ref, gl_ref, bl_ref, w1_ref, b1_ref, w2_ref, b2_ref,
                    o_ref, *, num_layers):
    """Fused layer-weighted sum (weights pre-softmaxed, in SMEM) + layer_attn_norm
       + layer_attn_fc1/relu/fc2 + residual + layer_attn_norm, on a (tm, E) row tile."""
    acc = w_ref[0] * enc_ref[0]                     # (tm, E)
    for l in range(1, num_layers):
        acc = acc + w_ref[l] * enc_ref[l]
    y = _layernorm(acc, gl_ref[...], bl_ref[...])   # layer_attn_norm (1st application)

    h = jnp.dot(y.astype(jnp.bfloat16), w1_ref[...],
                preferred_element_type=jnp.float32) + b1_ref[...]
    h = jnp.maximum(h, 0.0)
    z = jnp.dot(h.astype(jnp.bfloat16), w2_ref[...],
                preferred_element_type=jnp.float32) + b2_ref[...]
    o_ref[...] = _layernorm(z + y, gl_ref[...], bl_ref[...])   # layer_attn_norm (2nd, same params)


# ------------------------------ pallas_call wrappers -------------------------

def _self_attn_block(xb, p, ln, num_heads):
    """xb: (B, T, E). Returns LN(x + self_attn(x)) of shape (B, T, E)."""
    B, T, E = xb.shape
    head_dim = E // num_heads
    wqkv = jnp.concatenate([p["wq"], p["wk"], p["wv"]], axis=1).astype(jnp.bfloat16)
    bqkv = jnp.concatenate([p["bq"], p["bk"], p["bv"]]).reshape(1, 3 * E)

    def w(shape):
        return pl.BlockSpec(shape, lambda b: (0, 0))   # weights resident across grid steps

    kern = functools.partial(_self_attn_kernel, num_heads=num_heads, head_dim=head_dim)
    # TODO(synk): for long T this kernel should additionally flash-tile the sequence axis.
    return pl.pallas_call(
        kern,
        grid=(B,),
        in_specs=[pl.BlockSpec((1, T, E), lambda b: (b, 0, 0)),
                  w((E, 3 * E)), w((1, 3 * E)),
                  w((E, E)), w((1, E)),
                  w((1, E)), w((1, E))],
        out_specs=pl.BlockSpec((1, T, E), lambda b: (b, 0, 0)),
        out_shape=jax.ShapeDtypeStruct((B, T, E), jnp.float32),
        compiler_params=pltpu.CompilerParams(dimension_semantics=("parallel",)),
    )(xb, wqkv, bqkv, p["wo"].astype(jnp.bfloat16), p["bo"].reshape(1, E),
      ln["g"].reshape(1, E), ln["b"].reshape(1, E))


def _cross_attn_ffn_block(xq_b, xkv_b, p_attn, ln_attn, p_ffn, ln_final, num_heads):
    """xq_b: (B, T, E), xkv_b: (B, S, E). Returns ((B, T, E), head-avg attn (B, T, S))."""
    B, T, E = xq_b.shape
    S = xkv_b.shape[1]
    F = p_ffn["w1"].shape[1]
    head_dim = E // num_heads
    wkv = jnp.concatenate([p_attn["wk"], p_attn["wv"]], axis=1).astype(jnp.bfloat16)
    bkv = jnp.concatenate([p_attn["bk"], p_attn["bv"]]).reshape(1, 2 * E)

    def w(shape):
        return pl.BlockSpec(shape, lambda b: (0, 0))

    kern = functools.partial(_cross_attn_ffn_kernel, num_heads=num_heads, head_dim=head_dim)
    out, attn = pl.pallas_call(
        kern,
        grid=(B,),
        in_specs=[pl.BlockSpec((1, T, E), lambda b: (b, 0, 0)),
                  pl.BlockSpec((1, S, E), lambda b: (b, 0, 0)),
                  w((E, E)), w((1, E)),
                  w((E, 2 * E)), w((1, 2 * E)),
                  w((E, E)), w((1, E)),
                  w((1, E)), w((1, E)),
                  w((E, F)), w((1, F)),
                  w((F, E)), w((1, E)),
                  w((1, E)), w((1, E))],
        out_specs=[pl.BlockSpec((1, T, E), lambda b: (b, 0, 0)),
                   pl.BlockSpec((1, T, S), lambda b: (b, 0, 0))],
        out_shape=[jax.ShapeDtypeStruct((B, T, E), jnp.float32),
                   jax.ShapeDtypeStruct((B, T, S), jnp.float32)],
        compiler_params=pltpu.CompilerParams(dimension_semantics=("parallel",)),
    )(xq_b, xkv_b,
      p_attn["wq"].astype(jnp.bfloat16), p_attn["bq"].reshape(1, E),
      wkv, bkv,
      p_attn["wo"].astype(jnp.bfloat16), p_attn["bo"].reshape(1, E),
      ln_attn["g"].reshape(1, E), ln_attn["b"].reshape(1, E),
      p_ffn["w1"].astype(jnp.bfloat16), p_ffn["b1"].reshape(1, F),
      p_ffn["w2"].astype(jnp.bfloat16), p_ffn["b2"].reshape(1, E),
      ln_final["g"].reshape(1, E), ln_final["b"].reshape(1, E))
    return out, attn


def _agg_ffn_block(layer_w, encoder_states, ln, p_ffn):
    """encoder_states: (L, B, S, E). Returns layer-aggregated + FFN'd (B*S, E)."""
    # TODO(synk): LayerLinearAggregation source unavailable; implemented as softmax-over-layer
    # weighted sum (matches the 'all' route of TransformerRecurrentLayer).
    L, B, S, E = encoder_states.shape
    F = p_ffn["w1"].shape[1]
    enc = encoder_states.reshape(L, B * S, E)
    M = B * S
    tm = _row_tile(M)
    w = jax.nn.softmax(layer_w.astype(jnp.float32))   # tiny (L,) softmax, done once
    # TODO(synk): no K-tiling of the (E,F)/(F,E) weights; needed for very large ffn_dim on v7x.
    kern = functools.partial(_agg_ffn_kernel, num_layers=L)
    return pl.pallas_call(
        kern,
        grid=(M // tm,),
        in_specs=[
            pl.BlockSpec(memory_space=pltpu.MemorySpace.SMEM),   # (L,) scalar weights
            pl.BlockSpec((L, tm, E), lambda i: (0, i, 0)),
            pl.BlockSpec((1, E), lambda i: (0, 0)),
            pl.BlockSpec((1, E), lambda i: (0, 0)),
            pl.BlockSpec((E, F), lambda i: (0, 0)),
            pl.BlockSpec((1, F), lambda i: (0, 0)),
            pl.BlockSpec((F, E), lambda i: (0, 0)),
            pl.BlockSpec((1, E), lambda i: (0, 0)),
        ],
        out_specs=pl.BlockSpec((tm, E), lambda i: (i, 0)),
        out_shape=jax.ShapeDtypeStruct((M, E), jnp.float32),
        compiler_params=pltpu.CompilerParams(dimension_semantics=("parallel",)),
    )(w, enc,
      ln["g"].reshape(1, E), ln["b"].reshape(1, E),
      p_ffn["w1"].astype(jnp.bfloat16), p_ffn["b1"].reshape(1, F),
      p_ffn["w2"].astype(jnp.bfloat16), p_ffn["b2"].reshape(1, E))


# ------------------------------ full decoder layer ---------------------------

def aggregation_decoder_layer_forward(params, x, encoder_states, num_heads):
    T, B, E = x.shape
    L, _, S, _ = encoder_states.shape

    xb = jnp.transpose(x, (1, 0, 2))                 # (B, T, E) batch-major, single transpose

    # ---- self-attention block (fused QKV / causal attn / out-proj / residual / LN) ----
    xb = _self_attn_block(xb, params["self_attn"], params["self_attn_ln"], num_heads)

    # ---- layer aggregation ('linear') + layer_attn_norm + layer_attn_ffn, all fused ----
    aeo = _agg_ffn_block(params["layer_w"], encoder_states,
                         params["layer_attn_ln"], params["layer_ffn"])       # (B*S, E)
    aeo_b = aeo.reshape(B, S, E)

    # ---- encoder (cross) attention block + final FFN, fused; returns head-avg weights ----
    xb, attn = _cross_attn_ffn_block(xb, aeo_b, params["enc_attn"], params["enc_attn_ln"],
                                     params["ffn"], params["final_ln"], num_heads)

    x_out = jnp.transpose(xb, (1, 0, 2))             # back to (T, B, E)
    return x_out, attn


# ------------------------------ parameter init --------------------------------

def init_params(key, embed_dim, ffn_dim, layer_num):
    E, F, L = embed_dim, ffn_dim, layer_num
    ks = iter(jax.random.split(key, 32))

    def nrm(shape):
        return (jax.random.normal(next(ks), shape) * 0.02).astype(jnp.float32)

    def mha_params():
        return dict(
            wq=nrm((E, E)), bq=jnp.zeros((E,), jnp.float32),
            wk=nrm((E, E)), bk=jnp.zeros((E,), jnp.float32),
            wv=nrm((E, E)), bv=jnp.zeros((E,), jnp.float32),
            wo=nrm((E, E)), bo=jnp.zeros((E,), jnp.float32),
        )

    def ln_params():
        return dict(g=jnp.ones((E,), jnp.float32), b=jnp.zeros((E,), jnp.float32))

    def ffn_params():
        return dict(w1=nrm((E, F)), b1=jnp.zeros((F,), jnp.float32),
                    w2=nrm((F, E)), b2=jnp.zeros((E,), jnp.float32))

    return dict(
        self_attn=mha_params(),
        self_attn_ln=ln_params(),
        layer_w=nrm((L,)),              # LayerLinearAggregation per-layer logits
        layer_attn_ln=ln_params(),
        layer_ffn=ffn_params(),         # layer_attn_fc1 / layer_attn_fc2
        enc_attn=mha_params(),
        enc_attn_ln=ln_params(),
        ffn=ffn_params(),               # fc1 / fc2
        final_ln=ln_params(),
    )


# ------------------------------ main ------------------------------------------

if __name__ == "__main__":
    T, B, S, E, H, F, L = 16, 2, 16, 128, 4, 256, 4

    key = jax.random.PRNGKey(0)
    kx, ke, kp = jax.random.split(key, 3)
    x = jax.random.normal(kx, (T, B, E), jnp.float32)                  # (seq_len, batch, embed)
    encoder_states = jax.random.normal(ke, (L, B, S, E), jnp.float32)  # (layer, batch, src, ch)
    params = init_params(kp, E, F, L)

    fwd = jax.jit(functools.partial(aggregation_decoder_layer_forward, num_heads=H))
    out, attn = fwd(params, x, encoder_states)
    jax.block_until_ready((out, attn))

    assert out.shape == (T, B, E)
    assert attn.shape == (B, T, S)
    print("KERNEL_OK")
</pallas_src>

<mosaic_0001>
module attributes {stable_mosaic.version = 11 : i64} {
  func.func @_agg_ffn_kernel(%arg0: i32, %arg1: memref<4xf32, #tpu.memory_space<smem>>, %arg2: memref<4x16x128xf32, #tpu.memory_space<vmem>>, %arg3: memref<1x128xf32, #tpu.memory_space<vmem>>, %arg4: memref<1x128xf32, #tpu.memory_space<vmem>>, %arg5: memref<128x256xbf16, #tpu.memory_space<vmem>>, %arg6: memref<1x256xf32, #tpu.memory_space<vmem>>, %arg7: memref<256x128xbf16, #tpu.memory_space<vmem>>, %arg8: memref<1x128xf32, #tpu.memory_space<vmem>>, %arg9: memref<16x128xf32, #tpu.memory_space<vmem>>) attributes {dimension_semantics = [#tpu.dimension_semantics<parallel>], iteration_bounds = array<i64: 2>, scalar_prefetch = 0 : i64, scratch_operands = 0 : i64, tpu.core_type = #tpu.core_type<tc>, window_params = [{transform_indices = @transform_0, window_bounds = array<i64: 4>}, {transform_indices = @transform_1, window_bounds = array<i64: 4, 16, 128>}, {pipeline_mode = #tpu.pipeline_mode<synchronous>, transform_indices = @transform_2, window_bounds = array<i64: 1, 128>}, {pipeline_mode = #tpu.pipeline_mode<synchronous>, transform_indices = @transform_3, window_bounds = array<i64: 1, 128>}, {pipeline_mode = #tpu.pipeline_mode<synchronous>, transform_indices = @transform_4, window_bounds = array<i64: 128, 256>}, {pipeline_mode = #tpu.pipeline_mode<synchronous>, transform_indices = @transform_5, window_bounds = array<i64: 1, 256>}, {pipeline_mode = #tpu.pipeline_mode<synchronous>, transform_indices = @transform_6, window_bounds = array<i64: 256, 128>}, {pipeline_mode = #tpu.pipeline_mode<synchronous>, transform_indices = @transform_7, window_bounds = array<i64: 1, 128>}, {transform_indices = @transform_8, window_bounds = array<i64: 16, 128>}]} {
    %c0 = arith.constant 0 : index
    %0 = memref.load %arg1[%c0] : memref<4xf32, #tpu.memory_space<smem>>
    %c0_0 = arith.constant 0 : index
    %c0_1 = arith.constant 0 : index
    %c0_2 = arith.constant 0 : index
    %1 = vector.load %arg2[%c0_0, %c0_1, %c0_2] : memref<4x16x128xf32, #tpu.memory_space<vmem>>, vector<1x16x128xf32>
    %2 = vector.shape_cast %1 : vector<1x16x128xf32> to vector<16x128xf32>
    %3 = vector.broadcast %0 : f32 to vector<16x128xf32>
    %4 = arith.mulf %3, %2 : vector<16x128xf32>
    %c1 = arith.constant 1 : index
    %5 = memref.load %arg1[%c1] : memref<4xf32, #tpu.memory_space<smem>>
    %c1_3 = arith.constant 1 : index
    %c0_4 = arith.constant 0 : index
    %c0_5 = arith.constant 0 : index
    %6 = vector.load %arg2[%c1_3, %c0_4, %c0_5] : memref<4x16x128xf32, #tpu.memory_space<vmem>>, vector<1x16x128xf32>
    %7 = vector.shape_cast %6 : vector<1x16x128xf32> to vector<16x128xf32>
    %8 = vector.broadcast %5 : f32 to vector<16x128xf32>
    %9 = arith.mulf %8, %7 : vector<16x128xf32>
    %10 = arith.addf %4, %9 : vector<16x128xf32>
    %c2 = arith.constant 2 : index
    %11 = memref.load %arg1[%c2] : memref<4xf32, #tpu.memory_space<smem>>
    %c2_6 = arith.constant 2 : index
    %c0_7 = arith.constant 0 : index
    %c0_8 = arith.constant 0 : index
    %12 = vector.load %arg2[%c2_6, %c0_7, %c0_8] : memref<4x16x128xf32, #tpu.memory_space<vmem>>, vector<1x16x128xf32>
    %13 = vector.shape_cast %12 : vector<1x16x128xf32> to vector<16x128xf32>
    %14 = vector.broadcast %11 : f32 to vector<16x128xf32>
    %15 = arith.mulf %14, %13 : vector<16x128xf32>
    %16 = arith.addf %10, %15 : vector<16x128xf32>
    %c3 = arith.constant 3 : index
    %17 = memref.load %arg1[%c3] : memref<4xf32, #tpu.memory_space<smem>>
    %c3_9 = arith.constant 3 : index
    %c0_10 = arith.constant 0 : index
    %c0_11 = arith.constant 0 : index
    %18 = vector.load %arg2[%c3_9, %c0_10, %c0_11] : memref<4x16x128xf32, #tpu.memory_space<vmem>>, vector<1x16x128xf32>
    %19 = vector.shape_cast %18 : vector<1x16x128xf32> to vector<16x128xf32>
    %20 = vector.broadcast %17 : f32 to vector<16x128xf32>
    %21 = arith.mulf %20, %19 : vector<16x128xf32>
    %22 = arith.addf %16, %21 : vector<16x128xf32>
    %c0_12 = arith.constant 0 : index
    %c0_13 = arith.constant 0 : index
    %23 = vector.load %arg3[%c0_12, %c0_13] : memref<1x128xf32, #tpu.memory_space<vmem>>, vector<1x128xf32>
    %c0_14 = arith.constant 0 : index
    %c0_15 = arith.constant 0 : index
    %24 = vector.load %arg4[%c0_14, %c0_15] : memref<1x128xf32, #tpu.memory_space<vmem>>, vector<1x128xf32>
    %cst = arith.constant dense<0.000000e+00> : vector<16xf32>
    %25 = vector.multi_reduction <add>, %22, %cst [1] : vector<16x128xf32> to vector<16xf32>
    %26 = vector.shape_cast %25 : vector<16xf32> to vector<16x1xf32>
    %cst_16 = arith.constant 1.280000e+02 : f32
    %27 = vector.broadcast %cst_16 : f32 to vector<16x1xf32>
    %28 = arith.divf %26, %27 : vector<16x1xf32>
    %29 = vector.broadcast %28 : vector<16x1xf32> to vector<16x128xf32>
    %30 = arith.subf %22, %29 : vector<16x128xf32>
    %31 = arith.mulf %30, %30 : vector<16x128xf32>
    %cst_17 = arith.constant dense<0.000000e+00> : vector<16xf32>
    %32 = vector.multi_reduction <add>, %31, %cst_17 [1] : vector<16x128xf32> to vector<16xf32>
    %33 = vector.shape_cast %32 : vector<16xf32> to vector<16x1xf32>
    %cst_18 = arith.constant 1.280000e+02 : f32
    %34 = vector.broadcast %cst_18 : f32 to vector<16x1xf32>
    %35 = arith.divf %33, %34 : vector<16x1xf32>
    %36 = vector.broadcast %28 : vector<16x1xf32> to vector<16x128xf32>
    %37 = arith.subf %22, %36 : vector<16x128xf32>
    %cst_19 = arith.constant 9.99999974E-6 : f32
    %38 = vector.broadcast %cst_19 : f32 to vector<16x1xf32>
    %39 = arith.addf %35, %38 : vector<16x1xf32>
    %40 = math.rsqrt %39 : vector<16x1xf32>
    %41 = vector.broadcast %40 : vector<16x1xf32> to vector<16x128xf32>
    %42 = arith.mulf %37, %41 : vector<16x128xf32>
    %43 = vector.broadcast %23 : vector<1x128xf32> to vector<16x128xf32>
    %44 = arith.mulf %42, %43 : vector<16x128xf32>
    %45 = vector.broadcast %24 : vector<1x128xf32> to vector<16x128xf32>
    %46 = arith.addf %44, %45 : vector<16x128xf32>
    %47 = arith.truncf %46 : vector<16x128xf32> to vector<16x128xbf16>
    %c0_20 = arith.constant 0 : index
    %c0_21 = arith.constant 0 : index
    %48 = vector.load %arg5[%c0_20, %c0_21] : memref<128x256xbf16, #tpu.memory_space<vmem>>, vector<128x256xbf16>
    %cst_22 = arith.constant dense<0.000000e+00> : vector<16x256xf32>
    %49 = tpu.matmul %47, %48, %cst_22 {dimension_numbers = #tpu.dot_dimension_numbers<[1], [0], [0], [1], [0, 0, 1, 1], [], []>} : vector<16x128xbf16>, vector<128x256xbf16>, vector<16x256xf32> -> vector<16x256xf32>
    %c0_23 = arith.constant 0 : index
    %c0_24 = arith.constant 0 : index
    %50 = vector.load %arg6[%c0_23, %c0_24] : memref<1x256xf32, #tpu.memory_space<vmem>>, vector<1x256xf32>
    %51 = vector.broadcast %50 : vector<1x256xf32> to vector<16x256xf32>
    %52 = arith.addf %49, %51 : vector<16x256xf32>
    %cst_25 = arith.constant 0.000000e+00 : f32
    %53 = vector.broadcast %cst_25 : f32 to vector<16x256xf32>
    %54 = arith.maximumf %52, %53 : vector<16x256xf32>
    %55 = arith.truncf %54 : vector<16x256xf32> to vector<16x256xbf16>
    %c0_26 = arith.constant 0 : index
    %c0_27 = arith.constant 0 : index
    %56 = vector.load %arg7[%c0_26, %c0_27] : memref<256x128xbf16, #tpu.memory_space<vmem>>, vector<256x128xbf16>
    %cst_28 = arith.constant dense<0.000000e+00> : vector<16x128xf32>
    %57 = tpu.matmul %55, %56, %cst_28 {dimension_numbers = #tpu.dot_dimension_numbers<[1], [0], [0], [1], [0, 0, 1, 1], [], []>} : vector<16x256xbf16>, vector<256x128xbf16>, vector<16x128xf32> -> vector<16x128xf32>
    %c0_29 = arith.constant 0 : index
    %c0_30 = arith.constant 0 : index
    %58 = vector.load %arg8[%c0_29, %c0_30] : memref<1x128xf32, #tpu.memory_space<vmem>>, vector<1x128xf32>
    %59 = vector.broadcast %58 : vector<1x128xf32> to vector<16x128xf32>
    %60 = arith.addf %57, %59 : vector<16x128xf32>
    %61 = arith.addf %60, %46 : vector<16x128xf32>
    %c0_31 = arith.constant 0 : index
    %c0_32 = arith.constant 0 : index
    %62 = vector.load %arg3[%c0_31, %c0_32] : memref<1x128xf32, #tpu.memory_space<vmem>>, vector<1x128xf32>
    %c0_33 = arith.constant 0 : index
    %c0_34 = arith.constant 0 : index
    %63 = vector.load %arg4[%c0_33, %c0_34] : memref<1x128xf32, #tpu.memory_space<vmem>>, vector<1x128xf32>
    %cst_35 = arith.constant dense<0.000000e+00> : vector<16xf32>
    %64 = vector.multi_reduction <add>, %61, %cst_35 [1] : vector<16x128xf32> to vector<16xf32>
    %65 = vector.shape_cast %64 : vector<16xf32> to vector<16x1xf32>
    %cst_36 = arith.constant 1.280000e+02 : f32
    %66 = vector.broadcast %cst_36 : f32 to vector<16x1xf32>
    %67 = arith.divf %65, %66 : vector<16x1xf32>
    %68 = vector.broadcast %67 : vector<16x1xf32> to vector<16x128xf32>
    %69 = arith.subf %61, %68 : vector<16x128xf32>
    %70 = arith.mulf %69, %69 : vector<16x128xf32>
    %cst_37 = arith.constant dense<0.000000e+00> : vector<16xf32>
    %71 = vector.multi_reduction <add>, %70, %cst_37 [1] : vector<16x128xf32> to vector<16xf32>
    %72 = vector.shape_cast %71 : vector<16xf32> to vector<16x1xf32>
    %cst_38 = arith.constant 1.280000e+02 : f32
    %73 = vector.broadcast %cst_38 : f32 to vector<16x1xf32>
    %74 = arith.divf %72, %73 : vector<16x1xf32>
    %75 = vector.broadcast %67 : vector<16x1xf32> to vector<16x128xf32>
    %76 = arith.subf %61, %75 : vector<16x128xf32>
    %cst_39 = arith.constant 9.99999974E-6 : f32
    %77 = vector.broadcast %cst_39 : f32 to vector<16x1xf32>
    %78 = arith.addf %74, %77 : vector<16x1xf32>
    %79 = math.rsqrt %78 : vector<16x1xf32>
    %80 = vector.broadcast %79 : vector<16x1xf32> to vector<16x128xf32>
    %81 = arith.mulf %76, %80 : vector<16x128xf32>
    %82 = vector.broadcast %62 : vector<1x128xf32> to vector<16x128xf32>
    %83 = arith.mulf %81, %82 : vector<16x128xf32>
    %84 = vector.broadcast %63 : vector<1x128xf32> to vector<16x128xf32>
    %85 = arith.addf %83, %84 : vector<16x128xf32>
    %c0_40 = arith.constant 0 : index
    %c0_41 = arith.constant 0 : index
    %86 = vector.load %arg9[%c0_40, %c0_41] : memref<16x128xf32, #tpu.memory_space<vmem>>, vector<16x128xf32>
    tpu.vector_store %arg9[%c0_40, %c0_41], %85 {strides = array<i32>} : memref<16x128xf32, #tpu.memory_space<vmem>>, vector<16x128xf32>,
    return
  }
  func.func @transform_0(%arg0: i32) -> i32 {
    %c0_i32 = arith.constant 0 : i32
    %c0_i32_0 = arith.constant 0 : i32
    return %c0_i32 : i32
  }
  func.func @transform_1(%arg0: i32) -> (i32, i32, i32) {
    %c0_i32 = arith.constant 0 : i32
    %c0_i32_0 = arith.constant 0 : i32
    %c0_i32_1 = arith.constant 0 : i32
    return %c0_i32, %arg0, %c0_i32_0 : i32, i32, i32
  }
  func.func @transform_2(%arg0: i32) -> (i32, i32) {
    %c0_i32 = arith.constant 0 : i32
    %c0_i32_0 = arith.constant 0 : i32
    %c0_i32_1 = arith.constant 0 : i32
    return %c0_i32, %c0_i32_0 : i32, i32
  }
  func.func @transform_3(%arg0: i32) -> (i32, i32) {
    %c0_i32 = arith.constant 0 : i32
    %c0_i32_0 = arith.constant 0 : i32
    %c0_i32_1 = arith.constant 0 : i32
    return %c0_i32, %c0_i32_0 : i32, i32
  }
  func.func @transform_4(%arg0: i32) -> (i32, i32) {
    %c0_i32 = arith.constant 0 : i32
    %c0_i32_0 = arith.constant 0 : i32
    %c0_i32_1 = arith.constant 0 : i32
    return %c0_i32, %c0_i32_0 : i32, i32
  }
  func.func @transform_5(%arg0: i32) -> (i32, i32) {
    %c0_i32 = arith.constant 0 : i32
    %c0_i32_0 = arith.constant 0 : i32
    %c0_i32_1 = arith.constant 0 : i32
    return %c0_i32, %c0_i32_0 : i32, i32
  }
  func.func @transform_6(%arg0: i32) -> (i32, i32) {
    %c0_i32 = arith.constant 0 : i32
    %c0_i32_0 = arith.constant 0 : i32
    %c0_i32_1 = arith.constant 0 : i32
    return %c0_i32, %c0_i32_0 : i32, i32
  }
  func.func @transform_7(%arg0: i32) -> (i32, i32) {
    %c0_i32 = arith.constant 0 : i32
    %c0_i32_0 = arith.constant 0 : i32
    %c0_i32_1 = arith.constant 0 : i32
    return %c0_i32, %c0_i32_0 : i32, i32
  }
  func.func @transform_8(%arg0: i32) -> (i32, i32) {
    %c0_i32 = arith.constant 0 : i32
    %c0_i32_0 = arith.constant 0 : i32
    return %arg0, %c0_i32 : i32, i32
  }
}

module attributes {stable_mosaic.version = 11 : i64} {
  func.func @_self_attn_kernel(%arg0: i32, %arg1: memref<1x16x128xf32, #tpu.memory_space<vmem>>, %arg2: memref<128x384xbf16, #tpu.memory_space<vmem>>, %arg3: memref<1x384xf32, #tpu.memory_space<vmem>>, %arg4: memref<128x128xbf16, #tpu.memory_space<vmem>>, %arg5: memref<1x128xf32, #tpu.memory_space<vmem>>, %arg6: memref<1x128xf32, #tpu.memory_space<vmem>>, %arg7: memref<1x128xf32, #tpu.memory_space<vmem>>, %arg8: memref<1x16x128xf32, #tpu.memory_space<vmem>>) attributes {dimension_semantics = [#tpu.dimension_semantics<parallel>], iteration_bounds = array<i64: 2>, scalar_prefetch = 0 : i64, scratch_operands = 0 : i64, tpu.core_type = #tpu.core_type<tc>, window_params = [{transform_indices = @transform_0, window_bounds = array<i64: 1, 16, 128>}, {pipeline_mode = #tpu.pipeline_mode<synchronous>, transform_indices = @transform_1, window_bounds = array<i64: 128, 384>}, {pipeline_mode = #tpu.pipeline_mode<synchronous>, transform_indices = @transform_2, window_bounds = array<i64: 1, 384>}, {pipeline_mode = #tpu.pipeline_mode<synchronous>, transform_indices = @transform_3, window_bounds = array<i64: 128, 128>}, {pipeline_mode = #tpu.pipeline_mode<synchronous>, transform_indices = @transform_4, window_bounds = array<i64: 1, 128>}, {pipeline_mode = #tpu.pipeline_mode<synchronous>, transform_indices = @transform_5, window_bounds = array<i64: 1, 128>}, {pipeline_mode = #tpu.pipeline_mode<synchronous>, transform_indices = @transform_6, window_bounds = array<i64: 1, 128>}, {transform_indices = @transform_7, window_bounds = array<i64: 1, 16, 128>}]} {
    %c0 = arith.constant 0 : index
    %c0_0 = arith.constant 0 : index
    %c0_1 = arith.constant 0 : index
    %0 = vector.load %arg1[%c0, %c0_0, %c0_1] : memref<1x16x128xf32, #tpu.memory_space<vmem>>, vector<1x16x128xf32>
    %1 = vector.shape_cast %0 : vector<1x16x128xf32> to vector<16x128xf32>
    %2 = arith.truncf %1 : vector<16x128xf32> to vector<16x128xbf16>
    %c0_2 = arith.constant 0 : index
    %c0_3 = arith.constant 0 : index
    %3 = vector.load %arg2[%c0_2, %c0_3] : memref<128x384xbf16, #tpu.memory_space<vmem>>, vector<128x384xbf16>
    %cst = arith.constant dense<0.000000e+00> : vector<16x384xf32>
    %4 = tpu.matmul %2, %3, %cst {dimension_numbers = #tpu.dot_dimension_numbers<[1], [0], [0], [1], [0, 0, 1, 1], [], []>} : vector<16x128xbf16>, vector<128x384xbf16>, vector<16x384xf32> -> vector<16x384xf32>
    %c0_4 = arith.constant 0 : index
    %c0_5 = arith.constant 0 : index
    %5 = vector.load %arg3[%c0_4, %c0_5] : memref<1x384xf32, #tpu.memory_space<vmem>>, vector<1x384xf32>
    %6 = vector.broadcast %5 : vector<1x384xf32> to vector<16x384xf32>
    %7 = arith.addf %4, %6 : vector<16x384xf32>
    %8 = vector.extract_strided_slice %7 {offsets = [0, 0], sizes = [16, 128], strides = [1, 1]} : vector<16x384xf32> to vector<16x128xf32>
    %cst_6 = arith.constant 0.176776692 : f32
    %9 = vector.broadcast %cst_6 : f32 to vector<16x128xf32>
    %10 = arith.mulf %8, %9 : vector<16x128xf32>
    %11 = vector.extract_strided_slice %7 {offsets = [0, 128], sizes = [16, 128], strides = [1, 1]} : vector<16x384xf32> to vector<16x128xf32>
    %12 = vector.extract_strided_slice %7 {offsets = [0, 256], sizes = [16, 128], strides = [1, 1]} : vector<16x384xf32> to vector<16x128xf32>
    %13 = arith.truncf %10 : vector<16x128xf32> to vector<16x128xbf16>
    %14 = arith.truncf %11 : vector<16x128xf32> to vector<16x128xbf16>
    %15 = arith.truncf %12 : vector<16x128xf32> to vector<16x128xbf16>
    %16 = tpu.iota {dimensions = array<i32: 0>} : vector<16x16xi32>
    %17 = tpu.iota {dimensions = array<i32: 1>} : vector<16x16xi32>
    %18 = arith.cmpi sge, %16, %17 : vector<16x16xi32>
    %19 = vector.extract_strided_slice %13 {offsets = [0, 0], sizes = [16, 32], strides = [1, 1]} : vector<16x128xbf16> to vector<16x32xbf16>
    %20 = vector.extract_strided_slice %14 {offsets = [0, 0], sizes = [16, 32], strides = [1, 1]} : vector<16x128xbf16> to vector<16x32xbf16>
    %cst_7 = arith.constant dense<0.000000e+00> : vector<16x16xf32>
    %21 = tpu.matmul %19, %20, %cst_7 {dimension_numbers = #tpu.dot_dimension_numbers<[1], [1], [0], [0], [0, 0, 1, 0], [], []>} : vector<16x32xbf16>, vector<16x32xbf16>, vector<16x16xf32> -> vector<16x16xf32>
    %cst_8 = arith.constant -1.000000e+09 : f32
    %22 = vector.broadcast %cst_8 : f32 to vector<16x16xf32>
    %23 = arith.select %18, %21, %22 : vector<16x16xi1>, vector<16x16xf32>
    %cst_9 = arith.constant dense<0xFF800000> : vector<16xf32>
    %24 = vector.multi_reduction <maximumf>, %23, %cst_9 [1] : vector<16x16xf32> to vector<16xf32>
    %25 = vector.shape_cast %24 : vector<16xf32> to vector<16x1xf32>
    %26 = vector.broadcast %25 : vector<16x1xf32> to vector<16x16xf32>
    %27 = arith.subf %23, %26 : vector<16x16xf32>
    %28 = math.exp %27 : vector<16x16xf32>
    %cst_10 = arith.constant dense<0.000000e+00> : vector<16xf32>
    %29 = vector.multi_reduction <add>, %28, %cst_10 [1] : vector<16x16xf32> to vector<16xf32>
    %30 = vector.shape_cast %29 : vector<16xf32> to vector<16x1xf32>
    %31 = tpu.reciprocal %30 {approx = true} : vector<16x1xf32> -> vector<16x1xf32>
    %32 = vector.broadcast %31 : vector<16x1xf32> to vector<16x16xf32>
    %33 = arith.mulf %28, %32 : vector<16x16xf32>
    %34 = arith.truncf %33 : vector<16x16xf32> to vector<16x16xbf16>
    %35 = vector.extract_strided_slice %15 {offsets = [0, 0], sizes = [16, 32], strides = [1, 1]} : vector<16x128xbf16> to vector<16x32xbf16>
    %cst_11 = arith.constant dense<0.000000e+00> : vector<16x32xf32>
    %36 = tpu.matmul %34, %35, %cst_11 {dimension_numbers = #tpu.dot_dimension_numbers<[1], [0], [0], [1], [0, 0, 1, 1], [], []>} : vector<16x16xbf16>, vector<16x32xbf16>, vector<16x32xf32> -> vector<16x32xf32>
    %37 = vector.extract_strided_slice %13 {offsets = [0, 32], sizes = [16, 32], strides = [1, 1]} : vector<16x128xbf16> to vector<16x32xbf16>
    %38 = vector.extract_strided_slice %14 {offsets = [0, 32], sizes = [16, 32], strides = [1, 1]} : vector<16x128xbf16> to vector<16x32xbf16>
    %cst_12 = arith.constant dense<0.000000e+00> : vector<16x16xf32>
    %39 = tpu.matmul %37, %38, %cst_12 {dimension_numbers = #tpu.dot_dimension_numbers<[1], [1], [0], [0], [0, 0, 1, 0], [], []>} : vector<16x32xbf16>, vector<16x32xbf16>, vector<16x16xf32> -> vector<16x16xf32>
    %cst_13 = arith.constant -1.000000e+09 : f32
    %40 = vector.broadcast %cst_13 : f32 to vector<16x16xf32>
    %41 = arith.select %18, %39, %40 : vector<16x16xi1>, vector<16x16xf32>
    %cst_14 = arith.constant dense<0xFF800000> : vector<16xf32>
    %42 = vector.multi_reduction <maximumf>, %41, %cst_14 [1] : vector<16x16xf32> to vector<16xf32>
    %43 = vector.shape_cast %42 : vector<16xf32> to vector<16x1xf32>
    %44 = vector.broadcast %43 : vector<16x1xf32> to vector<16x16xf32>
    %45 = arith.subf %41, %44 : vector<16x16xf32>
    %46 = math.exp %45 : vector<16x16xf32>
    %cst_15 = arith.constant dense<0.000000e+00> : vector<16xf32>
    %47 = vector.multi_reduction <add>, %46, %cst_15 [1] : vector<16x16xf32> to vector<16xf32>
    %48 = vector.shape_cast %47 : vector<16xf32> to vector<16x1xf32>
    %49 = tpu.reciprocal %48 {approx = true} : vector<16x1xf32> -> vector<16x1xf32>
    %50 = vector.broadcast %49 : vector<16x1xf32> to vector<16x16xf32>
    %51 = arith.mulf %46, %50 : vector<16x16xf32>
    %52 = arith.truncf %51 : vector<16x16xf32> to vector<16x16xbf16>
    %53 = vector.extract_strided_slice %15 {offsets = [0, 32], sizes = [16, 32], strides = [1, 1]} : vector<16x128xbf16> to vector<16x32xbf16>
    %cst_16 = arith.constant dense<0.000000e+00> : vector<16x32xf32>
    %54 = tpu.matmul %52, %53, %cst_16 {dimension_numbers = #tpu.dot_dimension_numbers<[1], [0], [0], [1], [0, 0, 1, 1], [], []>} : vector<16x16xbf16>, vector<16x32xbf16>, vector<16x32xf32> -> vector<16x32xf32>
    %55 = vector.extract_strided_slice %13 {offsets = [0, 64], sizes = [16, 32], strides = [1, 1]} : vector<16x128xbf16> to vector<16x32xbf16>
    %56 = vector.extract_strided_slice %14 {offsets = [0, 64], sizes = [16, 32], strides = [1, 1]} : vector<16x128xbf16> to vector<16x32xbf16>
    %cst_17 = arith.constant dense<0.000000e+00> : vector<16x16xf32>
    %57 = tpu.matmul %55, %56, %cst_17 {dimension_numbers = #tpu.dot_dimension_numbers<[1], [1], [0], [0], [0, 0, 1, 0], [], []>} : vector<16x32xbf16>, vector<16x32xbf16>, vector<16x16xf32> -> vector<16x16xf32>
    %cst_18 = arith.constant -1.000000e+09 : f32
    %58 = vector.broadcast %cst_18 : f32 to vector<16x16xf32>
    %59 = arith.select %18, %57, %58 : vector<16x16xi1>, vector<16x16xf32>
    %cst_19 = arith.constant dense<0xFF800000> : vector<16xf32>
    %60 = vector.multi_reduction <maximumf>, %59, %cst_19 [1] : vector<16x16xf32> to vector<16xf32>
    %61 = vector.shape_cast %60 : vector<16xf32> to vector<16x1xf32>
    %62 = vector.broadcast %61 : vector<16x1xf32> to vector<16x16xf32>
    %63 = arith.subf %59, %62 : vector<16x16xf32>
    %64 = math.exp %63 : vector<16x16xf32>
    %cst_20 = arith.constant dense<0.000000e+00> : vector<16xf32>
    %65 = vector.multi_reduction <add>, %64, %cst_20 [1] : vector<16x16xf32> to vector<16xf32>
    %66 = vector.shape_cast %65 : vector<16xf32> to vector<16x1xf32>
    %67 = tpu.reciprocal %66 {approx = true} : vector<16x1xf32> -> vector<16x1xf32>
    %68 = vector.broadcast %67 : vector<16x1xf32> to vector<16x16xf32>
    %69 = arith.mulf %64, %68 : vector<16x16xf32>
    %70 = arith.truncf %69 : vector<16x16xf32> to vector<16x16xbf16>
    %71 = vector.extract_strided_slice %15 {offsets = [0, 64], sizes = [16, 32], strides = [1, 1]} : vector<16x128xbf16> to vector<16x32xbf16>
    %cst_21 = arith.constant dense<0.000000e+00> : vector<16x32xf32>
    %72 = tpu.matmul %70, %71, %cst_21 {dimension_numbers = #tpu.dot_dimension_numbers<[1], [0], [0], [1], [0, 0, 1, 1], [], []>} : vector<16x16xbf16>, vector<16x32xbf16>, vector<16x32xf32> -> vector<16x32xf32>
    %73 = vector.extract_strided_slice %13 {offsets = [0, 96], sizes = [16, 32], strides = [1, 1]} : vector<16x128xbf16> to vector<16x32xbf16>
    %74 = vector.extract_strided_slice %14 {offsets = [0, 96], sizes = [16, 32], strides = [1, 1]} : vector<16x128xbf16> to vector<16x32xbf16>
    %cst_22 = arith.constant dense<0.000000e+00> : vector<16x16xf32>
    %75 = tpu.matmul %73, %74, %cst_22 {dimension_numbers = #tpu.dot_dimension_numbers<[1], [1], [0], [0], [0, 0, 1, 0], [], []>} : vector<16x32xbf16>, vector<16x32xbf16>, vector<16x16xf32> -> vector<16x16xf32>
    %cst_23 = arith.constant -1.000000e+09 : f32
    %76 = vector.broadcast %cst_23 : f32 to vector<16x16xf32>
    %77 = arith.select %18, %75, %76 : vector<16x16xi1>, vector<16x16xf32>
    %cst_24 = arith.constant dense<0xFF800000> : vector<16xf32>
    %78 = vector.multi_reduction <maximumf>, %77, %cst_24 [1] : vector<16x16xf32> to vector<16xf32>
    %79 = vector.shape_cast %78 : vector<16xf32> to vector<16x1xf32>
    %80 = vector.broadcast %79 : vector<16x1xf32> to vector<16x16xf32>
    %81 = arith.subf %77, %80 : vector<16x16xf32>
    %82 = math.exp %81 : vector<16x16xf32>
    %cst_25 = arith.constant dense<0.000000e+00> : vector<16xf32>
    %83 = vector.multi_reduction <add>, %82, %cst_25 [1] : vector<16x16xf32> to vector<16xf32>
    %84 = vector.shape_cast %83 : vector<16xf32> to vector<16x1xf32>
    %85 = tpu.reciprocal %84 {approx = true} : vector<16x1xf32> -> vector<16x1xf32>
    %86 = vector.broadcast %85 : vector<16x1xf32> to vector<16x16xf32>
    %87 = arith.mulf %82, %86 : vector<16x16xf32>
    %88 = arith.truncf %87 : vector<16x16xf32> to vector<16x16xbf16>
    %89 = vector.extract_strided_slice %15 {offsets = [0, 96], sizes = [16, 32], strides = [1, 1]} : vector<16x128xbf16> to vector<16x32xbf16>
    %cst_26 = arith.constant dense<0.000000e+00> : vector<16x32xf32>
    %90 = tpu.matmul %88, %89, %cst_26 {dimension_numbers = #tpu.dot_dimension_numbers<[1], [0], [0], [1], [0, 0, 1, 1], [], []>} : vector<16x16xbf16>, vector<16x32xbf16>, vector<16x32xf32> -> vector<16x32xf32>
    %91 = tpu.concatenate %36, %54, %72, %90 in 1 : vector<16x32xf32>, vector<16x32xf32>, vector<16x32xf32>, vector<16x32xf32> -> vector<16x128xf32>
    %92 = arith.truncf %91 : vector<16x128xf32> to vector<16x128xbf16>
    %c0_27 = arith.constant 0 : index
    %c0_28 = arith.constant 0 : index
    %93 = vector.load %arg4[%c0_27, %c0_28] : memref<128x128xbf16, #tpu.memory_space<vmem>>, vector<128x128xbf16>
    %cst_29 = arith.constant dense<0.000000e+00> : vector<16x128xf32>
    %94 = tpu.matmul %92, %93, %cst_29 {dimension_numbers = #tpu.dot_dimension_numbers<[1], [0], [0], [1], [0, 0, 1, 1], [], []>} : vector<16x128xbf16>, vector<128x128xbf16>, vector<16x128xf32> -> vector<16x128xf32>
    %c0_30 = arith.constant 0 : index
    %c0_31 = arith.constant 0 : index
    %95 = vector.load %arg5[%c0_30, %c0_31] : memref<1x128xf32, #tpu.memory_space<vmem>>, vector<1x128xf32>
    %96 = vector.broadcast %95 : vector<1x128xf32> to vector<16x128xf32>
    %97 = arith.addf %94, %96 : vector<16x128xf32>
    %98 = arith.addf %97, %1 : vector<16x128xf32>
    %c0_32 = arith.constant 0 : index
    %c0_33 = arith.constant 0 : index
    %99 = vector.load %arg6[%c0_32, %c0_33] : memref<1x128xf32, #tpu.memory_space<vmem>>, vector<1x128xf32>
    %c0_34 = arith.constant 0 : index
    %c0_35 = arith.constant 0 : index
    %100 = vector.load %arg7[%c0_34, %c0_35] : memref<1x128xf32, #tpu.memory_space<vmem>>, vector<1x128xf32>
    %cst_36 = arith.constant dense<0.000000e+00> : vector<16xf32>
    %101 = vector.multi_reduction <add>, %98, %cst_36 [1] : vector<16x128xf32> to vector<16xf32>
    %102 = vector.shape_cast %101 : vector<16xf32> to vector<16x1xf32>
    %cst_37 = arith.constant 1.280000e+02 : f32
    %103 = vector.broadcast %cst_37 : f32 to vector<16x1xf32>
    %104 = arith.divf %102, %103 : vector<16x1xf32>
    %105 = vector.broadcast %104 : vector<16x1xf32> to vector<16x128xf32>
    %106 = arith.subf %98, %105 : vector<16x128xf32>
    %107 = arith.mulf %106, %106 : vector<16x128xf32>
    %cst_38 = arith.constant dense<0.000000e+00> : vector<16xf32>
    %108 = vector.multi_reduction <add>, %107, %cst_38 [1] : vector<16x128xf32> to vector<16xf32>
    %109 = vector.shape_cast %108 : vector<16xf32> to vector<16x1xf32>
    %cst_39 = arith.constant 1.280000e+02 : f32
    %110 = vector.broadcast %cst_39 : f32 to vector<16x1xf32>
    %111 = arith.divf %109, %110 : vector<16x1xf32>
    %112 = vector.broadcast %104 : vector<16x1xf32> to vector<16x128xf32>
    %113 = arith.subf %98, %112 : vector<16x128xf32>
    %cst_40 = arith.constant 9.99999974E-6 : f32
    %114 = vector.broadcast %cst_40 : f32 to vector<16x1xf32>
    %115 = arith.addf %111, %114 : vector<16x1xf32>
    %116 = math.rsqrt %115 : vector<16x1xf32>
    %117 = vector.broadcast %116 : vector<16x1xf32> to vector<16x128xf32>
    %118 = arith.mulf %113, %117 : vector<16x128xf32>
    %119 = vector.broadcast %99 : vector<1x128xf32> to vector<16x128xf32>
    %120 = arith.mulf %118, %119 : vector<16x128xf32>
    %121 = vector.broadcast %100 : vector<1x128xf32> to vector<16x128xf32>
    %122 = arith.addf %120, %121 : vector<16x128xf32>
    %c0_41 = arith.constant 0 : index
    %c0_42 = arith.constant 0 : index
    %c0_43 = arith.constant 0 : index
    %123 = vector.load %arg8[%c0_41, %c0_42, %c0_43] : memref<1x16x128xf32, #tpu.memory_space<vmem>>, vector<1x16x128xf32>
    %124 = vector.shape_cast %123 : vector<1x16x128xf32> to vector<16x128xf32>
    %125 = vector.shape_cast %122 : vector<16x128xf32> to vector<1x16x128xf32>
    tpu.vector_store %arg8[%c0_41, %c0_42, %c0_43], %125 {strides = array<i32>} : memref<1x16x128xf32, #tpu.memory_space<vmem>>, vector<1x16x128xf32>,
    return
  }
  func.func @transform_0(%arg0: i32) -> (i32, i32, i32) {
    %c0_i32 = arith.constant 0 : i32
    %c0_i32_0 = arith.constant 0 : i32
    %c0_i32_1 = arith.constant 0 : i32
    return %arg0, %c0_i32, %c0_i32_0 : i32, i32, i32
  }
  func.func @transform_1(%arg0: i32) -> (i32, i32) {
    %c0_i32 = arith.constant 0 : i32
    %c0_i32_0 = arith.constant 0 : i32
    %c0_i32_1 = arith.constant 0 : i32
    return %c0_i32, %c0_i32_0 : i32, i32
  }
  func.func @transform_2(%arg0: i32) -> (i32, i32) {
    %c0_i32 = arith.constant 0 : i32
    %c0_i32_0 = arith.constant 0 : i32
    %c0_i32_1 = arith.constant 0 : i32
    return %c0_i32, %c0_i32_0 : i32, i32
  }
  func.func @transform_3(%arg0: i32) -> (i32, i32) {
    %c0_i32 = arith.constant 0 : i32
    %c0_i32_0 = arith.constant 0 : i32
    %c0_i32_1 = arith.constant 0 : i32
    return %c0_i32, %c0_i32_0 : i32, i32
  }
  func.func @transform_4(%arg0: i32) -> (i32, i32) {
    %c0_i32 = arith.constant 0 : i32
    %c0_i32_0 = arith.constant 0 : i32
    %c0_i32_1 = arith.constant 0 : i32
    return %c0_i32, %c0_i32_0 : i32, i32
  }
  func.func @transform_5(%arg0: i32) -> (i32, i32) {
    %c0_i32 = arith.constant 0 : i32
    %c0_i32_0 = arith.constant 0 : i32
    %c0_i32_1 = arith.constant 0 : i32
    return %c0_i32, %c0_i32_0 : i32, i32
  }
  func.func @transform_6(%arg0: i32) -> (i32, i32) {
    %c0_i32 = arith.constant 0 : i32
    %c0_i32_0 = arith.constant 0 : i32
    %c0_i32_1 = arith.constant 0 : i32
    return %c0_i32, %c0_i32_0 : i32, i32
  }
  func.func @transform_7(%arg0: i32) -> (i32, i32, i32) {
    %c0_i32 = arith.constant 0 : i32
    %c0_i32_0 = arith.constant 0 : i32
    %c0_i32_1 = arith.constant 0 : i32
    return %arg0, %c0_i32, %c0_i32_0 : i32, i32, i32
  }
}

module attributes {stable_mosaic.version = 11 : i64} {
  func.func @_cross_attn_ffn_kernel(%arg0: i32, %arg1: memref<1x16x128xf32, #tpu.memory_space<vmem>>, %arg2: memref<1x16x128xf32, #tpu.memory_space<vmem>>, %arg3: memref<128x128xbf16, #tpu.memory_space<vmem>>, %arg4: memref<1x128xf32, #tpu.memory_space<vmem>>, %arg5: memref<128x256xbf16, #tpu.memory_space<vmem>>, %arg6: memref<1x256xf32, #tpu.memory_space<vmem>>, %arg7: memref<128x128xbf16, #tpu.memory_space<vmem>>, %arg8: memref<1x128xf32, #tpu.memory_space<vmem>>, %arg9: memref<1x128xf32, #tpu.memory_space<vmem>>, %arg10: memref<1x128xf32, #tpu.memory_space<vmem>>, %arg11: memref<128x256xbf16, #tpu.memory_space<vmem>>, %arg12: memref<1x256xf32, #tpu.memory_space<vmem>>, %arg13: memref<256x128xbf16, #tpu.memory_space<vmem>>, %arg14: memref<1x128xf32, #tpu.memory_space<vmem>>, %arg15: memref<1x128xf32, #tpu.memory_space<vmem>>, %arg16: memref<1x128xf32, #tpu.memory_space<vmem>>, %arg17: memref<1x16x128xf32, #tpu.memory_space<vmem>>, %arg18: memref<1x16x16xf32, #tpu.memory_space<vmem>>) attributes {dimension_semantics = [#tpu.dimension_semantics<parallel>], iteration_bounds = array<i64: 2>, scalar_prefetch = 0 : i64, scratch_operands = 0 : i64, tpu.core_type = #tpu.core_type<tc>, window_params = [{transform_indices = @transform_0, window_bounds = array<i64: 1, 16, 128>}, {transform_indices = @transform_1, window_bounds = array<i64: 1, 16, 128>}, {pipeline_mode = #tpu.pipeline_mode<synchronous>, transform_indices = @transform_2, window_bounds = array<i64: 128, 128>}, {pipeline_mode = #tpu.pipeline_mode<synchronous>, transform_indices = @transform_3, window_bounds = array<i64: 1, 128>}, {pipeline_mode = #tpu.pipeline_mode<synchronous>, transform_indices = @transform_4, window_bounds = array<i64: 128, 256>}, {pipeline_mode = #tpu.pipeline_mode<synchronous>, transform_indices = @transform_5, window_bounds = array<i64: 1, 256>}, {pipeline_mode = #tpu.pipeline_mode<synchronous>, transform_indices = @transform_6, window_bounds = array<i64: 128, 128>}, {pipeline_mode = #tpu.pipeline_mode<synchronous>, transform_indices = @transform_7, window_bounds = array<i64: 1, 128>}, {pipeline_mode = #tpu.pipeline_mode<synchronous>, transform_indices = @transform_8, window_bounds = array<i64: 1, 128>}, {pipeline_mode = #tpu.pipeline_mode<synchronous>, transform_indices = @transform_9, window_bounds = array<i64: 1, 128>}, {pipeline_mode = #tpu.pipeline_mode<synchronous>, transform_indices = @transform_10, window_bounds = array<i64: 128, 256>}, {pipeline_mode = #tpu.pipeline_mode<synchronous>, transform_indices = @transform_11, window_bounds = array<i64: 1, 256>}, {pipeline_mode = #tpu.pipeline_mode<synchronous>, transform_indices = @transform_12, window_bounds = array<i64: 256, 128>}, {pipeline_mode = #tpu.pipeline_mode<synchronous>, transform_indices = @transform_13, window_bounds = array<i64: 1, 128>}, {pipeline_mode = #tpu.pipeline_mode<synchronous>, transform_indices = @transform_14, window_bounds = array<i64: 1, 128>}, {pipeline_mode = #tpu.pipeline_mode<synchronous>, transform_indices = @transform_15, window_bounds = array<i64: 1, 128>}, {transform_indices = @transform_16, window_bounds = array<i64: 1, 16, 128>}, {transform_indices = @transform_17, window_bounds = array<i64: 1, 16, 16>}]} {
    %c0 = arith.constant 0 : index
    %c0_0 = arith.constant 0 : index
    %c0_1 = arith.constant 0 : index
    %0 = vector.load %arg1[%c0, %c0_0, %c0_1] : memref<1x16x128xf32, #tpu.memory_space<vmem>>, vector<1x16x128xf32>
    %1 = vector.shape_cast %0 : vector<1x16x128xf32> to vector<16x128xf32>
    %2 = arith.truncf %1 : vector<16x128xf32> to vector<16x128xbf16>
    %c0_2 = arith.constant 0 : index
    %c0_3 = arith.constant 0 : index
    %c0_4 = arith.constant 0 : index
    %3 = vector.load %arg2[%c0_2, %c0_3, %c0_4] : memref<1x16x128xf32, #tpu.memory_space<vmem>>, vector<1x16x128xf32>
    %4 = vector.shape_cast %3 : vector<1x16x128xf32> to vector<16x128xf32>
    %5 = arith.truncf %4 : vector<16x128xf32> to vector<16x128xbf16>
    %c0_5 = arith.constant 0 : index
    %c0_6 = arith.constant 0 : index
    %6 = vector.load %arg3[%c0_5, %c0_6] : memref<128x128xbf16, #tpu.memory_space<vmem>>, vector<128x128xbf16>
    %cst = arith.constant dense<0.000000e+00> : vector<16x128xf32>
    %7 = tpu.matmul %2, %6, %cst {dimension_numbers = #tpu.dot_dimension_numbers<[1], [0], [0], [1], [0, 0, 1, 1], [], []>} : vector<16x128xbf16>, vector<128x128xbf16>, vector<16x128xf32> -> vector<16x128xf32>
    %c0_7 = arith.constant 0 : index
    %c0_8 = arith.constant 0 : index
    %8 = vector.load %arg4[%c0_7, %c0_8] : memref<1x128xf32, #tpu.memory_space<vmem>>, vector<1x128xf32>
    %9 = vector.broadcast %8 : vector<1x128xf32> to vector<16x128xf32>
    %10 = arith.addf %7, %9 : vector<16x128xf32>
    %cst_9 = arith.constant 0.176776692 : f32
    %11 = vector.broadcast %cst_9 : f32 to vector<16x128xf32>
    %12 = arith.mulf %10, %11 : vector<16x128xf32>
    %c0_10 = arith.constant 0 : index
    %c0_11 = arith.constant 0 : index
    %13 = vector.load %arg5[%c0_10, %c0_11] : memref<128x256xbf16, #tpu.memory_space<vmem>>, vector<128x256xbf16>
    %cst_12 = arith.constant dense<0.000000e+00> : vector<16x256xf32>
    %14 = tpu.matmul %5, %13, %cst_12 {dimension_numbers = #tpu.dot_dimension_numbers<[1], [0], [0], [1], [0, 0, 1, 1], [], []>} : vector<16x128xbf16>, vector<128x256xbf16>, vector<16x256xf32> -> vector<16x256xf32>
    %c0_13 = arith.constant 0 : index
    %c0_14 = arith.constant 0 : index
    %15 = vector.load %arg6[%c0_13, %c0_14] : memref<1x256xf32, #tpu.memory_space<vmem>>, vector<1x256xf32>
    %16 = vector.broadcast %15 : vector<1x256xf32> to vector<16x256xf32>
    %17 = arith.addf %14, %16 : vector<16x256xf32>
    %18 = vector.extract_strided_slice %17 {offsets = [0, 0], sizes = [16, 128], strides = [1, 1]} : vector<16x256xf32> to vector<16x128xf32>
    %19 = vector.extract_strided_slice %17 {offsets = [0, 128], sizes = [16, 128], strides = [1, 1]} : vector<16x256xf32> to vector<16x128xf32>
    %20 = arith.truncf %12 : vector<16x128xf32> to vector<16x128xbf16>
    %21 = arith.truncf %18 : vector<16x128xf32> to vector<16x128xbf16>
    %22 = arith.truncf %19 : vector<16x128xf32> to vector<16x128xbf16>
    %23 = vector.extract_strided_slice %20 {offsets = [0, 0], sizes = [16, 32], strides = [1, 1]} : vector<16x128xbf16> to vector<16x32xbf16>
    %24 = vector.extract_strided_slice %21 {offsets = [0, 0], sizes = [16, 32], strides = [1, 1]} : vector<16x128xbf16> to vector<16x32xbf16>
    %cst_15 = arith.constant dense<0.000000e+00> : vector<16x16xf32>
    %25 = tpu.matmul %23, %24, %cst_15 {dimension_numbers = #tpu.dot_dimension_numbers<[1], [1], [0], [0], [0, 0, 1, 0], [], []>} : vector<16x32xbf16>, vector<16x32xbf16>, vector<16x16xf32> -> vector<16x16xf32>
    %cst_16 = arith.constant dense<0xFF800000> : vector<16xf32>
    %26 = vector.multi_reduction <maximumf>, %25, %cst_16 [1] : vector<16x16xf32> to vector<16xf32>
    %27 = vector.shape_cast %26 : vector<16xf32> to vector<16x1xf32>
    %28 = vector.broadcast %27 : vector<16x1xf32> to vector<16x16xf32>
    %29 = arith.subf %25, %28 : vector<16x16xf32>
    %30 = math.exp %29 : vector<16x16xf32>
    %cst_17 = arith.constant dense<0.000000e+00> : vector<16xf32>
    %31 = vector.multi_reduction <add>, %30, %cst_17 [1] : vector<16x16xf32> to vector<16xf32>
    %32 = vector.shape_cast %31 : vector<16xf32> to vector<16x1xf32>
    %33 = tpu.reciprocal %32 {approx = true} : vector<16x1xf32> -> vector<16x1xf32>
    %34 = vector.broadcast %33 : vector<16x1xf32> to vector<16x16xf32>
    %35 = arith.mulf %30, %34 : vector<16x16xf32>
    %36 = arith.truncf %35 : vector<16x16xf32> to vector<16x16xbf16>
    %37 = vector.extract_strided_slice %22 {offsets = [0, 0], sizes = [16, 32], strides = [1, 1]} : vector<16x128xbf16> to vector<16x32xbf16>
    %cst_18 = arith.constant dense<0.000000e+00> : vector<16x32xf32>
    %38 = tpu.matmul %36, %37, %cst_18 {dimension_numbers = #tpu.dot_dimension_numbers<[1], [0], [0], [1], [0, 0, 1, 1], [], []>} : vector<16x16xbf16>, vector<16x32xbf16>, vector<16x32xf32> -> vector<16x32xf32>
    %39 = vector.extract_strided_slice %20 {offsets = [0, 32], sizes = [16, 32], strides = [1, 1]} : vector<16x128xbf16> to vector<16x32xbf16>
    %40 = vector.extract_strided_slice %21 {offsets = [0, 32], sizes = [16, 32], strides = [1, 1]} : vector<16x128xbf16> to vector<16x32xbf16>
    %cst_19 = arith.constant dense<0.000000e+00> : vector<16x16xf32>
    %41 = tpu.matmul %39, %40, %cst_19 {dimension_numbers = #tpu.dot_dimension_numbers<[1], [1], [0], [0], [0, 0, 1, 0], [], []>} : vector<16x32xbf16>, vector<16x32xbf16>, vector<16x16xf32> -> vector<16x16xf32>
    %cst_20 = arith.constant dense<0xFF800000> : vector<16xf32>
    %42 = vector.multi_reduction <maximumf>, %41, %cst_20 [1] : vector<16x16xf32> to vector<16xf32>
    %43 = vector.shape_cast %42 : vector<16xf32> to vector<16x1xf32>
    %44 = vector.broadcast %43 : vector<16x1xf32> to vector<16x16xf32>
    %45 = arith.subf %41, %44 : vector<16x16xf32>
    %46 = math.exp %45 : vector<16x16xf32>
    %cst_21 = arith.constant dense<0.000000e+00> : vector<16xf32>
    %47 = vector.multi_reduction <add>, %46, %cst_21 [1] : vector<16x16xf32> to vector<16xf32>
    %48 = vector.shape_cast %47 : vector<16xf32> to vector<16x1xf32>
    %49 = tpu.reciprocal %48 {approx = true} : vector<16x1xf32> -> vector<16x1xf32>
    %50 = vector.broadcast %49 : vector<16x1xf32> to vector<16x16xf32>
    %51 = arith.mulf %46, %50 : vector<16x16xf32>
    %52 = arith.addf %35, %51 : vector<16x16xf32>
    %53 = arith.truncf %51 : vector<16x16xf32> to vector<16x16xbf16>
    %54 = vector.extract_strided_slice %22 {offsets = [0, 32], sizes = [16, 32], strides = [1, 1]} : vector<16x128xbf16> to vector<16x32xbf16>
    %cst_22 = arith.constant dense<0.000000e+00> : vector<16x32xf32>
    %55 = tpu.matmul %53, %54, %cst_22 {dimension_numbers = #tpu.dot_dimension_numbers<[1], [0], [0], [1], [0, 0, 1, 1], [], []>} : vector<16x16xbf16>, vector<16x32xbf16>, vector<16x32xf32> -> vector<16x32xf32>
    %56 = vector.extract_strided_slice %20 {offsets = [0, 64], sizes = [16, 32], strides = [1, 1]} : vector<16x128xbf16> to vector<16x32xbf16>
    %57 = vector.extract_strided_slice %21 {offsets = [0, 64], sizes = [16, 32], strides = [1, 1]} : vector<16x128xbf16> to vector<16x32xbf16>
    %cst_23 = arith.constant dense<0.000000e+00> : vector<16x16xf32>
    %58 = tpu.matmul %56, %57, %cst_23 {dimension_numbers = #tpu.dot_dimension_numbers<[1], [1], [0], [0], [0, 0, 1, 0], [], []>} : vector<16x32xbf16>, vector<16x32xbf16>, vector<16x16xf32> -> vector<16x16xf32>
    %cst_24 = arith.constant dense<0xFF800000> : vector<16xf32>
    %59 = vector.multi_reduction <maximumf>, %58, %cst_24 [1] : vector<16x16xf32> to vector<16xf32>
    %60 = vector.shape_cast %59 : vector<16xf32> to vector<16x1xf32>
    %61 = vector.broadcast %60 : vector<16x1xf32> to vector<16x16xf32>
    %62 = arith.subf %58, %61 : vector<16x16xf32>
    %63 = math.exp %62 : vector<16x16xf32>
    %cst_25 = arith.constant dense<0.000000e+00> : vector<16xf32>
    %64 = vector.multi_reduction <add>, %63, %cst_25 [1] : vector<16x16xf32> to vector<16xf32>
    %65 = vector.shape_cast %64 : vector<16xf32> to vector<16x1xf32>
    %66 = tpu.reciprocal %65 {approx = true} : vector<16x1xf32> -> vector<16x1xf32>
    %67 = vector.broadcast %66 : vector<16x1xf32> to vector<16x16xf32>
    %68 = arith.mulf %63, %67 : vector<16x16xf32>
    %69 = arith.addf %52, %68 : vector<16x16xf32>
    %70 = arith.truncf %68 : vector<16x16xf32> to vector<16x16xbf16>
    %71 = vector.extract_strided_slice %22 {offsets = [0, 64], sizes = [16, 32], strides = [1, 1]} : vector<16x128xbf16> to vector<16x32xbf16>
    %cst_26 = arith.constant dense<0.000000e+00> : vector<16x32xf32>
    %72 = tpu.matmul %70, %71, %cst_26 {dimension_numbers = #tpu.dot_dimension_numbers<[1], [0], [0], [1], [0, 0, 1, 1], [], []>} : vector<16x16xbf16>, vector<16x32xbf16>, vector<16x32xf32> -> vector<16x32xf32>
    %73 = vector.extract_strided_slice %20 {offsets = [0, 96], sizes = [16, 32], strides = [1, 1]} : vector<16x128xbf16> to vector<16x32xbf16>
    %74 = vector.extract_strided_slice %21 {offsets = [0, 96], sizes = [16, 32], strides = [1, 1]} : vector<16x128xbf16> to vector<16x32xbf16>
    %cst_27 = arith.constant dense<0.000000e+00> : vector<16x16xf32>
    %75 = tpu.matmul %73, %74, %cst_27 {dimension_numbers = #tpu.dot_dimension_numbers<[1], [1], [0], [0], [0, 0, 1, 0], [], []>} : vector<16x32xbf16>, vector<16x32xbf16>, vector<16x16xf32> -> vector<16x16xf32>
    %cst_28 = arith.constant dense<0xFF800000> : vector<16xf32>
    %76 = vector.multi_reduction <maximumf>, %75, %cst_28 [1] : vector<16x16xf32> to vector<16xf32>
    %77 = vector.shape_cast %76 : vector<16xf32> to vector<16x1xf32>
    %78 = vector.broadcast %77 : vector<16x1xf32> to vector<16x16xf32>
    %79 = arith.subf %75, %78 : vector<16x16xf32>
    %80 = math.exp %79 : vector<16x16xf32>
    %cst_29 = arith.constant dense<0.000000e+00> : vector<16xf32>
    %81 = vector.multi_reduction <add>, %80, %cst_29 [1] : vector<16x16xf32> to vector<16xf32>
    %82 = vector.shape_cast %81 : vector<16xf32> to vector<16x1xf32>
    %83 = tpu.reciprocal %82 {approx = true} : vector<16x1xf32> -> vector<16x1xf32>
    %84 = vector.broadcast %83 : vector<16x1xf32> to vector<16x16xf32>
    %85 = arith.mulf %80, %84 : vector<16x16xf32>
    %86 = arith.addf %69, %85 : vector<16x16xf32>
    %87 = arith.truncf %85 : vector<16x16xf32> to vector<16x16xbf16>
    %88 = vector.extract_strided_slice %22 {offsets = [0, 96], sizes = [16, 32], strides = [1, 1]} : vector<16x128xbf16> to vector<16x32xbf16>
    %cst_30 = arith.constant dense<0.000000e+00> : vector<16x32xf32>
    %89 = tpu.matmul %87, %88, %cst_30 {dimension_numbers = #tpu.dot_dimension_numbers<[1], [0], [0], [1], [0, 0, 1, 1], [], []>} : vector<16x16xbf16>, vector<16x32xbf16>, vector<16x32xf32> -> vector<16x32xf32>
    %90 = tpu.concatenate %38, %55, %72, %89 in 1 : vector<16x32xf32>, vector<16x32xf32>, vector<16x32xf32>, vector<16x32xf32> -> vector<16x128xf32>
    %cst_31 = arith.constant 2.500000e-01 : f32
    %91 = vector.broadcast %cst_31 : f32 to vector<16x16xf32>
    %92 = arith.mulf %86, %91 : vector<16x16xf32>
    %c0_32 = arith.constant 0 : index
    %c0_33 = arith.constant 0 : index
    %c0_34 = arith.constant 0 : index
    %93 = vector.load %arg18[%c0_32, %c0_33, %c0_34] : memref<1x16x16xf32, #tpu.memory_space<vmem>>, vector<1x16x16xf32>
    %94 = vector.shape_cast %93 : vector<1x16x16xf32> to vector<16x16xf32>
    %95 = vector.shape_cast %92 : vector<16x16xf32> to vector<1x16x16xf32>
    tpu.vector_store %arg18[%c0_32, %c0_33, %c0_34], %95 {strides = array<i32>} : memref<1x16x16xf32, #tpu.memory_space<vmem>>, vector<1x16x16xf32>,
    %96 = arith.truncf %90 : vector<16x128xf32> to vector<16x128xbf16>
    %c0_35 = arith.constant 0 : index
    %c0_36 = arith.constant 0 : index
    %97 = vector.load %arg7[%c0_35, %c0_36] : memref<128x128xbf16, #tpu.memory_space<vmem>>, vector<128x128xbf16>
    %cst_37 = arith.constant dense<0.000000e+00> : vector<16x128xf32>
    %98 = tpu.matmul %96, %97, %cst_37 {dimension_numbers = #tpu.dot_dimension_numbers<[1], [0], [0], [1], [0, 0, 1, 1], [], []>} : vector<16x128xbf16>, vector<128x128xbf16>, vector<16x128xf32> -> vector<16x128xf32>
    %c0_38 = arith.constant 0 : index
    %c0_39 = arith.constant 0 : index
    %99 = vector.load %arg8[%c0_38, %c0_39] : memref<1x128xf32, #tpu.memory_space<vmem>>, vector<1x128xf32>
    %100 = vector.broadcast %99 : vector<1x128xf32> to vector<16x128xf32>
    %101 = arith.addf %98, %100 : vector<16x128xf32>
    %102 = arith.addf %101, %1 : vector<16x128xf32>
    %c0_40 = arith.constant 0 : index
    %c0_41 = arith.constant 0 : index
    %103 = vector.load %arg9[%c0_40, %c0_41] : memref<1x128xf32, #tpu.memory_space<vmem>>, vector<1x128xf32>
    %c0_42 = arith.constant 0 : index
    %c0_43 = arith.constant 0 : index
    %104 = vector.load %arg10[%c0_42, %c0_43] : memref<1x128xf32, #tpu.memory_space<vmem>>, vector<1x128xf32>
    %cst_44 = arith.constant dense<0.000000e+00> : vector<16xf32>
    %105 = vector.multi_reduction <add>, %102, %cst_44 [1] : vector<16x128xf32> to vector<16xf32>
    %106 = vector.shape_cast %105 : vector<16xf32> to vector<16x1xf32>
    %cst_45 = arith.constant 1.280000e+02 : f32
    %107 = vector.broadcast %cst_45 : f32 to vector<16x1xf32>
    %108 = arith.divf %106, %107 : vector<16x1xf32>
    %109 = vector.broadcast %108 : vector<16x1xf32> to vector<16x128xf32>
    %110 = arith.subf %102, %109 : vector<16x128xf32>
    %111 = arith.mulf %110, %110 : vector<16x128xf32>
    %cst_46 = arith.constant dense<0.000000e+00> : vector<16xf32>
    %112 = vector.multi_reduction <add>, %111, %cst_46 [1] : vector<16x128xf32> to vector<16xf32>
    %113 = vector.shape_cast %112 : vector<16xf32> to vector<16x1xf32>
    %cst_47 = arith.constant 1.280000e+02 : f32
    %114 = vector.broadcast %cst_47 : f32 to vector<16x1xf32>
    %115 = arith.divf %113, %114 : vector<16x1xf32>
    %116 = vector.broadcast %108 : vector<16x1xf32> to vector<16x128xf32>
    %117 = arith.subf %102, %116 : vector<16x128xf32>
    %cst_48 = arith.constant 9.99999974E-6 : f32
    %118 = vector.broadcast %cst_48 : f32 to vector<16x1xf32>
    %119 = arith.addf %115, %118 : vector<16x1xf32>
    %120 = math.rsqrt %119 : vector<16x1xf32>
    %121 = vector.broadcast %120 : vector<16x1xf32> to vector<16x128xf32>
    %122 = arith.mulf %117, %121 : vector<16x128xf32>
    %123 = vector.broadcast %103 : vector<1x128xf32> to vector<16x128xf32>
    %124 = arith.mulf %122, %123 : vector<16x128xf32>
    %125 = vector.broadcast %104 : vector<1x128xf32> to vector<16x128xf32>
    %126 = arith.addf %124, %125 : vector<16x128xf32>
    %127 = arith.truncf %126 : vector<16x128xf32> to vector<16x128xbf16>
    %c0_49 = arith.constant 0 : index
    %c0_50 = arith.constant 0 : index
    %128 = vector.load %arg11[%c0_49, %c0_50] : memref<128x256xbf16, #tpu.memory_space<vmem>>, vector<128x256xbf16>
    %cst_51 = arith.constant dense<0.000000e+00> : vector<16x256xf32>
    %129 = tpu.matmul %127, %128, %cst_51 {dimension_numbers = #tpu.dot_dimension_numbers<[1], [0], [0], [1], [0, 0, 1, 1], [], []>} : vector<16x128xbf16>, vector<128x256xbf16>, vector<16x256xf32> -> vector<16x256xf32>
    %c0_52 = arith.constant 0 : index
    %c0_53 = arith.constant 0 : index
    %130 = vector.load %arg12[%c0_52, %c0_53] : memref<1x256xf32, #tpu.memory_space<vmem>>, vector<1x256xf32>
    %131 = vector.broadcast %130 : vector<1x256xf32> to vector<16x256xf32>
    %132 = arith.addf %129, %131 : vector<16x256xf32>
    %cst_54 = arith.constant 0.000000e+00 : f32
    %133 = vector.broadcast %cst_54 : f32 to vector<16x256xf32>
    %134 = arith.maximumf %132, %133 : vector<16x256xf32>
    %135 = arith.truncf %134 : vector<16x256xf32> to vector<16x256xbf16>
    %c0_55 = arith.constant 0 : index
    %c0_56 = arith.constant 0 : index
    %136 = vector.load %arg13[%c0_55, %c0_56] : memref<256x128xbf16, #tpu.memory_space<vmem>>, vector<256x128xbf16>
    %cst_57 = arith.constant dense<0.000000e+00> : vector<16x128xf32>
    %137 = tpu.matmul %135, %136, %cst_57 {dimension_numbers = #tpu.dot_dimension_numbers<[1], [0], [0], [1], [0, 0, 1, 1], [], []>} : vector<16x256xbf16>, vector<256x128xbf16>, vector<16x128xf32> -> vector<16x128xf32>
    %c0_58 = arith.constant 0 : index
    %c0_59 = arith.constant 0 : index
    %138 = vector.load %arg14[%c0_58, %c0_59] : memref<1x128xf32, #tpu.memory_space<vmem>>, vector<1x128xf32>
    %139 = vector.broadcast %138 : vector<1x128xf32> to vector<16x128xf32>
    %140 = arith.addf %137, %139 : vector<16x128xf32>
    %141 = arith.addf %140, %126 : vector<16x128xf32>
    %c0_60 = arith.constant 0 : index
    %c0_61 = arith.constant 0 : index
    %142 = vector.load %arg15[%c0_60, %c0_61] : memref<1x128xf32, #tpu.memory_space<vmem>>, vector<1x128xf32>
    %c0_62 = arith.constant 0 : index
    %c0_63 = arith.constant 0 : index
    %143 = vector.load %arg16[%c0_62, %c0_63] : memref<1x128xf32, #tpu.memory_space<vmem>>, vector<1x128xf32>
    %cst_64 = arith.constant dense<0.000000e+00> : vector<16xf32>
    %144 = vector.multi_reduction <add>, %141, %cst_64 [1] : vector<16x128xf32> to vector<16xf32>
    %145 = vector.shape_cast %144 : vector<16xf32> to vector<16x1xf32>
    %cst_65 = arith.constant 1.280000e+02 : f32
    %146 = vector.broadcast %cst_65 : f32 to vector<16x1xf32>
    %147 = arith.divf %145, %146 : vector<16x1xf32>
    %148 = vector.broadcast %147 : vector<16x1xf32> to vector<16x128xf32>
    %149 = arith.subf %141, %148 : vector<16x128xf32>
    %150 = arith.mulf %149, %149 : vector<16x128xf32>
    %cst_66 = arith.constant dense<0.000000e+00> : vector<16xf32>
    %151 = vector.multi_reduction <add>, %150, %cst_66 [1] : vector<16x128xf32> to vector<16xf32>
    %152 = vector.shape_cast %151 : vector<16xf32> to vector<16x1xf32>
    %cst_67 = arith.constant 1.280000e+02 : f32
    %153 = vector.broadcast %cst_67 : f32 to vector<16x1xf32>
    %154 = arith.divf %152, %153 : vector<16x1xf32>
    %155 = vector.broadcast %147 : vector<16x1xf32> to vector<16x128xf32>
    %156 = arith.subf %141, %155 : vector<16x128xf32>
    %cst_68 = arith.constant 9.99999974E-6 : f32
    %157 = vector.broadcast %cst_68 : f32 to vector<16x1xf32>
    %158 = arith.addf %154, %157 : vector<16x1xf32>
    %159 = math.rsqrt %158 : vector<16x1xf32>
    %160 = vector.broadcast %159 : vector<16x1xf32> to vector<16x128xf32>
    %161 = arith.mulf %156, %160 : vector<16x128xf32>
    %162 = vector.broadcast %142 : vector<1x128xf32> to vector<16x128xf32>
    %163 = arith.mulf %161, %162 : vector<16x128xf32>
    %164 = vector.broadcast %143 : vector<1x128xf32> to vector<16x128xf32>
    %165 = arith.addf %163, %164 : vector<16x128xf32>
    %c0_69 = arith.constant 0 : index
    %c0_70 = arith.constant 0 : index
    %c0_71 = arith.constant 0 : index
    %166 = vector.load %arg17[%c0_69, %c0_70, %c0_71] : memref<1x16x128xf32, #tpu.memory_space<vmem>>, vector<1x16x128xf32>
    %167 = vector.shape_cast %166 : vector<1x16x128xf32> to vector<16x128xf32>
    %168 = vector.shape_cast %165 : vector<16x128xf32> to vector<1x16x128xf32>
    tpu.vector_store %arg17[%c0_69, %c0_70, %c0_71], %168 {strides = array<i32>} : memref<1x16x128xf32, #tpu.memory_space<vmem>>, vector<1x16x128xf32>,
    return
  }
  func.func @transform_0(%arg0: i32) -> (i32, i32, i32) {
    %c0_i32 = arith.constant 0 : i32
    %c0_i32_0 = arith.constant 0 : i32
    %c0_i32_1 = arith.constant 0 : i32
    return %arg0, %c0_i32, %c0_i32_0 : i32, i32, i32
  }
  func.func @transform_1(%arg0: i32) -> (i32, i32, i32) {
    %c0_i32 = arith.constant 0 : i32
    %c0_i32_0 = arith.constant 0 : i32
    %c0_i32_1 = arith.constant 0 : i32
    return %arg0, %c0_i32, %c0_i32_0 : i32, i32, i32
  }
  func.func @transform_2(%arg0: i32) -> (i32, i32) {
    %c0_i32 = arith.constant 0 : i32
    %c0_i32_0 = arith.constant 0 : i32
    %c0_i32_1 = arith.constant 0 : i32
    return %c0_i32, %c0_i32_0 : i32, i32
  }
  func.func @transform_3(%arg0: i32) -> (i32, i32) {
    %c0_i32 = arith.constant 0 : i32
    %c0_i32_0 = arith.constant 0 : i32
    %c0_i32_1 = arith.constant 0 : i32
    return %c0_i32, %c0_i32_0 : i32, i32
  }
  func.func @transform_4(%arg0: i32) -> (i32, i32) {
    %c0_i32 = arith.constant 0 : i32
    %c0_i32_0 = arith.constant 0 : i32
    %c0_i32_1 = arith.constant 0 : i32
    return %c0_i32, %c0_i32_0 : i32, i32
  }
  func.func @transform_5(%arg0: i32) -> (i32, i32) {
    %c0_i32 = arith.constant 0 : i32
    %c0_i32_0 = arith.constant 0 : i32
    %c0_i32_1 = arith.constant 0 : i32
    return %c0_i32, %c0_i32_0 : i32, i32
  }
  func.func @transform_6(%arg0: i32) -> (i32, i32) {
    %c0_i32 = arith.constant 0 : i32
    %c0_i32_0 = arith.constant 0 : i32
    %c0_i32_1 = arith.constant 0 : i32
    return %c0_i32, %c0_i32_0 : i32, i32
  }
  func.func @transform_7(%arg0: i32) -> (i32, i32) {
    %c0_i32 = arith.constant 0 : i32
    %c0_i32_0 = arith.constant 0 : i32
    %c0_i32_1 = arith.constant 0 : i32
    return %c0_i32, %c0_i32_0 : i32, i32
  }
  func.func @transform_8(%arg0: i32) -> (i32, i32) {
    %c0_i32 = arith.constant 0 : i32
    %c0_i32_0 = arith.constant 0 : i32
    %c0_i32_1 = arith.constant 0 : i32
    return %c0_i32, %c0_i32_0 : i32, i32
  }
  func.func @transform_9(%arg0: i32) -> (i32, i32) {
    %c0_i32 = arith.constant 0 : i32
    %c0_i32_0 = arith.constant 0 : i32
    %c0_i32_1 = arith.constant 0 : i32
    return %c0_i32, %c0_i32_0 : i32, i32
  }
  func.func @transform_10(%arg0: i32) -> (i32, i32) {
    %c0_i32 = arith.constant 0 : i32
    %c0_i32_0 = arith.constant 0 : i32
    %c0_i32_1 = arith.constant 0 : i32
    return %c0_i32, %c0_i32_0 : i32, i32
  }
  func.func @transform_11(%arg0: i32) -> (i32, i32) {
    %c0_i32 = arith.constant 0 : i32
    %c0_i32_0 = arith.constant 0 : i32
    %c0_i32_1 = arith.constant 0 : i32
    return %c0_i32, %c0_i32_0 : i32, i32
  }
  func.func @transform_12(%arg0: i32) -> (i32, i32) {
    %c0_i32 = arith.constant 0 : i32
    %c0_i32_0 = arith.constant 0 : i32
    %c0_i32_1 = arith.constant 0 : i32
    return %c0_i32, %c0_i32_0 : i32, i32
  }
  func.func @transform_13(%arg0: i32) -> (i32, i32) {
    %c0_i32 = arith.constant 0 : i32
    %c0_i32_0 = arith.constant 0 : i32
    %c0_i32_1 = arith.constant 0 : i32
    return %c0_i32, %c0_i32_0 : i32, i32
  }
  func.func @transform_14(%arg0: i32) -> (i32, i32) {
    %c0_i32 = arith.constant 0 : i32
    %c0_i32_0 = arith.constant 0 : i32
    %c0_i32_1 = arith.constant 0 : i32
    return %c0_i32, %c0_i32_0 : i32, i32
  }
  func.func @transform_15(%arg0: i32) -> (i32, i32) {
    %c0_i32 = arith.constant 0 : i32
    %c0_i32_0 = arith.constant 0 : i32
    %c0_i32_1 = arith.constant 0 : i32
    return %c0_i32, %c0_i32_0 : i32, i32
  }
  func.func @transform_16(%arg0: i32) -> (i32, i32, i32) {
    %c0_i32 = arith.constant 0 : i32
    %c0_i32_0 = arith.constant 0 : i32
    %c0_i32_1 = arith.constant 0 : i32
    return %arg0, %c0_i32, %c0_i32_0 : i32, i32, i32
  }
  func.func @transform_17(%arg0: i32) -> (i32, i32, i32) {
    %c0_i32 = arith.constant 0 : i32
    %c0_i32_0 = arith.constant 0 : i32
    %c0_i32_1 = arith.constant 0 : i32
    return %arg0, %c0_i32, %c0_i32_0 : i32, i32, i32
  }
}

</mosaic_0001>

<llo_original>
// kernel: aggregation_decoder_layer_forward.4
$region0: #{aggregation_decoder_layer_forward.4}
  #allocation0 [shape = 'u32[]', space=smem, size = 0x4, offset = 0x4, fixed_abs, tag = 'smem constant byte address 0x4 - core index']
  #allocation1 [shape = 'u32[144,128]{1,0:T(1,128)}', space=vmem, size = 0x12000, scoped, tag = 'internal scratch']
  %s0 = inlined_call_operand.vmem [shape: f32[4], index: 0, kind: input, shape index: {}]
  %s1 = inlined_call_operand.vmem [shape: f32[4,32,128], index: 1, kind: input, shape index: {}]
  %s2 = inlined_call_operand.vmem [shape: f32[1,128], index: 2, kind: input, shape index: {}]
  %s3 = inlined_call_operand.vmem [shape: f32[1,128], index: 3, kind: input, shape index: {}]
  %s4 = inlined_call_operand.vmem [shape: bf16[128,256], index: 4, kind: input, shape index: {}]
  %s5 = inlined_call_operand.vmem [shape: f32[1,256], index: 5, kind: input, shape index: {}]
  %s6 = inlined_call_operand.vmem [shape: bf16[256,128], index: 6, kind: input, shape index: {}]
  %s7 = inlined_call_operand.vmem [shape: f32[1,128], index: 7, kind: input, shape index: {}]
  %s8 = inlined_call_operand.vmem [shape: f32[32,128], index: 8, kind: output, shape index: {}]
  %s9 = sld [smem:[#allocation0]]
  $region107: #{aggregation_decoder_layer_forward.4} parent=0
    _
  %s11 = ssub.s32 1, %s9
  %s12 = scalar_select 0, %s11, %s9
  $region1: #{aggregation_decoder_layer_forward.4} parent=0
    #allocation2 [shape = 'u8[512]{0}', space=smem, size = 0x200, scoped, tag = 'input window, operand 0, single buffered']
    #allocation3 [shape = 's32[2]{0}', space=sflag, size = 0x8, scoped, tag = 'scoped memory for aggregation_decoder_layer_forward.4']
    #allocation4 [shape = 'u8[65536]{0}', space=vmem, size = 0x10000, scoped, tag = 'input window, operand 1']
    %13 = vsyncpa [#allocation3], 0
    loop: start=0, step=1, limit=4
    $region2: #{aggregation_decoder_layer_forward.4} parent=1 // loop_pre_header
      _
    $region3: #{aggregation_decoder_layer_forward.4} parent=1 // loop_header
      %s15 = sphi 0, %s19
      %p16 = scmp.ge.s32.totalorder %s15, 4
      %s23 = sphi 0, %s23
      %s25 = sphi 0, %s23
      %s26 = sphi 0, %s25
      %s40 = sphi 0, %s26
      %s46 = sphi 0, %s48
      %s49 = sphi 0, %s46
      %s50 = sphi 0, %s49
      %s66 = sphi 0, %s50
      %s70 = sphi 0, %s70
      %s72 = sphi 0, %s70
      %s73 = sphi 0, %s72
      %s87 = sphi 0, %s73
      %s91 = sphi 0, %s91
      %s93 = sphi 0, %s91
      %s94 = sphi 0, %s93
      %s108 = sphi 0, %s94
      %s112 = sphi 0, %s112
      %s114 = sphi 0, %s112
      %s115 = sphi 0, %s114
      %s129 = sphi 0, %s115
      %s133 = sphi 0, %s133
      %s135 = sphi 0, %s133
      %s136 = sphi 0, %s135
      %s150 = sphi 0, %s136
      %s154 = sphi 0, %s154
      %s156 = sphi 0, %s154
      %s157 = sphi 0, %s156
      %s171 = sphi 0, %s157
      %s175 = sphi 0, %s175
      %s177 = sphi 0, %s175
      %s178 = sphi 0, %s177
      %s192 = sphi 0, %s178
      %s198 = sphi 0, %s200
      %s201 = sphi 0, %s198
      %s202 = sphi 0, %s201
      %s218 = sphi 0, %s202
    $region4: #{aggregation_decoder_layer_forward.4} parent=1 // loop_header_branch
      %18 = sbr.rel (%p16) target = $region8
    $region5: #{aggregation_decoder_layer_forward.4} parent=1 // loop_body
      %s20 = ssub.s32 %s15, 1
      %s21 = ssub.s32 %s15, 2
      %s22 = sadd.s32 %s15, 1
      %s24 = sadd.s32 %s23, 1
      %p27 = scmp.eq.s32.totalorder %s15, 1
      %p28 = scmp.ne.s32.totalorder %s23, %s25
      %p29 = scmp.eq.s32.totalorder %s15, 0
      %p30 = por %p28, %p29
      %p31 = scmp.ne.s32.totalorder %s23, %s25
      %p32 = scmp.eq.s32.totalorder %s20, 1
      %p33 = por %p31, %p32
      %p34 = scmp.ne.s32.totalorder %s25, %s26
      %p35 = scmp.eq.s32.totalorder %s20, 0
      %p36 = por %p34, %p35
      %p37 = scmp.ne.s32.totalorder %s25, %s26
      %p38 = scmp.eq.s32.totalorder %s21, 1
      %p39 = por %p37, %p38
      %p41 = scmp.ne.s32.totalorder %s26, %s40
      %p42 = scmp.eq.s32.totalorder %s21, 0
      %p43 = por %p41, %p42
      %s44 = ssub.s32 %s15, %s22
      %p45 = scmp.eq.s32.totalorder %s44, 0
      %s47 = sadd.s32 %s46, 1
      %s48 = scalar_select %p45, %s46, %s47
      %p51 = pneg %p45
      %p52 = scmp.eq.s32.totalorder %s15, 1
      %p53 = por %p51, %p52
      %p54 = scmp.ne.s32.totalorder %s46, %s49
      %p55 = scmp.eq.s32.totalorder %s15, 0
      %p56 = por %p54, %p55
      %p57 = scmp.ne.s32.totalorder %s46, %s49
      %p58 = scmp.eq.s32.totalorder %s20, 1
      %p59 = por %p57, %p58
      %p60 = scmp.ne.s32.totalorder %s49, %s50
      %p61 = scmp.eq.s32.totalorder %s20, 0
      %p62 = por %p60, %p61
      %p63 = scmp.ne.s32.totalorder %s49, %s50
      %p64 = scmp.eq.s32.totalorder %s21, 1
      %p65 = por %p63, %p64
      %p67 = scmp.ne.s32.totalorder %s50, %s66
      %p68 = scmp.eq.s32.totalorder %s21, 0
      %p69 = por %p67, %p68
      %s71 = sadd.s32 %s70, 1
      %p74 = scmp.eq.s32.totalorder %s15, 1
      %p75 = scmp.ne.s32.totalorder %s70, %s72
      %p76 = scmp.eq.s32.totalorder %s15, 0
      %p77 = por %p75, %p76
      %p78 = scmp.ne.s32.totalorder %s70, %s72
      %p79 = scmp.eq.s32.totalorder %s20, 1
      %p80 = por %p78, %p79
      %p81 = scmp.ne.s32.totalorder %s72, %s73
      %p82 = scmp.eq.s32.totalorder %s20, 0
      %p83 = por %p81, %p82
      %p84 = scmp.ne.s32.totalorder %s72, %s73
      %p85 = scmp.eq.s32.totalorder %s21, 1
      %p86 = por %p84, %p85
      %p88 = scmp.ne.s32.totalorder %s73, %s87
      %p89 = scmp.eq.s32.totalorder %s21, 0
      %p90 = por %p88, %p89
      %s92 = sadd.s32 %s91, 1
      %p95 = scmp.eq.s32.totalorder %s15, 1
      %p96 = scmp.ne.s32.totalorder %s91, %s93
      %p97 = scmp.eq.s32.totalorder %s15, 0
      %p98 = por %p96, %p97
      %p99 = scmp.ne.s32.totalorder %s91, %s93
      %p100 = scmp.eq.s32.totalorder %s20, 1
      %p101 = por %p99, %p100
      %p102 = scmp.ne.s32.totalorder %s93, %s94
      %p103 = scmp.eq.s32.totalorder %s20, 0
      %p104 = por %p102, %p103
      %p105 = scmp.ne.s32.totalorder %s93, %s94
      %p106 = scmp.eq.s32.totalorder %s21, 1
      %p107 = por %p105, %p106
      %p109 = scmp.ne.s32.totalorder %s94, %s108
      %p110 = scmp.eq.s32.totalorder %s21, 0
      %p111 = por %p109, %p110
      %s113 = sadd.s32 %s112, 1
      %p116 = scmp.eq.s32.totalorder %s15, 1
      %p117 = scmp.ne.s32.totalorder %s112, %s114
      %p118 = scmp.eq.s32.totalorder %s15, 0
      %p119 = por %p117, %p118
      %p120 = scmp.ne.s32.totalorder %s112, %s114
      %p121 = scmp.eq.s32.totalorder %s20, 1
      %p122 = por %p120, %p121
      %p123 = scmp.ne.s32.totalorder %s114, %s115
      %p124 = scmp.eq.s32.totalorder %s20, 0
      %p125 = por %p123, %p124
      %p126 = scmp.ne.s32.totalorder %s114, %s115
      %p127 = scmp.eq.s32.totalorder %s21, 1
      %p128 = por %p126, %p127
      %p130 = scmp.ne.s32.totalorder %s115, %s129
      %p131 = scmp.eq.s32.totalorder %s21, 0
      %p132 = por %p130, %p131
      %s134 = sadd.s32 %s133, 1
      %p137 = scmp.eq.s32.totalorder %s15, 1
      %p138 = scmp.ne.s32.totalorder %s133, %s135
      %p139 = scmp.eq.s32.totalorder %s15, 0
      %p140 = por %p138, %p139
      %p141 = scmp.ne.s32.totalorder %s133, %s135
      %p142 = scmp.eq.s32.totalorder %s20, 1
      %p143 = por %p141, %p142
      %p144 = scmp.ne.s32.totalorder %s135, %s136
      %p145 = scmp.eq.s32.totalorder %s20, 0
      %p146 = por %p144, %p145
      %p147 = scmp.ne.s32.totalorder %s135, %s136
      %p148 = scmp.eq.s32.totalorder %s21, 1
      %p149 = por %p147, %p148
      %p151 = scmp.ne.s32.totalorder %s136, %s150
      %p152 = scmp.eq.s32.totalorder %s21, 0
      %p153 = por %p151, %p152
      %s155 = sadd.s32 %s154, 1
      %p158 = scmp.eq.s32.totalorder %s15, 1
      %p159 = scmp.ne.s32.totalorder %s154, %s156
      %p160 = scmp.eq.s32.totalorder %s15, 0
      %p161 = por %p159, %p160
      %p162 = scmp.ne.s32.totalorder %s154, %s156
      %p163 = scmp.eq.s32.totalorder %s20, 1
      %p164 = por %p162, %p163
      %p165 = scmp.ne.s32.totalorder %s156, %s157
      %p166 = scmp.eq.s32.totalorder %s20, 0
      %p167 = por %p165, %p166
      %p168 = scmp.ne.s32.totalorder %s156, %s157
      %p169 = scmp.eq.s32.totalorder %s21, 1
      %p170 = por %p168, %p169
      %p172 = scmp.ne.s32.totalorder %s157, %s171
      %p173 = scmp.eq.s32.totalorder %s21, 0
      %p174 = por %p172, %p173
      %s176 = sadd.s32 %s175, 1
      %p179 = scmp.eq.s32.totalorder %s15, 1
      %p180 = scmp.ne.s32.totalorder %s175, %s177
      %p181 = scmp.eq.s32.totalorder %s15, 0
      %p182 = por %p180, %p181
      %p183 = scmp.ne.s32.totalorder %s175, %s177
      %p184 = scmp.eq.s32.totalorder %s20, 1
      %p185 = por %p183, %p184
      %p186 = scmp.ne.s32.totalorder %s177, %s178
      %p187 = scmp.eq.s32.totalorder %s20, 0
      %p188 = por %p186, %p187
      %p189 = scmp.ne.s32.totalorder %s177, %s178
      %p190 = scmp.eq.s32.totalorder %s21, 1
      %p191 = por %p189, %p190
      %p193 = scmp.ne.s32.totalorder %s178, %s192
      %p194 = scmp.eq.s32.totalorder %s21, 0
      %p195 = por %p193, %p194
      %s196 = ssub.s32 %s15, %s22
      %p197 = scmp.eq.s32.totalorder %s196, 0
      %s199 = sadd.s32 %s198, 1
      %s200 = scalar_select %p197, %s198, %s199
      %p203 = pneg %p197
      %p204 = scmp.eq.s32.totalorder %s15, 1
      %p205 = por %p203, %p204
      %p206 = scmp.ne.s32.totalorder %s198, %s201
      %p207 = scmp.eq.s32.totalorder %s15, 0
      %p208 = por %p206, %p207
      %p209 = scmp.ne.s32.totalorder %s198, %s201
      %p210 = scmp.eq.s32.totalorder %s20, 1
      %p211 = por %p209, %p210
      %p212 = scmp.ne.s32.totalorder %s201, %s202
      %p213 = scmp.eq.s32.totalorder %s20, 0
      %p214 = por %p212, %p213
      %p215 = scmp.ne.s32.totalorder %s201, %s202
      %p216 = scmp.eq.s32.totalorder %s21, 1
      %p217 = por %p215, %p216
      %p219 = scmp.ne.s32.totalorder %s202, %s218
      %p220 = scmp.eq.s32.totalorder %s21, 0
      %p221 = por %p219, %p220
      %p222 = scmp.le.s32.totalorder 1, %s15
      %p223 = scmp.lt.s32.totalorder %s15, 3
      %p224 = pnand %p222, %p223
      %p225 = pneg %p224
      // Predicated region
      $region9: #{aggregation_decoder_layer_forward.4} parent=5 // pred_check
        _
      $region10: #{aggregation_decoder_layer_forward.4} parent=5 // pred_check_branch
        %227 = sbr.rel (%p224) target = $region12
      $region11: #{aggregation_decoder_layer_forward.4} parent=5 // pred_region
        %s228 = ssub.s32 %s15, 1
        // Predicated region
        $region13: #{aggregation_decoder_layer_forward.4} parent=11 // pred_check
          %p229 = pneg %p36
        $region14: #{aggregation_decoder_layer_forward.4} parent=11 // pred_check_branch
          %231 = sbr.rel (%p229) target = $region16
        $region15: #{aggregation_decoder_layer_forward.4} parent=11 // pred_region
          %s233 = ssub.s32 16, 16
          %234 = vsyncadd [#allocation3], %s233
          %s236 = sshll.u32 %s0, 4
          %s237 = int_to_ptr.vmem [resolvable:$true] %s236
          %239 = dma.vmem_to_smem %s237, 16, [#allocation2], [#allocation3]
        $region16: #{aggregation_decoder_layer_forward.4} parent=11 // pred_fallthru
          _
        // Predicated region
        $region17: #{aggregation_decoder_layer_forward.4} parent=11 // pred_check
          %p240 = pneg %p83
        $region18: #{aggregation_decoder_layer_forward.4} parent=11 // pred_check_branch
          %242 = sbr.rel (%p240) target = $region20
        $region19: #{aggregation_decoder_layer_forward.4} parent=11 // pred_region
          _
        $region20: #{aggregation_decoder_layer_forward.4} parent=11 // pred_fallthru
          _
        // Predicated region
        $region21: #{aggregation_decoder_layer_forward.4} parent=11 // pred_check
          %p243 = pneg %p104
        $region22: #{aggregation_decoder_layer_forward.4} parent=11 // pred_check_branch
          %245 = sbr.rel (%p243) target = $region24
        $region23: #{aggregation_decoder_layer_forward.4} parent=11 // pred_region
          _
        $region24: #{aggregation_decoder_layer_forward.4} parent=11 // pred_fallthru
          _
        // Predicated region
        $region25: #{aggregation_decoder_layer_forward.4} parent=11 // pred_check
          %p246 = pneg %p125
        $region26: #{aggregation_decoder_layer_forward.4} parent=11 // pred_check_branch
          %248 = sbr.rel (%p246) target = $region28
        $region27: #{aggregation_decoder_layer_forward.4} parent=11 // pred_region
          _
        $region28: #{aggregation_decoder_layer_forward.4} parent=11 // pred_fallthru
          _
        // Predicated region
        $region29: #{aggregation_decoder_layer_forward.4} parent=11 // pred_check
          %p249 = pneg %p146
        $region30: #{aggregation_decoder_layer_forward.4} parent=11 // pred_check_branch
          %251 = sbr.rel (%p249) target = $region32
        $region31: #{aggregation_decoder_layer_forward.4} parent=11 // pred_region
          _
        $region32: #{aggregation_decoder_layer_forward.4} parent=11 // pred_fallthru
          _
        // Predicated region
        $region33: #{aggregation_decoder_layer_forward.4} parent=11 // pred_check
          %p252 = pneg %p167
        $region34: #{aggregation_decoder_layer_forward.4} parent=11 // pred_check_branch
          %254 = sbr.rel (%p252) target = $region36
        $region35: #{aggregation_decoder_layer_forward.4} parent=11 // pred_region
          _
        $region36: #{aggregation_decoder_layer_forward.4} parent=11 // pred_fallthru
          _
        // Predicated region
        $region37: #{aggregation_decoder_layer_forward.4} parent=11 // pred_check
          %p255 = pneg %p188
        $region38: #{aggregation_decoder_layer_forward.4} parent=11 // pred_check_branch
          %257 = sbr.rel (%p255) target = $region40
        $region39: #{aggregation_decoder_layer_forward.4} parent=11 // pred_region
          _
        $region40: #{aggregation_decoder_layer_forward.4} parent=11 // pred_fallthru
          _
      $region12: #{aggregation_decoder_layer_forward.4} parent=5 // pred_fallthru
        _
      %p258 = scmp.lt.s32.totalorder %s15, 2
      // Predicated region
      $region41: #{aggregation_decoder_layer_forward.4} parent=5 // pred_check
        %p259 = pneg %p258
      $region42: #{aggregation_decoder_layer_forward.4} parent=5 // pred_check_branch
        %261 = sbr.rel (%p259) target = $region44
      $region43: #{aggregation_decoder_layer_forward.4} parent=5 // pred_region
        // Predicated region
        $region45: #{aggregation_decoder_layer_forward.4} parent=43 // pred_check
          %p262 = pneg %p56
        $region46: #{aggregation_decoder_layer_forward.4} parent=43 // pred_check_branch
          %264 = sbr.rel (%p262) target = $region48
        $region47: #{aggregation_decoder_layer_forward.4} parent=43 // pred_region
          %s265 = sand.u32 %s46, 1
          %s266 = sand.u32 %s46, 1
          %s267 = smul.addr %s266, 64
          %s268 = scalar_lea.vmem [#allocation4], %s267
          %s269 = smul.u32 2, %s15
          %s270 = smul.addr %s269, 8
          %s271 = scalar_lea.vmem %s1, %s270
          // Predicated region
          $region49: #{aggregation_decoder_layer_forward.4} parent=47 // pred_check
            _
          $region50: #{aggregation_decoder_layer_forward.4} parent=47 // pred_check_branch
            %273 = sbr.rel (0) target = $region52
          $region51: #{aggregation_decoder_layer_forward.4} parent=47 // pred_region
            // Predicated region
            $region53: #{aggregation_decoder_layer_forward.4} parent=51 // pred_check
              _
            $region54: #{aggregation_decoder_layer_forward.4} parent=51 // pred_check_branch
              %275 = sbr.rel (0) target = $region56
            $region55: #{aggregation_decoder_layer_forward.4} parent=51 // pred_region
              // Predicated region
              $region68: #{aggregation_decoder_layer_forward.4} parent=55 // pred_check
                _
              $region69: #{aggregation_decoder_layer_forward.4} parent=55 // pred_check_branch
                %304 = sbr.rel (0) target = $region71
              $region70: #{aggregation_decoder_layer_forward.4} parent=55 // pred_region
                loop: start=0, step=1, limit=1
                $region72: #{aggregation_decoder_layer_forward.4} parent=70 // loop_pre_header
                  _
                $region73: #{aggregation_decoder_layer_forward.4} parent=70 // loop_header
                  %s306 = sphi 0, %s310
                  %p307 = scmp.ge.s32.totalorder %s306, 1
                  %s311 = sphi %s271, %s271
                  %s312 = sphi %s268, %s268
                $region74: #{aggregation_decoder_layer_forward.4} parent=70 // loop_header_branch
                  %309 = sbr.rel (%p307) target = $region78
                $region75: #{aggregation_decoder_layer_forward.4} parent=70 // loop_body
                  %v313 = vld [vmem:[%s311] sm:$0xff]
                  %314 = vst [vmem:[%s312] sm:$0xff] %v313
                  %v315 = vld [vmem:[%s311 + $0x8] sm:$0xff]
                  %316 = vst [vmem:[%s312 + $0x8] sm:$0xff] %v315
                  %v317 = vld [vmem:[%s311 + $0x20] sm:$0xff]
                  %318 = vst [vmem:[%s312 + $0x10] sm:$0xff] %v317
                  %v319 = vld [vmem:[%s311 + $0x28] sm:$0xff]
                  %320 = vst [vmem:[%s312 + $0x18] sm:$0xff] %v319
                  %v321 = vld [vmem:[%s311 + $0x40] sm:$0xff]
                  %322 = vst [vmem:[%s312 + $0x20] sm:$0xff] %v321
                  %v323 = vld [vmem:[%s311 + $0x48] sm:$0xff]
                  %324 = vst [vmem:[%s312 + $0x28] sm:$0xff] %v323
                  %v325 = vld [vmem:[%s311 + $0x60] sm:$0xff]
                  %326 = vst [vmem:[%s312 + $0x30] sm:$0xff] %v325
                  %v327 = vld [vmem:[%s311 + $0x68] sm:$0xff]
                  %328 = vst [vmem:[%s312 + $0x38] sm:$0xff] %v327
                $region76: #{aggregation_decoder_layer_forward.4} parent=70 // loop_footer
                  %s310 = sadd.s32 1, %s306
                $region77: #{aggregation_decoder_layer_forward.4} parent=70 // loop_footer_branch
                  %305 = sbr.rel target = $region73
                $region78: #{aggregation_decoder_layer_forward.4} parent=70 // loop_exit
                  _
              $region71: #{aggregation_decoder_layer_forward.4} parent=55 // pred_fallthru
                _
              // Predicated region
              $region79: #{aggregation_decoder_layer_forward.4} parent=55 // pred_check
                _
              $region80: #{aggregation_decoder_layer_forward.4} parent=55 // pred_check_branch
                %330 = sbr.rel target = $region82
              $region81: #{aggregation_decoder_layer_forward.4} parent=55 // pred_region
                _
              $region82: #{aggregation_decoder_layer_forward.4} parent=55 // pred_fallthru
                _
            $region56: #{aggregation_decoder_layer_forward.4} parent=51 // pred_fallthru
              _
            // Predicated region
            $region57: #{aggregation_decoder_layer_forward.4} parent=51 // pred_check
              _
            $region58: #{aggregation_decoder_layer_forward.4} parent=51 // pred_check_branch
              %277 = sbr.rel target = $region60
            $region59: #{aggregation_decoder_layer_forward.4} parent=51 // pred_region
              loop: start=0, step=1, limit=1
              $region61: #{aggregation_decoder_layer_forward.4} parent=59 // loop_pre_header
                _
              $region62: #{aggregation_decoder_layer_forward.4} parent=59 // loop_header
                %s280 = sphi 0, %s284
                %p281 = scmp.ge.s32.totalorder %s280, 1
                %s285 = sphi %s271, %s271
                %s286 = sphi %s268, %s268
              $region63: #{aggregation_decoder_layer_forward.4} parent=59 // loop_header_branch
                %283 = sbr.rel (%p281) target = $region67
              $region64: #{aggregation_decoder_layer_forward.4} parent=59 // loop_body
                %v287 = vld [vmem:[%s285] sm:$0xff]
                %288 = vst [vmem:[%s286] sm:$0xff] %v287
                %v289 = vld [vmem:[%s285 + $0x8] sm:$0xff]
                %290 = vst [vmem:[%s286 + $0x8] sm:$0xff] %v289
                %v291 = vld [vmem:[%s285 + $0x20] sm:$0xff]
                %292 = vst [vmem:[%s286 + $0x10] sm:$0xff] %v291
                %v293 = vld [vmem:[%s285 + $0x28] sm:$0xff]
                %294 = vst [vmem:[%s286 + $0x18] sm:$0xff] %v293
                %v295 = vld [vmem:[%s285 + $0x40] sm:$0xff]
                %296 = vst [vmem:[%s286 + $0x20] sm:$0xff] %v295
                %v297 = vld [vmem:[%s285 + $0x48] sm:$0xff]
                %298 = vst [vmem:[%s286 + $0x28] sm:$0xff] %v297
                %v299 = vld [vmem:[%s285 + $0x60] sm:$0xff]
                %300 = vst [vmem:[%s286 + $0x30] sm:$0xff] %v299
                %v301 = vld [vmem:[%s285 + $0x68] sm:$0xff]
                %302 = vst [vmem:[%s286 + $0x38] sm:$0xff] %v301
              $region65: #{aggregation_decoder_layer_forward.4} parent=59 // loop_footer
                %s284 = sadd.s32 1, %s280
              $region66: #{aggregation_decoder_layer_forward.4} parent=59 // loop_footer_branch
                %279 = sbr.rel target = $region62
              $region67: #{aggregation_decoder_layer_forward.4} parent=59 // loop_exit
                _
            $region60: #{aggregation_decoder_layer_forward.4} parent=51 // pred_fallthru
              _
          $region52: #{aggregation_decoder_layer_forward.4} parent=47 // pred_fallthru
            _
          %331 = vnop
        $region48: #{aggregation_decoder_layer_forward.4} parent=43 // pred_fallthru
          _
      $region44: #{aggregation_decoder_layer_forward.4} parent=5 // pred_fallthru
        _
      %p332 = scmp.le.s32.totalorder 1, %s15
      %p333 = scmp.lt.s32.totalorder %s15, 3
      %p334 = pnand %p332, %p333
      %p335 = pneg %p334
      // Predicated region
      $region83: #{aggregation_decoder_layer_forward.4} parent=5 // pred_check
        _
      $region84: #{aggregation_decoder_layer_forward.4} parent=5 // pred_check_branch
        %337 = sbr.rel (%p334) target = $region86
      $region85: #{aggregation_decoder_layer_forward.4} parent=5 // pred_region
        %s338 = ssub.s32 %s15, 1
        // Predicated region
        $region87: #{aggregation_decoder_layer_forward.4} parent=85 // pred_check
          %p339 = pneg %p36
        $region88: #{aggregation_decoder_layer_forward.4} parent=85 // pred_check_branch
          %341 = sbr.rel (%p339) target = $region90
        $region89: #{aggregation_decoder_layer_forward.4} parent=85 // pred_region
          %342 = dma.done [#allocation3], 16
        $region90: #{aggregation_decoder_layer_forward.4} parent=85 // pred_fallthru
          _
        %s343 = sand.u32 %s49, 1
        %s344 = sand.u32 %s49, 1
        %s345 = smul.addr %s344, 64
        %s346 = scalar_lea.vmem [#allocation4], %s345
        // Predicated region
        $region91: #{aggregation_decoder_layer_forward.4} parent=85 // pred_check
          %p347 = pneg %p62
        $region92: #{aggregation_decoder_layer_forward.4} parent=85 // pred_check_branch
          %349 = sbr.rel (%p347) target = $region94
        $region93: #{aggregation_decoder_layer_forward.4} parent=85 // pred_region
          _
        $region94: #{aggregation_decoder_layer_forward.4} parent=85 // pred_fallthru
          _
        %350 = sfence
        %p351 = pneg %p36
        %p352 = pneg %p33
        %s353 = sand.u32 %s49, 1
        %s354 = sand.u32 %s49, 1
        %s355 = smul.addr %s354, 64
        %s356 = scalar_lea.vmem [#allocation4], %s355
        %p357 = pneg %p62
        %p358 = pneg %p59
        %p359 = pneg %p83
        %p360 = pneg %p80
        %p361 = pneg %p104
        %p362 = pneg %p101
        %p363 = pneg %p125
        %p364 = pneg %p122
        %p365 = pneg %p146
        %p366 = pneg %p143
        %p367 = pneg %p167
        %p368 = pneg %p164
        %p369 = pneg %p188
        %p370 = pneg %p185
        %p371 = pneg %p214
        %p372 = pneg %p211
        %s373 = smul.u32 2, %s20
        %p374 = scmp.lt.s32.totalorder %s373, 3
        %s375 = scalar_select %p374, %s373, 3
        %s376 = smul.addr %s375, 8
        %s377 = scalar_lea.vmem %s8, %s376
        %s378 = smul.u32 2, %s20
        %s379 = smul.u32 2, %s20
        %p380 = scmp.lt.s32.totalorder %s379, 3
        %s381 = scalar_select %p380, %s379, 3
        %s382 = smul.addr %s381, 8
        %s383 = scalar_lea.vmem %s8, %s382
        %s384 = smul.u32 2, %s20
        %s386 = sld [smem:[#allocation2]]
        %v387 = vld [vmem:[%s346] sm:$0xff]
        %v388 = vld [vmem:[%s346 + $0x8] sm:$0xff]
        %v389 = vstv %s386
        %v390 = vmul.f32 %v389, %v387
        %v391 = vmul.f32 %v389, %v388
        %s392 = sld [smem:[#allocation2 + $0x1]]
        %s393 = scalar_lea.vmem %s346, 16 [#allocation4]
        %v394 = vld [vmem:[%s393] sm:$0xff]
        %v395 = vld [vmem:[%s393 + $0x8] sm:$0xff]
        %v396 = vstv %s392
        %v397 = vmul.f32 %v396, %v394
        %v398 = vmul.f32 %v396, %v395
        %v399 = vadd.f32 %v390, %v397
        %v400 = vadd.f32 %v391, %v398
        %s401 = sld [smem:[#allocation2 + $0x2]]
        %s402 = scalar_lea.vmem %s346, 32 [#allocation4]
        %v403 = vld [vmem:[%s402] sm:$0xff]
        %v404 = vld [vmem:[%s402 + $0x8] sm:$0xff]
        %v405 = vstv %s401
        %v406 = vmul.f32 %v405, %v403
        %v407 = vmul.f32 %v405, %v404
        %v408 = vadd.f32 %v399, %v406
        %v409 = vadd.f32 %v400, %v407
        %s410 = sld [smem:[#allocation2 + $0x3]]
        %s411 = scalar_lea.vmem %s346, 48 [#allocation4]
        %v412 = vld [vmem:[%s411] sm:$0xff]
        %v413 = vld [vmem:[%s411 + $0x8] sm:$0xff]
        %v414 = vstv %s410
        %v415 = vmul.f32 %v414, %v412
        %v416 = vmul.f32 %v414, %v413
        %v417 = vadd.f32 %v408, %v415
        %v418 = vadd.f32 %v409, %v416
        %v419 = vld [vmem:[%s2] sm:$0x1]
        %v420 = vld [vmem:[%s3] sm:$0x1]
        %421 = vadd.xlane.f32.xlu0 %v417
        %v422 = vpop.xlane.xlu0 %421
        %423 = vadd.xlane.f32.xlu0 %v418
        %v424 = vpop.xlane.xlu0 %423
        %v425 = vrcp.pop 128.0
        %v426 = vmul.f32 %v422, %v425
        %v427 = vmul.f32 %v424, %v425
        %v428 = vsub.f32 %v417, %v426
        %v429 = vsub.f32 %v418, %v427
        %v430 = vmul.f32 %v428, %v428
        %v431 = vmul.f32 %v429, %v429
        %432 = vadd.xlane.f32.xlu0 %v430
        %v433 = vpop.xlane.xlu0 %432
        %434 = vadd.xlane.f32.xlu0 %v431
        %v435 = vpop.xlane.xlu0 %434
        %v436 = vmul.f32 %v433, %v425
        %v437 = vmul.f32 %v435, %v425
        %v438 = vadd.f32 %v436, 1e-05
        %v439 = vadd.f32 %v437, 1e-05
        %v440 = vrsqrt.pop %v438
        %v441 = vrsqrt.pop %v439
        %v442 = vmul.f32 %v428, %v440
        %v443 = vmul.f32 %v429, %v441
        %v445 = vlaneseq
        %v446 = vshrl.u32 %v445, 7
        %v447 = vsub.s32 0, %v446
        %v448 = vrot.slane %v419, %v447
        %v450 = vmul.f32 %v442, %v448
        %v451 = vmul.f32 %v443, %v448
        %v453 = vlaneseq
        %v454 = vshrl.u32 %v453, 7
        %v455 = vsub.s32 0, %v454
        %v456 = vrot.slane %v420, %v455
        %v458 = vadd.f32 %v450, %v456
        %v459 = vadd.f32 %v451, %v456
        %v460 = vpack.c.bf16 %v459, %v458
        %v461 = vld [vmem:[%s4] sm:$0xff]
        %v462 = vld [vmem:[%s4 + $0x8] sm:$0xff]
        %v463 = vld [vmem:[%s4 + $0x10] sm:$0xff]
        %v464 = vld [vmem:[%s4 + $0x18] sm:$0xff]
        %v465 = vld [vmem:[%s4 + $0x20] sm:$0xff]
        %v466 = vld [vmem:[%s4 + $0x28] sm:$0xff]
        %v467 = vld [vmem:[%s4 + $0x30] sm:$0xff]
        %v468 = vld [vmem:[%s4 + $0x38] sm:$0xff]
        %v469 = vld [vmem:[%s4 + $0x40] sm:$0xff]
        %v470 = vld [vmem:[%s4 + $0x48] sm:$0xff]
        %v471 = vld [vmem:[%s4 + $0x50] sm:$0xff]
        %v472 = vld [vmem:[%s4 + $0x58] sm:$0xff]
        %v473 = vld [vmem:[%s4 + $0x60] sm:$0xff]
        %v474 = vld [vmem:[%s4 + $0x68] sm:$0xff]
        %v475 = vld [vmem:[%s4 + $0x70] sm:$0xff]
        %v476 = vld [vmem:[%s4 + $0x78] sm:$0xff]
        %v477 = vld [vmem:[%s5] sm:$0x3]
        %v479 = vlaneseq
        %v480 = vshrl.u32 %v479, 7
        %v481 = vsub.s32 0, %v480
        %v482 = vrot.slane %v477, %v481
        %v483 = vlaneseq
        %v484 = vshrl.u32 %v483, 7
        %v485 = vsub.s32 1, %v484
        %v486 = vrot.slane %v477, %v485
        %v505 = vunpack.c.l.b16 %v461
        %v506 = vunpack.c.h.b16 %v461
        %v507 = vunpack.c.l.b16 %v462
        %v508 = vunpack.c.h.b16 %v462
        %v509 = vunpack.c.l.b16 %v463
        %v510 = vunpack.c.h.b16 %v463
        %v511 = vunpack.c.l.b16 %v464
        %v512 = vunpack.c.h.b16 %v464
        %v513 = vunpack.c.l.b16 %v465
        %v514 = vunpack.c.h.b16 %v465
        %v515 = vunpack.c.l.b16 %v466
        %v516 = vunpack.c.h.b16 %v466
        %v517 = vunpack.c.l.b16 %v467
        %v518 = vunpack.c.h.b16 %v467
        %v519 = vunpack.c.l.b16 %v468
        %v520 = vunpack.c.h.b16 %v468
        %v521 = vunpack.c.l.b16 %v469
        %v522 = vunpack.c.h.b16 %v469
        %v523 = vunpack.c.l.b16 %v470
        %v524 = vunpack.c.h.b16 %v470
        %v525 = vunpack.c.l.b16 %v471
        %v526 = vunpack.c.h.b16 %v471
        %v527 = vunpack.c.l.b16 %v472
        %v528 = vunpack.c.h.b16 %v472
        %v529 = vunpack.c.l.b16 %v473
        %v530 = vunpack.c.h.b16 %v473
        %v531 = vunpack.c.l.b16 %v474
        %v532 = vunpack.c.h.b16 %v474
        %v533 = vunpack.c.l.b16 %v475
        %v534 = vunpack.c.h.b16 %v475
        %v535 = vunpack.c.l.b16 %v476
        %v536 = vunpack.c.h.b16 %v476
        %v537 = vpack.c.b16 %v507, %v505
        %v538 = vpack.c.b16 %v508, %v506
        %v539 = vpack.c.b16 %v511, %v509
        %v540 = vpack.c.b16 %v512, %v510
        %v541 = vpack.c.b16 %v515, %v513
        %v542 = vpack.c.b16 %v516, %v514
        %v543 = vpack.c.b16 %v519, %v517
        %v544 = vpack.c.b16 %v520, %v518
        %v545 = vpack.c.b16 %v523, %v521
        %v546 = vpack.c.b16 %v524, %v522
        %v547 = vpack.c.b16 %v527, %v525
        %v548 = vpack.c.b16 %v528, %v526
        %v549 = vpack.c.b16 %v531, %v529
        %v550 = vpack.c.b16 %v532, %v530
        %v551 = vpack.c.b16 %v535, %v533
        %v552 = vpack.c.b16 %v536, %v534
        %569 = vmatprep.subr.bf16.mxu0 %v538
        %570 = vmatpush1.bf16.msra.mxu0 %v537
        %571 = vmatprep.subr.bf16.mxu0 %v540
        %572 = vmatpush1.bf16.msra.mxu0 %v539
        %573 = vmatprep.subr.bf16.mxu0 %v542
        %574 = vmatpush1.bf16.msra.mxu0 %v541
        %575 = vmatprep.subr.bf16.mxu0 %v544
        %576 = vmatpush1.bf16.msra.mxu0 %v543
        %577 = vmatprep.subr.bf16.mxu0 %v546
        %578 = vmatpush1.bf16.msra.mxu0 %v545
        %579 = vmatprep.subr.bf16.mxu0 %v548
        %580 = vmatpush1.bf16.msra.mxu0 %v547
        %581 = vmatprep.subr.bf16.mxu0 %v550
        %582 = vmatpush1.bf16.msra.mxu0 %v549
        %583 = vmatprep.subr.bf16.mxu0 %v552
        %584 = vmatpush1.bf16.msra.mxu0 %v551
        %585 = vmatprep.subr.bf16.mxu0 0
        %586 = vmatpush1.bf16.msra.mxu0 0
        %587 = vmatprep.subr.bf16.mxu0 0
        %588 = vmatpush1.bf16.msra.mxu0 0
        %589 = vmatprep.subr.bf16.mxu0 0
        %590 = vmatpush1.bf16.msra.mxu0 0
        %591 = vmatprep.subr.bf16.mxu0 0
        %592 = vmatpush1.bf16.msra.mxu0 0
        %593 = vmatprep.subr.bf16.mxu0 0
        %594 = vmatpush1.bf16.msra.mxu0 0
        %595 = vmatprep.subr.bf16.mxu0 0
        %596 = vmatpush1.bf16.msra.mxu0 0
        %597 = vmatprep.subr.bf16.mxu0 0
        %598 = vmatpush1.bf16.msra.mxu0 0
        %599 = vmatprep.subr.bf16.mxu0 0
        %600 = vmatpush1.bf16.msra.mxu0 0
        %601 = vmatprep.mubr.bf16.mxu0 0
        %602 = vmatmul.mubr.bf16.gmra.mrb[0].mxu0 %v460
        %v603 = vpop.f32.mrb[0].mxu0
        %v604 = vadd.f32 %v482, %v603
        %v605 = vpop.f32.mrb[0].mxu0
        %v606 = vadd.f32 %v486, %v605
        %v607 = vpop.f32.mrb[0].mxu0
        %v608 = vadd.f32 %v482, %v607
        %v609 = vpop.f32.mrb[0].mxu0
        %v610 = vadd.f32 %v486, %v609
        %611 = vdwg.mxu0
        %v612 = vmax.f32 %v604, 0.0
        %v613 = vmax.f32 %v606, 0.0
        %v614 = vmax.f32 %v608, 0.0
        %v615 = vmax.f32 %v610, 0.0
        %v616 = vpack.c.bf16 %v614, %v612
        %v617 = vpack.c.bf16 %v615, %v613
        %v618 = vld [vmem:[%s6] sm:$0xf]
        %v619 = vld [vmem:[%s6 + $0x4] sm:$0xf]
        %v620 = vld [vmem:[%s6 + $0x8] sm:$0xf]
        %v621 = vld [vmem:[%s6 + $0xc] sm:$0xf]
        %v622 = vld [vmem:[%s6 + $0x10] sm:$0xf]
        %v623 = vld [vmem:[%s6 + $0x14] sm:$0xf]
        %v624 = vld [vmem:[%s6 + $0x18] sm:$0xf]
        %v625 = vld [vmem:[%s6 + $0x1c] sm:$0xf]
        %v626 = vld [vmem:[%s6 + $0x20] sm:$0xf]
        %v627 = vld [vmem:[%s6 + $0x24] sm:$0xf]
        %v628 = vld [vmem:[%s6 + $0x28] sm:$0xf]
        %v629 = vld [vmem:[%s6 + $0x2c] sm:$0xf]
        %v630 = vld [vmem:[%s6 + $0x30] sm:$0xf]
        %v631 = vld [vmem:[%s6 + $0x34] sm:$0xf]
        %v632 = vld [vmem:[%s6 + $0x38] sm:$0xf]
        %v633 = vld [vmem:[%s6 + $0x3c] sm:$0xf]
        %v634 = vld [vmem:[%s6 + $0x40] sm:$0xf]
        %v635 = vld [vmem:[%s6 + $0x44] sm:$0xf]
        %v636 = vld [vmem:[%s6 + $0x48] sm:$0xf]
        %v637 = vld [vmem:[%s6 + $0x4c] sm:$0xf]
        %v638 = vld [vmem:[%s6 + $0x50] sm:$0xf]
        %v639 = vld [vmem:[%s6 + $0x54] sm:$0xf]
        %v640 = vld [vmem:[%s6 + $0x58] sm:$0xf]
        %v641 = vld [vmem:[%s6 + $0x5c] sm:$0xf]
        %v642 = vld [vmem:[%s6 + $0x60] sm:$0xf]
        %v643 = vld [vmem:[%s6 + $0x64] sm:$0xf]
        %v644 = vld [vmem:[%s6 + $0x68] sm:$0xf]
        %v645 = vld [vmem:[%s6 + $0x6c] sm:$0xf]
        %v646 = vld [vmem:[%s6 + $0x70] sm:$0xf]
        %v647 = vld [vmem:[%s6 + $0x74] sm:$0xf]
        %v648 = vld [vmem:[%s6 + $0x78] sm:$0xf]
        %v649 = vld [vmem:[%s6 + $0x7c] sm:$0xf]
        %v650 = vld [vmem:[%s7] sm:$0x1]
        %v652 = vlaneseq
        %v653 = vshrl.u32 %v652, 7
        %v654 = vsub.s32 0, %v653
        %v655 = vrot.slane %v650, %v654
        %v689 = vunpack.c.l.b16 %v618
        %v690 = vunpack.c.l.b16 %v619
        %v691 = vunpack.c.l.b16 %v620
        %v692 = vunpack.c.l.b16 %v621
        %v693 = vunpack.c.l.b16 %v622
        %v694 = vunpack.c.l.b16 %v623
        %v695 = vunpack.c.l.b16 %v624
        %v696 = vunpack.c.l.b16 %v625
        %v697 = vunpack.c.l.b16 %v626
        %v698 = vunpack.c.l.b16 %v627
        %v699 = vunpack.c.l.b16 %v628
        %v700 = vunpack.c.l.b16 %v629
        %v701 = vunpack.c.l.b16 %v630
        %v702 = vunpack.c.l.b16 %v631
        %v703 = vunpack.c.l.b16 %v632
        %v704 = vunpack.c.l.b16 %v633
        %v705 = vunpack.c.l.b16 %v634
        %v706 = vunpack.c.l.b16 %v635
        %v707 = vunpack.c.l.b16 %v636
        %v708 = vunpack.c.l.b16 %v637
        %v709 = vunpack.c.l.b16 %v638
        %v710 = vunpack.c.l.b16 %v639
        %v711 = vunpack.c.l.b16 %v640
        %v712 = vunpack.c.l.b16 %v641
        %v713 = vunpack.c.l.b16 %v642
        %v714 = vunpack.c.l.b16 %v643
        %v715 = vunpack.c.l.b16 %v644
        %v716 = vunpack.c.l.b16 %v645
        %v717 = vunpack.c.l.b16 %v646
        %v718 = vunpack.c.l.b16 %v647
        %v719 = vunpack.c.l.b16 %v648
        %v720 = vunpack.c.l.b16 %v649
        %v721 = vpack.c.b16 %v690, %v689
        %v722 = vpack.c.b16 %v692, %v691
        %v723 = vpack.c.b16 %v694, %v693
        %v724 = vpack.c.b16 %v696, %v695
        %v725 = vpack.c.b16 %v698, %v697
        %v726 = vpack.c.b16 %v700, %v699
        %v727 = vpack.c.b16 %v702, %v701
        %v728 = vpack.c.b16 %v704, %v703
        %v729 = vpack.c.b16 %v706, %v705
        %v730 = vpack.c.b16 %v708, %v707
        %v731 = vpack.c.b16 %v710, %v709
        %v732 = vpack.c.b16 %v712, %v711
        %v733 = vpack.c.b16 %v714, %v713
        %v734 = vpack.c.b16 %v716, %v715
        %v735 = vpack.c.b16 %v718, %v717
        %v736 = vpack.c.b16 %v720, %v719
        %753 = vmatprep.subr.bf16.mxu0 0
        %754 = vmatpush1.bf16.msra.mxu0 %v721
        %755 = vmatprep.subr.bf16.mxu0 0
        %756 = vmatpush1.bf16.msra.mxu0 %v722
        %757 = vmatprep.subr.bf16.mxu0 0
        %758 = vmatpush1.bf16.msra.mxu0 %v723
        %759 = vmatprep.subr.bf16.mxu0 0
        %760 = vmatpush1.bf16.msra.mxu0 %v724
        %761 = vmatprep.subr.bf16.mxu0 0
        %762 = vmatpush1.bf16.msra.mxu0 %v725
        %763 = vmatprep.subr.bf16.mxu0 0
        %764 = vmatpush1.bf16.msra.mxu0 %v726
        %765 = vmatprep.subr.bf16.mxu0 0
        %766 = vmatpush1.bf16.msra.mxu0 %v727
        %767 = vmatprep.subr.bf16.mxu0 0
        %768 = vmatpush1.bf16.msra.mxu0 %v728
        %769 = vmatprep.subr.bf16.mxu0 0
        %770 = vmatpush1.bf16.msra.mxu0 %v729
        %771 = vmatprep.subr.bf16.mxu0 0
        %772 = vmatpush1.bf16.msra.mxu0 %v730
        %773 = vmatprep.subr.bf16.mxu0 0
        %774 = vmatpush1.bf16.msra.mxu0 %v731
        %775 = vmatprep.subr.bf16.mxu0 0
        %776 = vmatpush1.bf16.msra.mxu0 %v732
        %777 = vmatprep.subr.bf16.mxu0 0
        %778 = vmatpush1.bf16.msra.mxu0 %v733
        %779 = vmatprep.subr.bf16.mxu0 0
        %780 = vmatpush1.bf16.msra.mxu0 %v734
        %781 = vmatprep.subr.bf16.mxu0 0
        %782 = vmatpush1.bf16.msra.mxu0 %v735
        %783 = vmatprep.subr.bf16.mxu0 0
        %784 = vmatpush1.bf16.msra.mxu0 %v736
        %785 = vmatprep.mubr.bf16.mxu0 %v617
        %786 = vmatmul.mubr.bf16.gmra.mrb[0].mxu0 %v616
        %v787 = vpop.f32.mrb[0].mxu0
        %v788 = vadd.f32 %v655, %v787
        %v789 = vpop.f32.mrb[0].mxu0
        %v790 = vpop.f32.mrb[0].mxu0
        %v791 = vadd.f32 %v655, %v790
        %v792 = vpop.f32.mrb[0].mxu0
        %793 = vdwg.mxu0
        %v794 = vadd.f32 %v788, %v458
        %v795 = vadd.f32 %v791, %v459
        %796 = vadd.xlane.f32.xlu0 %v794
        %v797 = vpop.xlane.xlu0 %796
        %798 = vadd.xlane.f32.xlu0 %v795
        %v799 = vpop.xlane.xlu0 %798
        %v800 = vmul.f32 %v797, %v425
        %v801 = vmul.f32 %v799, %v425
        %v802 = vsub.f32 %v794, %v800
        %v803 = vsub.f32 %v795, %v801
        %v804 = vmul.f32 %v802, %v802
        %v805 = vmul.f32 %v803, %v803
        %806 = vadd.xlane.f32.xlu0 %v804
        %v807 = vpop.xlane.xlu0 %806
        %808 = vadd.xlane.f32.xlu0 %v805
        %v809 = vpop.xlane.xlu0 %808
        %v810 = vmul.f32 %v807, %v425
        %v811 = vmul.f32 %v809, %v425
        %v812 = vadd.f32 %v810, 1e-05
        %v813 = vadd.f32 %v811, 1e-05
        %v814 = vrsqrt.pop %v812
        %v815 = vrsqrt.pop %v813
        %v816 = vmul.f32 %v802, %v814
        %v817 = vmul.f32 %v803, %v815
        %v818 = vmul.f32 %v816, %v448
        %v819 = vmul.f32 %v817, %v448
        %v820 = vadd.f32 %v818, %v456
        %v821 = vadd.f32 %v819, %v456
        %822 = vst [vmem:[%s383] sm:$0xff] %v820
        %823 = vst [vmem:[%s383 + $0x8] sm:$0xff] %v821
        %s824 = smul.u32 2, %s20
        %p825 = scmp.lt.s32.totalorder %s824, 3
        %s826 = scalar_select %p825, %s824, 3
        %s827 = smul.addr %s826, 8
        %s828 = scalar_lea.vmem %s8, %s827
        // Predicated region
        $region95: #{aggregation_decoder_layer_forward.4} parent=85 // pred_check
          %p829 = pneg %p211
        $region96: #{aggregation_decoder_layer_forward.4} parent=85 // pred_check_branch
          %831 = sbr.rel (%p829) target = $region98
        $region97: #{aggregation_decoder_layer_forward.4} parent=85 // pred_region
          %s832 = smul.u32 2, %s20
        $region98: #{aggregation_decoder_layer_forward.4} parent=85 // pred_fallthru
          _
      $region86: #{aggregation_decoder_layer_forward.4} parent=5 // pred_fallthru
        _
      %p833 = scmp.le.s32.totalorder 2, %s15
      // Predicated region
      $region99: #{aggregation_decoder_layer_forward.4} parent=5 // pred_check
        %p834 = pneg %p833
      $region100: #{aggregation_decoder_layer_forward.4} parent=5 // pred_check_branch
        %836 = sbr.rel (%p834) target = $region102
      $region101: #{aggregation_decoder_layer_forward.4} parent=5 // pred_region
        %s837 = ssub.s32 %s15, 2
        // Predicated region
        $region103: #{aggregation_decoder_layer_forward.4} parent=101 // pred_check
          %p838 = pneg %p217
        $region104: #{aggregation_decoder_layer_forward.4} parent=101 // pred_check_branch
          %840 = sbr.rel (%p838) target = $region106
        $region105: #{aggregation_decoder_layer_forward.4} parent=101 // pred_region
          %s841 = smul.u32 2, %s21
          %p842 = scmp.lt.s32.totalorder %s841, 3
          %s843 = scalar_select %p842, %s841, 3
          %s844 = smul.addr %s843, 8
          %s845 = scalar_lea.vmem %s8, %s844
        $region106: #{aggregation_decoder_layer_forward.4} parent=101 // pred_fallthru
          _
      $region102: #{aggregation_decoder_layer_forward.4} parent=5 // pred_fallthru
        _
    $region6: #{aggregation_decoder_layer_forward.4} parent=1 // loop_footer
      %s19 = sadd.s32 1, %s15
    $region7: #{aggregation_decoder_layer_forward.4} parent=1 // loop_footer_branch
      %14 = sbr.rel target = $region3
    $region8: #{aggregation_decoder_layer_forward.4} parent=1 // loop_exit
      _
    %846 = vsyncpa [#allocation3], 1
    %s847 = scalar_lea.sflag [#allocation3], 1
    %848 = vsyncpa %s847, 1

// kernel: aggregation_decoder_layer_forward.3
$region0: #{aggregation_decoder_layer_forward.3}
  #allocation0 [shape = 'u32[]', space=smem, size = 0x4, offset = 0x4, fixed_abs, tag = 'smem constant byte address 0x4 - core index']
  #allocation1 [shape = 'u32[144,128]{1,0:T(1,128)}', space=vmem, size = 0x12000, scoped, tag = 'internal scratch']
  %s0 = inlined_call_operand.vmem [shape: f32[2,16,128], index: 0, kind: input, shape index: {}]
  %s1 = inlined_call_operand.vmem [shape: bf16[128,384], index: 1, kind: input, shape index: {}]
  %s2 = inlined_call_operand.vmem [shape: f32[1,384], index: 2, kind: input, shape index: {}]
  %s3 = inlined_call_operand.vmem [shape: bf16[128,128], index: 3, kind: input, shape index: {}]
  %s4 = inlined_call_operand.vmem [shape: f32[1,128], index: 4, kind: input, shape index: {}]
  %s5 = inlined_call_operand.vmem [shape: f32[1,128], index: 5, kind: input, shape index: {}]
  %s6 = inlined_call_operand.vmem [shape: f32[1,128], index: 6, kind: input, shape index: {}]
  %s7 = inlined_call_operand.vmem [shape: f32[2,16,128], index: 7, kind: output, shape index: {}]
  %s8 = sld [smem:[#allocation0]]
  $region61: #{aggregation_decoder_layer_forward.3} parent=0
    _
  %s10 = ssub.s32 1, %s8
  %s11 = scalar_select 0, %s10, %s8
  loop: start=0, step=1, limit=4
  $region2: #{aggregation_decoder_layer_forward.3} parent=0 // loop_pre_header
    _
  $region3: #{aggregation_decoder_layer_forward.3} parent=0 // loop_header
    %s13 = sphi 0, %s17
    %p14 = scmp.ge.s32.totalorder %s13, 4
    %s23 = sphi 0, %s25
    %s26 = sphi 0, %s23
    %s27 = sphi 0, %s26
    %s43 = sphi 0, %s27
    %s47 = sphi 0, %s47
    %s49 = sphi 0, %s47
    %s50 = sphi 0, %s49
    %s64 = sphi 0, %s50
    %s68 = sphi 0, %s68
    %s70 = sphi 0, %s68
    %s71 = sphi 0, %s70
    %s85 = sphi 0, %s71
    %s89 = sphi 0, %s89
    %s91 = sphi 0, %s89
    %s92 = sphi 0, %s91
    %s106 = sphi 0, %s92
    %s110 = sphi 0, %s110
    %s112 = sphi 0, %s110
    %s113 = sphi 0, %s112
    %s127 = sphi 0, %s113
    %s131 = sphi 0, %s131
    %s133 = sphi 0, %s131
    %s134 = sphi 0, %s133
    %s148 = sphi 0, %s134
    %s152 = sphi 0, %s152
    %s154 = sphi 0, %s152
    %s155 = sphi 0, %s154
    %s169 = sphi 0, %s155
    %s175 = sphi 0, %s177
    %s178 = sphi 0, %s175
    %s179 = sphi 0, %s178
    %s195 = sphi 0, %s179
  $region4: #{aggregation_decoder_layer_forward.3} parent=0 // loop_header_branch
    %16 = sbr.rel (%p14) target = $region8
  $region5: #{aggregation_decoder_layer_forward.3} parent=0 // loop_body
    %s18 = ssub.s32 %s13, 1
    %s19 = ssub.s32 %s13, 2
    %s20 = sadd.s32 %s13, 1
    %s21 = ssub.s32 %s13, %s20
    %p22 = scmp.eq.s32.totalorder %s21, 0
    %s24 = sadd.s32 %s23, 1
    %s25 = scalar_select %p22, %s23, %s24
    %p28 = pneg %p22
    %p29 = scmp.eq.s32.totalorder %s13, 1
    %p30 = por %p28, %p29
    %p31 = scmp.ne.s32.totalorder %s23, %s26
    %p32 = scmp.eq.s32.totalorder %s13, 0
    %p33 = por %p31, %p32
    %p34 = scmp.ne.s32.totalorder %s23, %s26
    %p35 = scmp.eq.s32.totalorder %s18, 1
    %p36 = por %p34, %p35
    %p37 = scmp.ne.s32.totalorder %s26, %s27
    %p38 = scmp.eq.s32.totalorder %s18, 0
    %p39 = por %p37, %p38
    %p40 = scmp.ne.s32.totalorder %s26, %s27
    %p41 = scmp.eq.s32.totalorder %s19, 1
    %p42 = por %p40, %p41
    %p44 = scmp.ne.s32.totalorder %s27, %s43
    %p45 = scmp.eq.s32.totalorder %s19, 0
    %p46 = por %p44, %p45
    %s48 = sadd.s32 %s47, 1
    %p51 = scmp.eq.s32.totalorder %s13, 1
    %p52 = scmp.ne.s32.totalorder %s47, %s49
    %p53 = scmp.eq.s32.totalorder %s13, 0
    %p54 = por %p52, %p53
    %p55 = scmp.ne.s32.totalorder %s47, %s49
    %p56 = scmp.eq.s32.totalorder %s18, 1
    %p57 = por %p55, %p56
    %p58 = scmp.ne.s32.totalorder %s49, %s50
    %p59 = scmp.eq.s32.totalorder %s18, 0
    %p60 = por %p58, %p59
    %p61 = scmp.ne.s32.totalorder %s49, %s50
    %p62 = scmp.eq.s32.totalorder %s19, 1
    %p63 = por %p61, %p62
    %p65 = scmp.ne.s32.totalorder %s50, %s64
    %p66 = scmp.eq.s32.totalorder %s19, 0
    %p67 = por %p65, %p66
    %s69 = sadd.s32 %s68, 1
    %p72 = scmp.eq.s32.totalorder %s13, 1
    %p73 = scmp.ne.s32.totalorder %s68, %s70
    %p74 = scmp.eq.s32.totalorder %s13, 0
    %p75 = por %p73, %p74
    %p76 = scmp.ne.s32.totalorder %s68, %s70
    %p77 = scmp.eq.s32.totalorder %s18, 1
    %p78 = por %p76, %p77
    %p79 = scmp.ne.s32.totalorder %s70, %s71
    %p80 = scmp.eq.s32.totalorder %s18, 0
    %p81 = por %p79, %p80
    %p82 = scmp.ne.s32.totalorder %s70, %s71
    %p83 = scmp.eq.s32.totalorder %s19, 1
    %p84 = por %p82, %p83
    %p86 = scmp.ne.s32.totalorder %s71, %s85
    %p87 = scmp.eq.s32.totalorder %s19, 0
    %p88 = por %p86, %p87
    %s90 = sadd.s32 %s89, 1
    %p93 = scmp.eq.s32.totalorder %s13, 1
    %p94 = scmp.ne.s32.totalorder %s89, %s91
    %p95 = scmp.eq.s32.totalorder %s13, 0
    %p96 = por %p94, %p95
    %p97 = scmp.ne.s32.totalorder %s89, %s91
    %p98 = scmp.eq.s32.totalorder %s18, 1
    %p99 = por %p97, %p98
    %p100 = scmp.ne.s32.totalorder %s91, %s92
    %p101 = scmp.eq.s32.totalorder %s18, 0
    %p102 = por %p100, %p101
    %p103 = scmp.ne.s32.totalorder %s91, %s92
    %p104 = scmp.eq.s32.totalorder %s19, 1
    %p105 = por %p103, %p104
    %p107 = scmp.ne.s32.totalorder %s92, %s106
    %p108 = scmp.eq.s32.totalorder %s19, 0
    %p109 = por %p107, %p108
    %s111 = sadd.s32 %s110, 1
    %p114 = scmp.eq.s32.totalorder %s13, 1
    %p115 = scmp.ne.s32.totalorder %s110, %s112
    %p116 = scmp.eq.s32.totalorder %s13, 0
    %p117 = por %p115, %p116
    %p118 = scmp.ne.s32.totalorder %s110, %s112
    %p119 = scmp.eq.s32.totalorder %s18, 1
    %p120 = por %p118, %p119
    %p121 = scmp.ne.s32.totalorder %s112, %s113
    %p122 = scmp.eq.s32.totalorder %s18, 0
    %p123 = por %p121, %p122
    %p124 = scmp.ne.s32.totalorder %s112, %s113
    %p125 = scmp.eq.s32.totalorder %s19, 1
    %p126 = por %p124, %p125
    %p128 = scmp.ne.s32.totalorder %s113, %s127
    %p129 = scmp.eq.s32.totalorder %s19, 0
    %p130 = por %p128, %p129
    %s132 = sadd.s32 %s131, 1
    %p135 = scmp.eq.s32.totalorder %s13, 1
    %p136 = scmp.ne.s32.totalorder %s131, %s133
    %p137 = scmp.eq.s32.totalorder %s13, 0
    %p138 = por %p136, %p137
    %p139 = scmp.ne.s32.totalorder %s131, %s133
    %p140 = scmp.eq.s32.totalorder %s18, 1
    %p141 = por %p139, %p140
    %p142 = scmp.ne.s32.totalorder %s133, %s134
    %p143 = scmp.eq.s32.totalorder %s18, 0
    %p144 = por %p142, %p143
    %p145 = scmp.ne.s32.totalorder %s133, %s134
    %p146 = scmp.eq.s32.totalorder %s19, 1
    %p147 = por %p145, %p146
    %p149 = scmp.ne.s32.totalorder %s134, %s148
    %p150 = scmp.eq.s32.totalorder %s19, 0
    %p151 = por %p149, %p150
    %s153 = sadd.s32 %s152, 1
    %p156 = scmp.eq.s32.totalorder %s13, 1
    %p157 = scmp.ne.s32.totalorder %s152, %s154
    %p158 = scmp.eq.s32.totalorder %s13, 0
    %p159 = por %p157, %p158
    %p160 = scmp.ne.s32.totalorder %s152, %s154
    %p161 = scmp.eq.s32.totalorder %s18, 1
    %p162 = por %p160, %p161
    %p163 = scmp.ne.s32.totalorder %s154, %s155
    %p164 = scmp.eq.s32.totalorder %s18, 0
    %p165 = por %p163, %p164
    %p166 = scmp.ne.s32.totalorder %s154, %s155
    %p167 = scmp.eq.s32.totalorder %s19, 1
    %p168 = por %p166, %p167
    %p170 = scmp.ne.s32.totalorder %s155, %s169
    %p171 = scmp.eq.s32.totalorder %s19, 0
    %p172 = por %p170, %p171
    %s173 = ssub.s32 %s13, %s20
    %p174 = scmp.eq.s32.totalorder %s173, 0
    %s176 = sadd.s32 %s175, 1
    %s177 = scalar_select %p174, %s175, %s176
    %p180 = pneg %p174
    %p181 = scmp.eq.s32.totalorder %s13, 1
    %p182 = por %p180, %p181
    %p183 = scmp.ne.s32.totalorder %s175, %s178
    %p184 = scmp.eq.s32.totalorder %s13, 0
    %p185 = por %p183, %p184
    %p186 = scmp.ne.s32.totalorder %s175, %s178
    %p187 = scmp.eq.s32.totalorder %s18, 1
    %p188 = por %p186, %p187
    %p189 = scmp.ne.s32.totalorder %s178, %s179
    %p190 = scmp.eq.s32.totalorder %s18, 0
    %p191 = por %p189, %p190
    %p192 = scmp.ne.s32.totalorder %s178, %s179
    %p193 = scmp.eq.s32.totalorder %s19, 1
    %p194 = por %p192, %p193
    %p196 = scmp.ne.s32.totalorder %s179, %s195
    %p197 = scmp.eq.s32.totalorder %s19, 0
    %p198 = por %p196, %p197
    %p199 = scmp.le.s32.totalorder 1, %s13
    %p200 = scmp.lt.s32.totalorder %s13, 3
    %p201 = pnand %p199, %p200
    %p202 = pneg %p201
    // Predicated region
    $region9: #{aggregation_decoder_layer_forward.3} parent=5 // pred_check
      _
    $region10: #{aggregation_decoder_layer_forward.3} parent=5 // pred_check_branch
      %204 = sbr.rel (%p201) target = $region12
    $region11: #{aggregation_decoder_layer_forward.3} parent=5 // pred_region
      %s205 = ssub.s32 %s13, 1
      // Predicated region
      $region13: #{aggregation_decoder_layer_forward.3} parent=11 // pred_check
        %p206 = pneg %p60
      $region14: #{aggregation_decoder_layer_forward.3} parent=11 // pred_check_branch
        %208 = sbr.rel (%p206) target = $region16
      $region15: #{aggregation_decoder_layer_forward.3} parent=11 // pred_region
        _
      $region16: #{aggregation_decoder_layer_forward.3} parent=11 // pred_fallthru
        _
      // Predicated region
      $region17: #{aggregation_decoder_layer_forward.3} parent=11 // pred_check
        %p209 = pneg %p81
      $region18: #{aggregation_decoder_layer_forward.3} parent=11 // pred_check_branch
        %211 = sbr.rel (%p209) target = $region20
      $region19: #{aggregation_decoder_layer_forward.3} parent=11 // pred_region
        _
      $region20: #{aggregation_decoder_layer_forward.3} parent=11 // pred_fallthru
        _
      // Predicated region
      $region21: #{aggregation_decoder_layer_forward.3} parent=11 // pred_check
        %p212 = pneg %p102
      $region22: #{aggregation_decoder_layer_forward.3} parent=11 // pred_check_branch
        %214 = sbr.rel (%p212) target = $region24
      $region23: #{aggregation_decoder_layer_forward.3} parent=11 // pred_region
        _
      $region24: #{aggregation_decoder_layer_forward.3} parent=11 // pred_fallthru
        _
      // Predicated region
      $region25: #{aggregation_decoder_layer_forward.3} parent=11 // pred_check
        %p215 = pneg %p123
      $region26: #{aggregation_decoder_layer_forward.3} parent=11 // pred_check_branch
        %217 = sbr.rel (%p215) target = $region28
      $region27: #{aggregation_decoder_layer_forward.3} parent=11 // pred_region
        _
      $region28: #{aggregation_decoder_layer_forward.3} parent=11 // pred_fallthru
        _
      // Predicated region
      $region29: #{aggregation_decoder_layer_forward.3} parent=11 // pred_check
        %p218 = pneg %p144
      $region30: #{aggregation_decoder_layer_forward.3} parent=11 // pred_check_branch
        %220 = sbr.rel (%p218) target = $region32
      $region31: #{aggregation_decoder_layer_forward.3} parent=11 // pred_region
        _
      $region32: #{aggregation_decoder_layer_forward.3} parent=11 // pred_fallthru
        _
      // Predicated region
      $region33: #{aggregation_decoder_layer_forward.3} parent=11 // pred_check
        %p221 = pneg %p165
      $region34: #{aggregation_decoder_layer_forward.3} parent=11 // pred_check_branch
        %223 = sbr.rel (%p221) target = $region36
      $region35: #{aggregation_decoder_layer_forward.3} parent=11 // pred_region
        _
      $region36: #{aggregation_decoder_layer_forward.3} parent=11 // pred_fallthru
        _
    $region12: #{aggregation_decoder_layer_forward.3} parent=5 // pred_fallthru
      _
    %p224 = scmp.lt.s32.totalorder %s13, 2
    // Predicated region
    $region37: #{aggregation_decoder_layer_forward.3} parent=5 // pred_check
      %p225 = pneg %p224
    $region38: #{aggregation_decoder_layer_forward.3} parent=5 // pred_check_branch
      %227 = sbr.rel (%p225) target = $region40
    $region39: #{aggregation_decoder_layer_forward.3} parent=5 // pred_region
      // Predicated region
      $region41: #{aggregation_decoder_layer_forward.3} parent=39 // pred_check
        %p228 = pneg %p33
      $region42: #{aggregation_decoder_layer_forward.3} parent=39 // pred_check_branch
        %230 = sbr.rel (%p228) target = $region44
      $region43: #{aggregation_decoder_layer_forward.3} parent=39 // pred_region
        %p231 = scmp.lt.s32.totalorder %s13, 1
        %s232 = scalar_select %p231, %s13, 1
        %s233 = smul.addr %s232, 2
        %s234 = smul.addr %s233, 8
        %s235 = scalar_lea.vmem %s0, %s234
      $region44: #{aggregation_decoder_layer_forward.3} parent=39 // pred_fallthru
        _
    $region40: #{aggregation_decoder_layer_forward.3} parent=5 // pred_fallthru
      _
    %p236 = scmp.le.s32.totalorder 1, %s13
    %p237 = scmp.lt.s32.totalorder %s13, 3
    %p238 = pnand %p236, %p237
    %p239 = pneg %p238
    // Predicated region
    $region45: #{aggregation_decoder_layer_forward.3} parent=5 // pred_check
      _
    $region46: #{aggregation_decoder_layer_forward.3} parent=5 // pred_check_branch
      %241 = sbr.rel (%p238) target = $region48
    $region47: #{aggregation_decoder_layer_forward.3} parent=5 // pred_region
      %s242 = ssub.s32 %s13, 1
      %p243 = scmp.lt.s32.totalorder %s18, 1
      %s244 = scalar_select %p243, %s18, 1
      %s245 = smul.addr %s244, 2
      %s246 = smul.addr %s245, 8
      %s247 = scalar_lea.vmem %s0, %s246
      %p248 = pneg %p39
      %p249 = pneg %p36
      %p250 = pneg %p60
      %p251 = pneg %p57
      %p252 = pneg %p81
      %p253 = pneg %p78
      %p254 = pneg %p102
      %p255 = pneg %p99
      %p256 = pneg %p123
      %p257 = pneg %p120
      %p258 = pneg %p144
      %p259 = pneg %p141
      %p260 = pneg %p165
      %p261 = pneg %p162
      %p262 = pneg %p191
      %p263 = pneg %p188
      %p264 = scmp.lt.s32.totalorder %s18, 1
      %s265 = scalar_select %p264, %s18, 1
      %s266 = smul.addr %s265, 2
      %s267 = smul.addr %s266, 8
      %s268 = scalar_lea.vmem %s7, %s267
      %p269 = scmp.lt.s32.totalorder %s18, 1
      %s270 = scalar_select %p269, %s18, 1
      %s271 = smul.addr %s270, 2
      %s272 = smul.addr %s271, 8
      %s273 = scalar_lea.vmem %s0, %s272
      %p274 = scmp.lt.s32.totalorder %s18, 1
      %s275 = scalar_select %p274, %s18, 1
      %s276 = smul.addr %s275, 2
      %s277 = smul.addr %s276, 8
      %s278 = scalar_lea.vmem %s7, %s277
      %v280 = vld [vmem:[%s273] sm:$0xff]
      %v281 = vld [vmem:[%s273 + $0x8] sm:$0xff]
      %v282 = vpack.c.bf16 %v281, %v280
      %v283 = vld [vmem:[%s1] sm:$0xff]
      %v284 = vld [vmem:[%s1 + $0x8] sm:$0xf]
      %v285 = vld [vmem:[%s1 + $0xc] sm:$0xff]
      %v286 = vld [vmem:[%s1 + $0x14] sm:$0xf]
      %v287 = vld [vmem:[%s1 + $0x18] sm:$0xff]
      %v288 = vld [vmem:[%s1 + $0x20] sm:$0xf]
      %v289 = vld [vmem:[%s1 + $0x24] sm:$0xff]
      %v290 = vld [vmem:[%s1 + $0x2c] sm:$0xf]
      %v291 = vld [vmem:[%s1 + $0x30] sm:$0xff]
      %v292 = vld [vmem:[%s1 + $0x38] sm:$0xf]
      %v293 = vld [vmem:[%s1 + $0x3c] sm:$0xff]
      %v294 = vld [vmem:[%s1 + $0x44] sm:$0xf]
      %v295 = vld [vmem:[%s1 + $0x48] sm:$0xff]
      %v296 = vld [vmem:[%s1 + $0x50] sm:$0xf]
      %v297 = vld [vmem:[%s1 + $0x54] sm:$0xff]
      %v298 = vld [vmem:[%s1 + $0x5c] sm:$0xf]
      %v299 = vld [vmem:[%s1 + $0x60] sm:$0xff]
      %v300 = vld [vmem:[%s1 + $0x68] sm:$0xf]
      %v301 = vld [vmem:[%s1 + $0x6c] sm:$0xff]
      %v302 = vld [vmem:[%s1 + $0x74] sm:$0xf]
      %v303 = vld [vmem:[%s1 + $0x78] sm:$0xff]
      %v304 = vld [vmem:[%s1 + $0x80] sm:$0xf]
      %v305 = vld [vmem:[%s1 + $0x84] sm:$0xff]
      %v306 = vld [vmem:[%s1 + $0x8c] sm:$0xf]
      %v307 = vld [vmem:[%s1 + $0x90] sm:$0xff]
      %v308 = vld [vmem:[%s1 + $0x98] sm:$0xf]
      %v309 = vld [vmem:[%s1 + $0x9c] sm:$0xff]
      %v310 = vld [vmem:[%s1 + $0xa4] sm:$0xf]
      %v311 = vld [vmem:[%s1 + $0xa8] sm:$0xff]
      %v312 = vld [vmem:[%s1 + $0xb0] sm:$0xf]
      %v313 = vld [vmem:[%s1 + $0xb4] sm:$0xff]
      %v314 = vld [vmem:[%s1 + $0xbc] sm:$0xf]
      %v315 = vld [vmem:[%s2] sm:$0x7]
      %v317 = vlaneseq
      %v318 = vshrl.u32 %v317, 7
      %v319 = vsub.s32 0, %v318
      %v320 = vrot.slane %v315, %v319
      %v321 = vlaneseq
      %v322 = vshrl.u32 %v321, 7
      %v323 = vsub.s32 1, %v322
      %v324 = vrot.slane %v315, %v323
      %v325 = vlaneseq
      %v326 = vshrl.u32 %v325, 7
      %v327 = vsub.s32 2, %v326
      %v328 = vrot.slane %v315, %v327
      %v364 = vunpack.c.l.b16 %v283
      %v365 = vunpack.c.h.b16 %v283
      %v366 = vunpack.c.l.b16 %v284
      %v367 = vunpack.c.l.b16 %v285
      %v368 = vunpack.c.h.b16 %v285
      %v369 = vunpack.c.l.b16 %v286
      %v370 = vunpack.c.l.b16 %v287
      %v371 = vunpack.c.h.b16 %v287
      %v372 = vunpack.c.l.b16 %v288
      %v373 = vunpack.c.l.b16 %v289
      %v374 = vunpack.c.h.b16 %v289
      %v375 = vunpack.c.l.b16 %v290
      %v376 = vunpack.c.l.b16 %v291
      %v377 = vunpack.c.h.b16 %v291
      %v378 = vunpack.c.l.b16 %v292
      %v379 = vunpack.c.l.b16 %v293
      %v380 = vunpack.c.h.b16 %v293
      %v381 = vunpack.c.l.b16 %v294
      %v382 = vunpack.c.l.b16 %v295
      %v383 = vunpack.c.h.b16 %v295
      %v384 = vunpack.c.l.b16 %v296
      %v385 = vunpack.c.l.b16 %v297
      %v386 = vunpack.c.h.b16 %v297
      %v387 = vunpack.c.l.b16 %v298
      %v388 = vunpack.c.l.b16 %v299
      %v389 = vunpack.c.h.b16 %v299
      %v390 = vunpack.c.l.b16 %v300
      %v391 = vunpack.c.l.b16 %v301
      %v392 = vunpack.c.h.b16 %v301
      %v393 = vunpack.c.l.b16 %v302
      %v394 = vunpack.c.l.b16 %v303
      %v395 = vunpack.c.h.b16 %v303
      %v396 = vunpack.c.l.b16 %v304
      %v397 = vunpack.c.l.b16 %v305
      %v398 = vunpack.c.h.b16 %v305
      %v399 = vunpack.c.l.b16 %v306
      %v400 = vunpack.c.l.b16 %v307
      %v401 = vunpack.c.h.b16 %v307
      %v402 = vunpack.c.l.b16 %v308
      %v403 = vunpack.c.l.b16 %v309
      %v404 = vunpack.c.h.b16 %v309
      %v405 = vunpack.c.l.b16 %v310
      %v406 = vunpack.c.l.b16 %v311
      %v407 = vunpack.c.h.b16 %v311
      %v408 = vunpack.c.l.b16 %v312
      %v409 = vunpack.c.l.b16 %v313
      %v410 = vunpack.c.h.b16 %v313
      %v411 = vunpack.c.l.b16 %v314
      %v412 = vpack.c.b16 %v367, %v364
      %v413 = vpack.c.b16 %v368, %v365
      %v414 = vpack.c.b16 %v369, %v366
      %v415 = vpack.c.b16 %v373, %v370
      %v416 = vpack.c.b16 %v374, %v371
      %v417 = vpack.c.b16 %v375, %v372
      %v418 = vpack.c.b16 %v379, %v376
      %v419 = vpack.c.b16 %v380, %v377
      %v420 = vpack.c.b16 %v381, %v378
      %v421 = vpack.c.b16 %v385, %v382
      %v422 = vpack.c.b16 %v386, %v383
      %v423 = vpack.c.b16 %v387, %v384
      %v424 = vpack.c.b16 %v391, %v388
      %v425 = vpack.c.b16 %v392, %v389
      %v426 = vpack.c.b16 %v393, %v390
      %v427 = vpack.c.b16 %v397, %v394
      %v428 = vpack.c.b16 %v398, %v395
      %v429 = vpack.c.b16 %v399, %v396
      %v430 = vpack.c.b16 %v403, %v400
      %v431 = vpack.c.b16 %v404, %v401
      %v432 = vpack.c.b16 %v405, %v402
      %v433 = vpack.c.b16 %v409, %v406
      %v434 = vpack.c.b16 %v410, %v407
      %v435 = vpack.c.b16 %v411, %v408
      %460 = vmatprep.subr.bf16.mxu0 %v413
      %461 = vmatpush1.bf16.msra.mxu0 %v412
      %462 = vmatprep.subr.bf16.mxu0 %v416
      %463 = vmatpush1.bf16.msra.mxu0 %v415
      %464 = vmatprep.subr.bf16.mxu0 %v419
      %465 = vmatpush1.bf16.msra.mxu0 %v418
      %466 = vmatprep.subr.bf16.mxu0 %v422
      %467 = vmatpush1.bf16.msra.mxu0 %v421
      %468 = vmatprep.subr.bf16.mxu0 %v425
      %469 = vmatpush1.bf16.msra.mxu0 %v424
      %470 = vmatprep.subr.bf16.mxu0 %v428
      %471 = vmatpush1.bf16.msra.mxu0 %v427
      %472 = vmatprep.subr.bf16.mxu0 %v431
      %473 = vmatpush1.bf16.msra.mxu0 %v430
      %474 = vmatprep.subr.bf16.mxu0 %v434
      %475 = vmatpush1.bf16.msra.mxu0 %v433
      %476 = vmatprep.subr.bf16.mxu0 0
      %477 = vmatpush1.bf16.msra.mxu0 0
      %478 = vmatprep.subr.bf16.mxu0 0
      %479 = vmatpush1.bf16.msra.mxu0 0
      %480 = vmatprep.subr.bf16.mxu0 0
      %481 = vmatpush1.bf16.msra.mxu0 0
      %482 = vmatprep.subr.bf16.mxu0 0
      %483 = vmatpush1.bf16.msra.mxu0 0
      %484 = vmatprep.subr.bf16.mxu0 0
      %485 = vmatpush1.bf16.msra.mxu0 0
      %486 = vmatprep.subr.bf16.mxu0 0
      %487 = vmatpush1.bf16.msra.mxu0 0
      %488 = vmatprep.subr.bf16.mxu0 0
      %489 = vmatpush1.bf16.msra.mxu0 0
      %490 = vmatprep.subr.bf16.mxu0 0
      %491 = vmatpush1.bf16.msra.mxu0 0
      %492 = vmatprep.mubr.bf16.mxu0 0
      %493 = vmatmul.mubr.bf16.gmra.mrb[0].mxu0 %v282
      %v494 = vpop.f32.mrb[0].mxu0
      %v495 = vadd.f32 %v320, %v494
      %v496 = vpop.f32.mrb[0].mxu0
      %v497 = vadd.f32 %v324, %v496
      %v498 = vpop.f32.mrb[0].mxu0
      %v499 = vadd.f32 %v320, %v498
      %v500 = vpop.f32.mrb[0].mxu0
      %v501 = vadd.f32 %v324, %v500
      %502 = vdwg.mxu0
      %503 = vmatprep.subr.bf16.mxu0 0
      %504 = vmatpush1.bf16.msra.mxu0 %v414
      %505 = vmatprep.subr.bf16.mxu0 0
      %506 = vmatpush1.bf16.msra.mxu0 %v417
      %507 = vmatprep.subr.bf16.mxu0 0
      %508 = vmatpush1.bf16.msra.mxu0 %v420
      %509 = vmatprep.subr.bf16.mxu0 0
      %510 = vmatpush1.bf16.msra.mxu0 %v423
      %511 = vmatprep.subr.bf16.mxu0 0
      %512 = vmatpush1.bf16.msra.mxu0 %v426
      %513 = vmatprep.subr.bf16.mxu0 0
      %514 = vmatpush1.bf16.msra.mxu0 %v429
      %515 = vmatprep.subr.bf16.mxu0 0
      %516 = vmatpush1.bf16.msra.mxu0 %v432
      %517 = vmatprep.subr.bf16.mxu0 0
      %518 = vmatpush1.bf16.msra.mxu0 %v435
      %519 = vmatprep.subr.bf16.mxu0 0
      %520 = vmatpush1.bf16.msra.mxu0 0
      %521 = vmatprep.subr.bf16.mxu0 0
      %522 = vmatpush1.bf16.msra.mxu0 0
      %523 = vmatprep.subr.bf16.mxu0 0
      %524 = vmatpush1.bf16.msra.mxu0 0
      %525 = vmatprep.subr.bf16.mxu0 0
      %526 = vmatpush1.bf16.msra.mxu0 0
      %527 = vmatprep.subr.bf16.mxu0 0
      %528 = vmatpush1.bf16.msra.mxu0 0
      %529 = vmatprep.subr.bf16.mxu0 0
      %530 = vmatpush1.bf16.msra.mxu0 0
      %531 = vmatprep.subr.bf16.mxu0 0
      %532 = vmatpush1.bf16.msra.mxu0 0
      %533 = vmatprep.subr.bf16.mxu0 0
      %534 = vmatpush1.bf16.msra.mxu0 0
      %535 = vmatprep.mubr.bf16.mxu0 0
      %536 = vmatmul.mubr.bf16.gmra.mrb[0].mxu0 %v282
      %v537 = vpop.f32.mrb[0].mxu0
      %v538 = vadd.f32 %v328, %v537
      %v539 = vpop.f32.mrb[0].mxu0
      %v540 = vpop.f32.mrb[0].mxu0
      %v541 = vadd.f32 %v328, %v540
      %v542 = vpop.f32.mrb[0].mxu0
      %543 = vdwg.mxu0
      %v544 = vmul.f32 %v495, 0.17677669
      %v545 = vmul.f32 %v499, 0.17677669
      %v546 = vpack.c.bf16 %v545, %v544
      %v547 = vpack.c.bf16 %v501, %v497
      %v548 = vpack.c.bf16 %v541, %v538
      %v549 = vlaneseq
      %v550 = vshrl.u32 %v549, 7
      %v551 = vadd.s32 %v550, 8
      %v552 = vlaneseq
      %v553 = vand.u32 %v552, 127
      %vm554 = vcmp.ge.s32.totalorder %v550, %v553
      %vm555 = vcmp.ge.s32.totalorder %v551, %v553
      %vm556 = vcmask 261120
      %v558 = vsel %vm556, %v546, 0
      %v561 = vsel %vm556, %v547, 0
      %563 = vmatprep.subr.bf16.mxu0 0
      %564 = vmatpush1.bf16.xpose.msra.mxu0 %v561
      %565 = vmatprep.subr.bf16.mxu0 0
      %566 = vmatpush1.bf16.xpose.msra.mxu0 0
      %567 = vmatprep.subr.bf16.mxu0 0
      %568 = vmatpush1.bf16.xpose.msra.mxu0 0
      %569 = vmatprep.subr.bf16.mxu0 0
      %570 = vmatpush1.bf16.xpose.msra.mxu0 0
      %571 = vmatprep.subr.bf16.mxu0 0
      %572 = vmatpush1.bf16.xpose.msra.mxu0 0
      %573 = vmatprep.subr.bf16.mxu0 0
      %574 = vmatpush1.bf16.xpose.msra.mxu0 0
      %575 = vmatprep.subr.bf16.mxu0 0
      %576 = vmatpush1.bf16.xpose.msra.mxu0 0
      %577 = vmatprep.subr.bf16.mxu0 0
      %578 = vmatpush1.bf16.xpose.msra.mxu0 0
      %579 = vmatprep.subr.bf16.mxu0 0
      %580 = vmatpush1.bf16.xpose.msra.mxu0 0
      %581 = vmatprep.subr.bf16.mxu0 0
      %582 = vmatpush1.bf16.xpose.msra.mxu0 0
      %583 = vmatprep.subr.bf16.mxu0 0
      %584 = vmatpush1.bf16.xpose.msra.mxu0 0
      %585 = vmatprep.subr.bf16.mxu0 0
      %586 = vmatpush1.bf16.xpose.msra.mxu0 0
      %587 = vmatprep.subr.bf16.mxu0 0
      %588 = vmatpush1.bf16.xpose.msra.mxu0 0
      %589 = vmatprep.subr.bf16.mxu0 0
      %590 = vmatpush1.bf16.xpose.msra.mxu0 0
      %591 = vmatprep.subr.bf16.mxu0 0
      %592 = vmatpush1.bf16.xpose.msra.mxu0 0
      %593 = vmatprep.subr.bf16.mxu0 0
      %594 = vmatpush1.bf16.xpose.msra.mxu0 0
      %595 = vmatprep.mubr.bf16.mxu0 0
      %596 = vmatmul.mubr.bf16.gmra.mrb[0].mxu0 %v558
      %v597 = vpop.f32.mrb[0].mxu0
      %v598 = vadd.f32 0.0, %v597
      %v599 = vpop.f32.mrb[0].mxu0
      %v600 = vpop.f32.mrb[0].mxu0
      %v601 = vadd.f32 0.0, %v600
      %v602 = vpop.f32.mrb[0].mxu0
      %603 = vdwg.mxu0
      %v604 = vsel %vm554, %v598, -1e+09
      %v605 = vsel %vm555, %v601, -1e+09
      %vm606 = vcmask 130048
      %v607 = vsel %vm606, %v604, -inf
      %608 = vmax.xlane.f32.xlu0 %v607
      %v609 = vpop.xlane.xlu0 %608
      %v610 = vsel %vm606, %v605, -inf
      %611 = vmax.xlane.f32.xlu0 %v610
      %v612 = vpop.xlane.xlu0 %611
      %v613 = vsub.f32 %v604, %v609
      %v614 = vsub.f32 %v605, %v612
      %v615 = vmul.f32 %v613, 1.442695
      %v616 = vpow.pop %v615
      %v617 = vmul.f32 %v614, 1.442695
      %v618 = vpow.pop %v617
      %v619 = vsel %vm606, %v616, 0.0
      %620 = vadd.xlane.f32.xlu0 %v619
      %v621 = vpop.xlane.xlu0 %620
      %v622 = vsel %vm606, %v618, 0.0
      %623 = vadd.xlane.f32.xlu0 %v622
      %v624 = vpop.xlane.xlu0 %623
      %v625 = vrcp.pop %v621
      %v626 = vrcp.pop %v624
      %v627 = vmul.f32 %v616, %v625
      %v628 = vmul.f32 %v618, %v626
      %v629 = vpack.c.bf16 %v628, %v627
      %v631 = vsel %vm606, %v629, 0
      %633 = vmatprep.subr.bf16.mxu0 0
      %634 = vmatpush1.bf16.msra.mxu0 %v548
      %635 = vmatprep.subr.bf16.mxu0 0
      %636 = vmatpush1.bf16.msra.mxu0 0
      %637 = vmatprep.subr.bf16.mxu0 0
      %638 = vmatpush1.bf16.msra.mxu0 0
      %639 = vmatprep.subr.bf16.mxu0 0
      %640 = vmatpush1.bf16.msra.mxu0 0
      %641 = vmatprep.subr.bf16.mxu0 0
      %642 = vmatpush1.bf16.msra.mxu0 0
      %643 = vmatprep.subr.bf16.mxu0 0
      %644 = vmatpush1.bf16.msra.mxu0 0
      %645 = vmatprep.subr.bf16.mxu0 0
      %646 = vmatpush1.bf16.msra.mxu0 0
      %647 = vmatprep.subr.bf16.mxu0 0
      %648 = vmatpush1.bf16.msra.mxu0 0
      %649 = vmatprep.subr.bf16.mxu0 0
      %650 = vmatpush1.bf16.msra.mxu0 0
      %651 = vmatprep.subr.bf16.mxu0 0
      %652 = vmatpush1.bf16.msra.mxu0 0
      %653 = vmatprep.subr.bf16.mxu0 0
      %654 = vmatpush1.bf16.msra.mxu0 0
      %655 = vmatprep.subr.bf16.mxu0 0
      %656 = vmatpush1.bf16.msra.mxu0 0
      %657 = vmatprep.subr.bf16.mxu0 0
      %658 = vmatpush1.bf16.msra.mxu0 0
      %659 = vmatprep.subr.bf16.mxu0 0
      %660 = vmatpush1.bf16.msra.mxu0 0
      %661 = vmatprep.subr.bf16.mxu0 0
      %662 = vmatpush1.bf16.msra.mxu0 0
      %663 = vmatprep.subr.bf16.mxu0 0
      %664 = vmatpush1.bf16.msra.mxu0 0
      %665 = vmatprep.mubr.bf16.mxu0 0
      %666 = vmatmul.mubr.bf16.gmra.mrb[0].mxu0 %v631
      %v667 = vpop.f32.mrb[0].mxu0
      %v668 = vadd.f32 0.0, %v667
      %v669 = vpop.f32.mrb[0].mxu0
      %v670 = vpop.f32.mrb[0].mxu0
      %v671 = vadd.f32 0.0, %v670
      %v672 = vpop.f32.mrb[0].mxu0
      %673 = vdwg.mxu0
      %675 = vrot.lane.b32.xlu0 %v546, 96
      %v676 = vpop.permute.xlu0 %675
      %678 = vrot.lane.b32.xlu0 %v547, 96
      %v679 = vpop.permute.xlu0 %678
      %v681 = vsel %vm556, %v676, 0
      %v684 = vsel %vm556, %v679, 0
      %686 = vmatprep.subr.bf16.mxu0 0
      %687 = vmatpush1.bf16.xpose.msra.mxu0 %v684
      %688 = vmatprep.subr.bf16.mxu0 0
      %689 = vmatpush1.bf16.xpose.msra.mxu0 0
      %690 = vmatprep.subr.bf16.mxu0 0
      %691 = vmatpush1.bf16.xpose.msra.mxu0 0
      %692 = vmatprep.subr.bf16.mxu0 0
      %693 = vmatpush1.bf16.xpose.msra.mxu0 0
      %694 = vmatprep.subr.bf16.mxu0 0
      %695 = vmatpush1.bf16.xpose.msra.mxu0 0
      %696 = vmatprep.subr.bf16.mxu0 0
      %697 = vmatpush1.bf16.xpose.msra.mxu0 0
      %698 = vmatprep.subr.bf16.mxu0 0
      %699 = vmatpush1.bf16.xpose.msra.mxu0 0
      %700 = vmatprep.subr.bf16.mxu0 0
      %701 = vmatpush1.bf16.xpose.msra.mxu0 0
      %702 = vmatprep.subr.bf16.mxu0 0
      %703 = vmatpush1.bf16.xpose.msra.mxu0 0
      %704 = vmatprep.subr.bf16.mxu0 0
      %705 = vmatpush1.bf16.xpose.msra.mxu0 0
      %706 = vmatprep.subr.bf16.mxu0 0
      %707 = vmatpush1.bf16.xpose.msra.mxu0 0
      %708 = vmatprep.subr.bf16.mxu0 0
      %709 = vmatpush1.bf16.xpose.msra.mxu0 0
      %710 = vmatprep.subr.bf16.mxu0 0
      %711 = vmatpush1.bf16.xpose.msra.mxu0 0
      %712 = vmatprep.subr.bf16.mxu0 0
      %713 = vmatpush1.bf16.xpose.msra.mxu0 0
      %714 = vmatprep.subr.bf16.mxu0 0
      %715 = vmatpush1.bf16.xpose.msra.mxu0 0
      %716 = vmatprep.subr.bf16.mxu0 0
      %717 = vmatpush1.bf16.xpose.msra.mxu0 0
      %718 = vmatprep.mubr.bf16.mxu0 0
      %719 = vmatmul.mubr.bf16.gmra.mrb[0].mxu0 %v681
      %v720 = vpop.f32.mrb[0].mxu0
      %v721 = vadd.f32 0.0, %v720
      %v722 = vpop.f32.mrb[0].mxu0
      %v723 = vpop.f32.mrb[0].mxu0
      %v724 = vadd.f32 0.0, %v723
      %v725 = vpop.f32.mrb[0].mxu0
      %726 = vdwg.mxu0
      %v727 = vsel %vm554, %v721, -1e+09
      %v728 = vsel %vm555, %v724, -1e+09
      %v729 = vsel %vm606, %v727, -inf
      %730 = vmax.xlane.f32.xlu0 %v729
      %v731 = vpop.xlane.xlu0 %730
      %v732 = vsel %vm606, %v728, -inf
      %733 = vmax.xlane.f32.xlu0 %v732
      %v734 = vpop.xlane.xlu0 %733
      %v735 = vsub.f32 %v727, %v731
      %v736 = vsub.f32 %v728, %v734
      %v737 = vmul.f32 %v735, 1.442695
      %v738 = vpow.pop %v737
      %v739 = vmul.f32 %v736, 1.442695
      %v740 = vpow.pop %v739
      %v741 = vsel %vm606, %v738, 0.0
      %742 = vadd.xlane.f32.xlu0 %v741
      %v743 = vpop.xlane.xlu0 %742
      %v744 = vsel %vm606, %v740, 0.0
      %745 = vadd.xlane.f32.xlu0 %v744
      %v746 = vpop.xlane.xlu0 %745
      %v747 = vrcp.pop %v743
      %v748 = vrcp.pop %v746
      %v749 = vmul.f32 %v738, %v747
      %v750 = vmul.f32 %v740, %v748
      %v751 = vpack.c.bf16 %v750, %v749
      %753 = vrot.lane.b32.xlu0 %v548, 96
      %v754 = vpop.permute.xlu0 %753
      %v757 = vsel %vm606, %v751, 0
      %759 = vmatprep.subr.bf16.mxu0 0
      %760 = vmatpush1.bf16.msra.mxu0 %v754
      %761 = vmatprep.subr.bf16.mxu0 0
      %762 = vmatpush1.bf16.msra.mxu0 0
      %763 = vmatprep.subr.bf16.mxu0 0
      %764 = vmatpush1.bf16.msra.mxu0 0
      %765 = vmatprep.subr.bf16.mxu0 0
      %766 = vmatpush1.bf16.msra.mxu0 0
      %767 = vmatprep.subr.bf16.mxu0 0
      %768 = vmatpush1.bf16.msra.mxu0 0
      %769 = vmatprep.subr.bf16.mxu0 0
      %770 = vmatpush1.bf16.msra.mxu0 0
      %771 = vmatprep.subr.bf16.mxu0 0
      %772 = vmatpush1.bf16.msra.mxu0 0
      %773 = vmatprep.subr.bf16.mxu0 0
      %774 = vmatpush1.bf16.msra.mxu0 0
      %775 = vmatprep.subr.bf16.mxu0 0
      %776 = vmatpush1.bf16.msra.mxu0 0
      %777 = vmatprep.subr.bf16.mxu0 0
      %778 = vmatpush1.bf16.msra.mxu0 0
      %779 = vmatprep.subr.bf16.mxu0 0
      %780 = vmatpush1.bf16.msra.mxu0 0
      %781 = vmatprep.subr.bf16.mxu0 0
      %782 = vmatpush1.bf16.msra.mxu0 0
      %783 = vmatprep.subr.bf16.mxu0 0
      %784 = vmatpush1.bf16.msra.mxu0 0
      %785 = vmatprep.subr.bf16.mxu0 0
      %786 = vmatpush1.bf16.msra.mxu0 0
      %787 = vmatprep.subr.bf16.mxu0 0
      %788 = vmatpush1.bf16.msra.mxu0 0
      %789 = vmatprep.subr.bf16.mxu0 0
      %790 = vmatpush1.bf16.msra.mxu0 0
      %791 = vmatprep.mubr.bf16.mxu0 0
      %792 = vmatmul.mubr.bf16.gmra.mrb[0].mxu0 %v757
      %v793 = vpop.f32.mrb[0].mxu0
      %v794 = vadd.f32 0.0, %v793
      %v795 = vpop.f32.mrb[0].mxu0
      %v796 = vpop.f32.mrb[0].mxu0
      %v797 = vadd.f32 0.0, %v796
      %v798 = vpop.f32.mrb[0].mxu0
      %799 = vdwg.mxu0
      %800 = vrot.lane.b32.xlu0 %v546, 64
      %v801 = vpop.permute.xlu0 %800
      %802 = vrot.lane.b32.xlu0 %v547, 64
      %v803 = vpop.permute.xlu0 %802
      %v805 = vsel %vm556, %v801, 0
      %v808 = vsel %vm556, %v803, 0
      %810 = vmatprep.subr.bf16.mxu0 0
      %811 = vmatpush1.bf16.xpose.msra.mxu0 %v808
      %812 = vmatprep.subr.bf16.mxu0 0
      %813 = vmatpush1.bf16.xpose.msra.mxu0 0
      %814 = vmatprep.subr.bf16.mxu0 0
      %815 = vmatpush1.bf16.xpose.msra.mxu0 0
      %816 = vmatprep.subr.bf16.mxu0 0
      %817 = vmatpush1.bf16.xpose.msra.mxu0 0
      %818 = vmatprep.subr.bf16.mxu0 0
      %819 = vmatpush1.bf16.xpose.msra.mxu0 0
      %820 = vmatprep.subr.bf16.mxu0 0
      %821 = vmatpush1.bf16.xpose.msra.mxu0 0
      %822 = vmatprep.subr.bf16.mxu0 0
      %823 = vmatpush1.bf16.xpose.msra.mxu0 0
      %824 = vmatprep.subr.bf16.mxu0 0
      %825 = vmatpush1.bf16.xpose.msra.mxu0 0
      %826 = vmatprep.subr.bf16.mxu0 0
      %827 = vmatpush1.bf16.xpose.msra.mxu0 0
      %828 = vmatprep.subr.bf16.mxu0 0
      %829 = vmatpush1.bf16.xpose.msra.mxu0 0
      %830 = vmatprep.subr.bf16.mxu0 0
      %831 = vmatpush1.bf16.xpose.msra.mxu0 0
      %832 = vmatprep.subr.bf16.mxu0 0
      %833 = vmatpush1.bf16.xpose.msra.mxu0 0
      %834 = vmatprep.subr.bf16.mxu0 0
      %835 = vmatpush1.bf16.xpose.msra.mxu0 0
      %836 = vmatprep.subr.bf16.mxu0 0
      %837 = vmatpush1.bf16.xpose.msra.mxu0 0
      %838 = vmatprep.subr.bf16.mxu0 0
      %839 = vmatpush1.bf16.xpose.msra.mxu0 0
      %840 = vmatprep.subr.bf16.mxu0 0
      %841 = vmatpush1.bf16.xpose.msra.mxu0 0
      %842 = vmatprep.mubr.bf16.mxu0 0
      %843 = vmatmul.mubr.bf16.gmra.mrb[0].mxu0 %v805
      %v844 = vpop.f32.mrb[0].mxu0
      %v845 = vadd.f32 0.0, %v844
      %v846 = vpop.f32.mrb[0].mxu0
      %v847 = vpop.f32.mrb[0].mxu0
      %v848 = vadd.f32 0.0, %v847
      %v849 = vpop.f32.mrb[0].mxu0
      %850 = vdwg.mxu0
      %v851 = vsel %vm554, %v845, -1e+09
      %v852 = vsel %vm555, %v848, -1e+09
      %v853 = vsel %vm606, %v851, -inf
      %854 = vmax.xlane.f32.xlu0 %v853
      %v855 = vpop.xlane.xlu0 %854
      %v856 = vsel %vm606, %v852, -inf
      %857 = vmax.xlane.f32.xlu0 %v856
      %v858 = vpop.xlane.xlu0 %857
      %v859 = vsub.f32 %v851, %v855
      %v860 = vsub.f32 %v852, %v858
      %v861 = vmul.f32 %v859, 1.442695
      %v862 = vpow.pop %v861
      %v863 = vmul.f32 %v860, 1.442695
      %v864 = vpow.pop %v863
      %v865 = vsel %vm606, %v862, 0.0
      %866 = vadd.xlane.f32.xlu0 %v865
      %v867 = vpop.xlane.xlu0 %866
      %v868 = vsel %vm606, %v864, 0.0
      %869 = vadd.xlane.f32.xlu0 %v868
      %v870 = vpop.xlane.xlu0 %869
      %v871 = vrcp.pop %v867
      %v872 = vrcp.pop %v870
      %v873 = vmul.f32 %v862, %v871
      %v874 = vmul.f32 %v864, %v872
      %v875 = vpack.c.bf16 %v874, %v873
      %876 = vrot.lane.b32.xlu0 %v548, 64
      %v877 = vpop.permute.xlu0 %876
      %v880 = vsel %vm606, %v875, 0
      %882 = vmatprep.subr.bf16.mxu0 0
      %883 = vmatpush1.bf16.msra.mxu0 %v877
      %884 = vmatprep.subr.bf16.mxu0 0
      %885 = vmatpush1.bf16.msra.mxu0 0
      %886 = vmatprep.subr.bf16.mxu0 0
      %887 = vmatpush1.bf16.msra.mxu0 0
      %888 = vmatprep.subr.bf16.mxu0 0
      %889 = vmatpush1.bf16.msra.mxu0 0
      %890 = vmatprep.subr.bf16.mxu0 0
      %891 = vmatpush1.bf16.msra.mxu0 0
      %892 = vmatprep.subr.bf16.mxu0 0
      %893 = vmatpush1.bf16.msra.mxu0 0
      %894 = vmatprep.subr.bf16.mxu0 0
      %895 = vmatpush1.bf16.msra.mxu0 0
      %896 = vmatprep.subr.bf16.mxu0 0
      %897 = vmatpush1.bf16.msra.mxu0 0
      %898 = vmatprep.subr.bf16.mxu0 0
      %899 = vmatpush1.bf16.msra.mxu0 0
      %900 = vmatprep.subr.bf16.mxu0 0
      %901 = vmatpush1.bf16.msra.mxu0 0
      %902 = vmatprep.subr.bf16.mxu0 0
      %903 = vmatpush1.bf16.msra.mxu0 0
      %904 = vmatprep.subr.bf16.mxu0 0
      %905 = vmatpush1.bf16.msra.mxu0 0
      %906 = vmatprep.subr.bf16.mxu0 0
      %907 = vmatpush1.bf16.msra.mxu0 0
      %908 = vmatprep.subr.bf16.mxu0 0
      %909 = vmatpush1.bf16.msra.mxu0 0
      %910 = vmatprep.subr.bf16.mxu0 0
      %911 = vmatpush1.bf16.msra.mxu0 0
      %912 = vmatprep.subr.bf16.mxu0 0
      %913 = vmatpush1.bf16.msra.mxu0 0
      %914 = vmatprep.mubr.bf16.mxu0 0
      %915 = vmatmul.mubr.bf16.gmra.mrb[0].mxu0 %v880
      %v916 = vpop.f32.mrb[0].mxu0
      %v917 = vadd.f32 0.0, %v916
      %v918 = vpop.f32.mrb[0].mxu0
      %v919 = vpop.f32.mrb[0].mxu0
      %v920 = vadd.f32 0.0, %v919
      %v921 = vpop.f32.mrb[0].mxu0
      %922 = vdwg.mxu0
      %923 = vrot.lane.b32.xlu0 %v546, 32
      %v924 = vpop.permute.xlu0 %923
      %925 = vrot.lane.b32.xlu0 %v547, 32
      %v926 = vpop.permute.xlu0 %925
      %v928 = vsel %vm556, %v924, 0
      %v931 = vsel %vm556, %v926, 0
      %933 = vmatprep.subr.bf16.mxu0 0
      %934 = vmatpush1.bf16.xpose.msra.mxu0 %v931
      %935 = vmatprep.subr.bf16.mxu0 0
      %936 = vmatpush1.bf16.xpose.msra.mxu0 0
      %937 = vmatprep.subr.bf16.mxu0 0
      %938 = vmatpush1.bf16.xpose.msra.mxu0 0
      %939 = vmatprep.subr.bf16.mxu0 0
      %940 = vmatpush1.bf16.xpose.msra.mxu0 0
      %941 = vmatprep.subr.bf16.mxu0 0
      %942 = vmatpush1.bf16.xpose.msra.mxu0 0
      %943 = vmatprep.subr.bf16.mxu0 0
      %944 = vmatpush1.bf16.xpose.msra.mxu0 0
      %945 = vmatprep.subr.bf16.mxu0 0
      %946 = vmatpush1.bf16.xpose.msra.mxu0 0
      %947 = vmatprep.subr.bf16.mxu0 0
      %948 = vmatpush1.bf16.xpose.msra.mxu0 0
      %949 = vmatprep.subr.bf16.mxu0 0
      %950 = vmatpush1.bf16.xpose.msra.mxu0 0
      %951 = vmatprep.subr.bf16.mxu0 0
      %952 = vmatpush1.bf16.xpose.msra.mxu0 0
      %953 = vmatprep.subr.bf16.mxu0 0
      %954 = vmatpush1.bf16.xpose.msra.mxu0 0
      %955 = vmatprep.subr.bf16.mxu0 0
      %956 = vmatpush1.bf16.xpose.msra.mxu0 0
      %957 = vmatprep.subr.bf16.mxu0 0
      %958 = vmatpush1.bf16.xpose.msra.mxu0 0
      %959 = vmatprep.subr.bf16.mxu0 0
      %960 = vmatpush1.bf16.xpose.msra.mxu0 0
      %961 = vmatprep.subr.bf16.mxu0 0
      %962 = vmatpush1.bf16.xpose.msra.mxu0 0
      %963 = vmatprep.subr.bf16.mxu0 0
      %964 = vmatpush1.bf16.xpose.msra.mxu0 0
      %965 = vmatprep.mubr.bf16.mxu0 0
      %966 = vmatmul.mubr.bf16.gmra.mrb[0].mxu0 %v928
      %v967 = vpop.f32.mrb[0].mxu0
      %v968 = vadd.f32 0.0, %v967
      %v969 = vpop.f32.mrb[0].mxu0
      %v970 = vpop.f32.mrb[0].mxu0
      %v971 = vadd.f32 0.0, %v970
      %v972 = vpop.f32.mrb[0].mxu0
      %973 = vdwg.mxu0
      %v974 = vsel %vm554, %v968, -1e+09
      %v975 = vsel %vm555, %v971, -1e+09
      %v976 = vsel %vm606, %v974, -inf
      %977 = vmax.xlane.f32.xlu0 %v976
      %v978 = vpop.xlane.xlu0 %977
      %v979 = vsel %vm606, %v975, -inf
      %980 = vmax.xlane.f32.xlu0 %v979
      %v981 = vpop.xlane.xlu0 %980
      %v982 = vsub.f32 %v974, %v978
      %v983 = vsub.f32 %v975, %v981
      %v984 = vmul.f32 %v982, 1.442695
      %v985 = vpow.pop %v984
      %v986 = vmul.f32 %v983, 1.442695
      %v987 = vpow.pop %v986
      %v988 = vsel %vm606, %v985, 0.0
      %989 = vadd.xlane.f32.xlu0 %v988
      %v990 = vpop.xlane.xlu0 %989
      %v991 = vsel %vm606, %v987, 0.0
      %992 = vadd.xlane.f32.xlu0 %v991
      %v993 = vpop.xlane.xlu0 %992
      %v994 = vrcp.pop %v990
      %v995 = vrcp.pop %v993
      %v996 = vmul.f32 %v985, %v994
      %v997 = vmul.f32 %v987, %v995
      %v998 = vpack.c.bf16 %v997, %v996
      %999 = vrot.lane.b32.xlu0 %v548, 32
      %v1000 = vpop.permute.xlu0 %999
      %v1003 = vsel %vm606, %v998, 0
      %1005 = vmatprep.subr.bf16.mxu0 0
      %1006 = vmatpush1.bf16.msra.mxu0 %v1000
      %1007 = vmatprep.subr.bf16.mxu0 0
      %1008 = vmatpush1.bf16.msra.mxu0 0
      %1009 = vmatprep.subr.bf16.mxu0 0
      %1010 = vmatpush1.bf16.msra.mxu0 0
      %1011 = vmatprep.subr.bf16.mxu0 0
      %1012 = vmatpush1.bf16.msra.mxu0 0
      %1013 = vmatprep.subr.bf16.mxu0 0
      %1014 = vmatpush1.bf16.msra.mxu0 0
      %1015 = vmatprep.subr.bf16.mxu0 0
      %1016 = vmatpush1.bf16.msra.mxu0 0
      %1017 = vmatprep.subr.bf16.mxu0 0
      %1018 = vmatpush1.bf16.msra.mxu0 0
      %1019 = vmatprep.subr.bf16.mxu0 0
      %1020 = vmatpush1.bf16.msra.mxu0 0
      %1021 = vmatprep.subr.bf16.mxu0 0
      %1022 = vmatpush1.bf16.msra.mxu0 0
      %1023 = vmatprep.subr.bf16.mxu0 0
      %1024 = vmatpush1.bf16.msra.mxu0 0
      %1025 = vmatprep.subr.bf16.mxu0 0
      %1026 = vmatpush1.bf16.msra.mxu0 0
      %1027 = vmatprep.subr.bf16.mxu0 0
      %1028 = vmatpush1.bf16.msra.mxu0 0
      %1029 = vmatprep.subr.bf16.mxu0 0
      %1030 = vmatpush1.bf16.msra.mxu0 0
      %1031 = vmatprep.subr.bf16.mxu0 0
      %1032 = vmatpush1.bf16.msra.mxu0 0
      %1033 = vmatprep.subr.bf16.mxu0 0
      %1034 = vmatpush1.bf16.msra.mxu0 0
      %1035 = vmatprep.subr.bf16.mxu0 0
      %1036 = vmatpush1.bf16.msra.mxu0 0
      %1037 = vmatprep.mubr.bf16.mxu0 0
      %1038 = vmatmul.mubr.bf16.gmra.mrb[0].mxu0 %v1003
      %v1039 = vpop.f32.mrb[0].mxu0
      %v1040 = vadd.f32 0.0, %v1039
      %v1041 = vpop.f32.mrb[0].mxu0
      %v1042 = vpop.f32.mrb[0].mxu0
      %v1043 = vadd.f32 0.0, %v1042
      %v1044 = vpop.f32.mrb[0].mxu0
      %1045 = vdwg.mxu0
      %1048 = vrot.lane.b32.xlu0 %v794, 32
      %v1049 = vpop.permute.xlu0 %1048
      %1050 = vrot.lane.b32.xlu0 %v797, 32
      %v1051 = vpop.permute.xlu0 %1050
      %1056 = vrot.lane.b32.xlu0 %v917, 64
      %v1057 = vpop.permute.xlu0 %1056
      %1058 = vrot.lane.b32.xlu0 %v920, 64
      %v1059 = vpop.permute.xlu0 %1058
      %1064 = vrot.lane.b32.xlu0 %v1040, 96
      %v1065 = vpop.permute.xlu0 %1064
      %1066 = vrot.lane.b32.xlu0 %v1043, 96
      %v1067 = vpop.permute.xlu0 %1066
      %v1070 = vsel %vm556, %v668, %v1049
      %v1071 = vsel %vm556, %v671, %v1051
      %vm1072 = vcmask 523264
      %v1073 = vsel %vm1072, %v1070, %v1057
      %v1074 = vsel %vm1072, %v1071, %v1059
      %vm1075 = vcmask 785408
      %v1076 = vsel %vm1075, %v1073, %v1065
      %v1077 = vsel %vm1075, %v1074, %v1067
      %v1078 = vpack.c.bf16 %v1077, %v1076
      %v1079 = vld [vmem:[%s3] sm:$0xf]
      %v1080 = vld [vmem:[%s3 + $0x4] sm:$0xf]
      %v1081 = vld [vmem:[%s3 + $0x8] sm:$0xf]
      %v1082 = vld [vmem:[%s3 + $0xc] sm:$0xf]
      %v1083 = vld [vmem:[%s3 + $0x10] sm:$0xf]
      %v1084 = vld [vmem:[%s3 + $0x14] sm:$0xf]
      %v1085 = vld [vmem:[%s3 + $0x18] sm:$0xf]
      %v1086 = vld [vmem:[%s3 + $0x1c] sm:$0xf]
      %v1087 = vld [vmem:[%s3 + $0x20] sm:$0xf]
      %v1088 = vld [vmem:[%s3 + $0x24] sm:$0xf]
      %v1089 = vld [vmem:[%s3 + $0x28] sm:$0xf]
      %v1090 = vld [vmem:[%s3 + $0x2c] sm:$0xf]
      %v1091 = vld [vmem:[%s3 + $0x30] sm:$0xf]
      %v1092 = vld [vmem:[%s3 + $0x34] sm:$0xf]
      %v1093 = vld [vmem:[%s3 + $0x38] sm:$0xf]
      %v1094 = vld [vmem:[%s3 + $0x3c] sm:$0xf]
      %v1095 = vld [vmem:[%s4] sm:$0x1]
      %v1097 = vlaneseq
      %v1098 = vshrl.u32 %v1097, 7
      %v1099 = vsub.s32 0, %v1098
      %v1100 = vrot.slane %v1095, %v1099
      %v1118 = vunpack.c.l.b16 %v1079
      %v1119 = vunpack.c.l.b16 %v1080
      %v1120 = vunpack.c.l.b16 %v1081
      %v1121 = vunpack.c.l.b16 %v1082
      %v1122 = vunpack.c.l.b16 %v1083
      %v1123 = vunpack.c.l.b16 %v1084
      %v1124 = vunpack.c.l.b16 %v1085
      %v1125 = vunpack.c.l.b16 %v1086
      %v1126 = vunpack.c.l.b16 %v1087
      %v1127 = vunpack.c.l.b16 %v1088
      %v1128 = vunpack.c.l.b16 %v1089
      %v1129 = vunpack.c.l.b16 %v1090
      %v1130 = vunpack.c.l.b16 %v1091
      %v1131 = vunpack.c.l.b16 %v1092
      %v1132 = vunpack.c.l.b16 %v1093
      %v1133 = vunpack.c.l.b16 %v1094
      %v1134 = vpack.c.b16 %v1119, %v1118
      %v1135 = vpack.c.b16 %v1121, %v1120
      %v1136 = vpack.c.b16 %v1123, %v1122
      %v1137 = vpack.c.b16 %v1125, %v1124
      %v1138 = vpack.c.b16 %v1127, %v1126
      %v1139 = vpack.c.b16 %v1129, %v1128
      %v1140 = vpack.c.b16 %v1131, %v1130
      %v1141 = vpack.c.b16 %v1133, %v1132
      %1150 = vmatprep.subr.bf16.mxu0 0
      %1151 = vmatpush1.bf16.msra.mxu0 %v1134
      %1152 = vmatprep.subr.bf16.mxu0 0
      %1153 = vmatpush1.bf16.msra.mxu0 %v1135
      %1154 = vmatprep.subr.bf16.mxu0 0
      %1155 = vmatpush1.bf16.msra.mxu0 %v1136
      %1156 = vmatprep.subr.bf16.mxu0 0
      %1157 = vmatpush1.bf16.msra.mxu0 %v1137
      %1158 = vmatprep.subr.bf16.mxu0 0
      %1159 = vmatpush1.bf16.msra.mxu0 %v1138
      %1160 = vmatprep.subr.bf16.mxu0 0
      %1161 = vmatpush1.bf16.msra.mxu0 %v1139
      %1162 = vmatprep.subr.bf16.mxu0 0
      %1163 = vmatpush1.bf16.msra.mxu0 %v1140
      %1164 = vmatprep.subr.bf16.mxu0 0
      %1165 = vmatpush1.bf16.msra.mxu0 %v1141
      %1166 = vmatprep.subr.bf16.mxu0 0
      %1167 = vmatpush1.bf16.msra.mxu0 0
      %1168 = vmatprep.subr.bf16.mxu0 0
      %1169 = vmatpush1.bf16.msra.mxu0 0
      %1170 = vmatprep.subr.bf16.mxu0 0
      %1171 = vmatpush1.bf16.msra.mxu0 0
      %1172 = vmatprep.subr.bf16.mxu0 0
      %1173 = vmatpush1.bf16.msra.mxu0 0
      %1174 = vmatprep.subr.bf16.mxu0 0
      %1175 = vmatpush1.bf16.msra.mxu0 0
      %1176 = vmatprep.subr.bf16.mxu0 0
      %1177 = vmatpush1.bf16.msra.mxu0 0
      %1178 = vmatprep.subr.bf16.mxu0 0
      %1179 = vmatpush1.bf16.msra.mxu0 0
      %1180 = vmatprep.subr.bf16.mxu0 0
      %1181 = vmatpush1.bf16.msra.mxu0 0
      %1182 = vmatprep.mubr.bf16.mxu0 0
      %1183 = vmatmul.mubr.bf16.gmra.mrb[0].mxu0 %v1078
      %v1184 = vpop.f32.mrb[0].mxu0
      %v1185 = vadd.f32 %v1100, %v1184
      %v1186 = vpop.f32.mrb[0].mxu0
      %v1187 = vpop.f32.mrb[0].mxu0
      %v1188 = vadd.f32 %v1100, %v1187
      %v1189 = vpop.f32.mrb[0].mxu0
      %1190 = vdwg.mxu0
      %v1191 = vadd.f32 %v1185, %v280
      %v1192 = vadd.f32 %v1188, %v281
      %v1193 = vld [vmem:[%s5] sm:$0x1]
      %v1194 = vld [vmem:[%s6] sm:$0x1]
      %1195 = vadd.xlane.f32.xlu0 %v1191
      %v1196 = vpop.xlane.xlu0 %1195
      %1197 = vadd.xlane.f32.xlu0 %v1192
      %v1198 = vpop.xlane.xlu0 %1197
      %v1199 = vrcp.pop 128.0
      %v1200 = vmul.f32 %v1196, %v1199
      %v1201 = vmul.f32 %v1198, %v1199
      %v1202 = vsub.f32 %v1191, %v1200
      %v1203 = vsub.f32 %v1192, %v1201
      %v1204 = vmul.f32 %v1202, %v1202
      %v1205 = vmul.f32 %v1203, %v1203
      %1206 = vadd.xlane.f32.xlu0 %v1204
      %v1207 = vpop.xlane.xlu0 %1206
      %1208 = vadd.xlane.f32.xlu0 %v1205
      %v1209 = vpop.xlane.xlu0 %1208
      %v1210 = vmul.f32 %v1207, %v1199
      %v1211 = vmul.f32 %v1209, %v1199
      %v1212 = vadd.f32 %v1210, 1e-05
      %v1213 = vadd.f32 %v1211, 1e-05
      %v1214 = vrsqrt.pop %v1212
      %v1215 = vrsqrt.pop %v1213
      %v1216 = vmul.f32 %v1202, %v1214
      %v1217 = vmul.f32 %v1203, %v1215
      %v1219 = vlaneseq
      %v1220 = vshrl.u32 %v1219, 7
      %v1221 = vsub.s32 0, %v1220
      %v1222 = vrot.slane %v1193, %v1221
      %v1224 = vmul.f32 %v1216, %v1222
      %v1225 = vmul.f32 %v1217, %v1222
      %v1227 = vlaneseq
      %v1228 = vshrl.u32 %v1227, 7
      %v1229 = vsub.s32 0, %v1228
      %v1230 = vrot.slane %v1194, %v1229
      %v1232 = vadd.f32 %v1224, %v1230
      %v1233 = vadd.f32 %v1225, %v1230
      %1234 = vst [vmem:[%s278] sm:$0xff] %v1232
      %1235 = vst [vmem:[%s278 + $0x8] sm:$0xff] %v1233
      %p1236 = scmp.lt.s32.totalorder %s18, 1
      %s1237 = scalar_select %p1236, %s18, 1
      %s1238 = smul.addr %s1237, 2
      %s1239 = smul.addr %s1238, 8
      %s1240 = scalar_lea.vmem %s7, %s1239
      // Predicated region
      $region49: #{aggregation_decoder_layer_forward.3} parent=47 // pred_check
        %p1241 = pneg %p188
      $region50: #{aggregation_decoder_layer_forward.3} parent=47 // pred_check_branch
        %1243 = sbr.rel (%p1241) target = $region52
      $region51: #{aggregation_decoder_layer_forward.3} parent=47 // pred_region
        _
      $region52: #{aggregation_decoder_layer_forward.3} parent=47 // pred_fallthru
        _
    $region48: #{aggregation_decoder_layer_forward.3} parent=5 // pred_fallthru
      _
    %p1244 = scmp.le.s32.totalorder 2, %s13
    // Predicated region
    $region53: #{aggregation_decoder_layer_forward.3} parent=5 // pred_check
      %p1245 = pneg %p1244
    $region54: #{aggregation_decoder_layer_forward.3} parent=5 // pred_check_branch
      %1247 = sbr.rel (%p1245) target = $region56
    $region55: #{aggregation_decoder_layer_forward.3} parent=5 // pred_region
      %s1248 = ssub.s32 %s13, 2
      // Predicated region
      $region57: #{aggregation_decoder_layer_forward.3} parent=55 // pred_check
        %p1249 = pneg %p194
      $region58: #{aggregation_decoder_layer_forward.3} parent=55 // pred_check_branch
        %1251 = sbr.rel (%p1249) target = $region60
      $region59: #{aggregation_decoder_layer_forward.3} parent=55 // pred_region
        %p1252 = scmp.lt.s32.totalorder %s19, 1
        %s1253 = scalar_select %p1252, %s19, 1
        %s1254 = smul.addr %s1253, 2
        %s1255 = smul.addr %s1254, 8
        %s1256 = scalar_lea.vmem %s7, %s1255
      $region60: #{aggregation_decoder_layer_forward.3} parent=55 // pred_fallthru
        _
    $region56: #{aggregation_decoder_layer_forward.3} parent=5 // pred_fallthru
      _
  $region6: #{aggregation_decoder_layer_forward.3} parent=0 // loop_footer
    %s17 = sadd.s32 1, %s13
  $region7: #{aggregation_decoder_layer_forward.3} parent=0 // loop_footer_branch
    %12 = sbr.rel target = $region3
  $region8: #{aggregation_decoder_layer_forward.3} parent=0 // loop_exit
    _

// kernel: aggregation_decoder_layer_forward.5
$region0: #{aggregation_decoder_layer_forward.5}
  #allocation0 [shape = 'u32[]', space=smem, size = 0x4, offset = 0x4, fixed_abs, tag = 'smem constant byte address 0x4 - core index']
  #allocation1 [shape = 'u32[144,128]{1,0:T(1,128)}', space=vmem, size = 0x12000, scoped, tag = 'internal scratch']
  %s0 = inlined_call_operand.vmem [shape: f32[2,16,128], index: 0, kind: input, shape index: {}]
  %s1 = inlined_call_operand.vmem [shape: f32[2,16,128], index: 1, kind: input, shape index: {}]
  %s2 = inlined_call_operand.vmem [shape: bf16[128,128], index: 2, kind: input, shape index: {}]
  %s3 = inlined_call_operand.vmem [shape: f32[1,128], index: 3, kind: input, shape index: {}]
  %s4 = inlined_call_operand.vmem [shape: bf16[128,256], index: 4, kind: input, shape index: {}]
  %s5 = inlined_call_operand.vmem [shape: f32[1,256], index: 5, kind: input, shape index: {}]
  %s6 = inlined_call_operand.vmem [shape: bf16[128,128], index: 6, kind: input, shape index: {}]
  %s7 = inlined_call_operand.vmem [shape: f32[1,128], index: 7, kind: input, shape index: {}]
  %s8 = inlined_call_operand.vmem [shape: f32[1,128], index: 8, kind: input, shape index: {}]
  %s9 = inlined_call_operand.vmem [shape: f32[1,128], index: 9, kind: input, shape index: {}]
  %s10 = inlined_call_operand.vmem [shape: bf16[128,256], index: 10, kind: input, shape index: {}]
  %s11 = inlined_call_operand.vmem [shape: f32[1,256], index: 11, kind: input, shape index: {}]
  %s12 = inlined_call_operand.vmem [shape: bf16[256,128], index: 12, kind: input, shape index: {}]
  %s13 = inlined_call_operand.vmem [shape: f32[1,128], index: 13, kind: input, shape index: {}]
  %s14 = inlined_call_operand.vmem [shape: f32[1,128], index: 14, kind: input, shape index: {}]
  %s15 = inlined_call_operand.vmem [shape: f32[1,128], index: 15, kind: input, shape index: {}]
  %s16 = inlined_call_operand.vmem [shape: f32[2,16,128], index: 16, kind: output, shape index: {0}]
  %s17 = inlined_call_operand.hbm [shape: f32[2,16,16], index: 17, kind: output, shape index: {1}]
  %18 = xla_tuple %s16, %s17
  %s19 = sld [smem:[#allocation0]]
  $region105: #{aggregation_decoder_layer_forward.5} parent=0
    _
  %s21 = ssub.s32 1, %s19
  %s22 = scalar_select 0, %s21, %s19
  $region1: #{aggregation_decoder_layer_forward.5} parent=0
    #allocation2 [shape = 'u8[16384]{0}', space=vmem, size = 0x4000, scoped, tag = 'output window, operand 1']
    #allocation3 [shape = 's32[2]{0}', space=sflag, size = 0x8, scoped, tag = 'scoped memory for aggregation_decoder_layer_forward.5']
    %23 = vsyncpa [#allocation3], 0
    %s24 = scalar_lea.sflag [#allocation3], 1
    %25 = vsyncpa %s24, 0
    loop: start=0, step=1, limit=4
    $region2: #{aggregation_decoder_layer_forward.5} parent=1 // loop_pre_header
      _
    $region3: #{aggregation_decoder_layer_forward.5} parent=1 // loop_header
      %s27 = sphi 0, %s31
      %p28 = scmp.ge.s32.totalorder %s27, 4
      %s37 = sphi 0, %s39
      %s40 = sphi 0, %s37
      %s41 = sphi 0, %s40
      %s57 = sphi 0, %s41
      %s63 = sphi 0, %s65
      %s66 = sphi 0, %s63
      %s67 = sphi 0, %s66
      %s83 = sphi 0, %s67
      %s87 = sphi 0, %s87
      %s89 = sphi 0, %s87
      %s90 = sphi 0, %s89
      %s104 = sphi 0, %s90
      %s108 = sphi 0, %s108
      %s110 = sphi 0, %s108
      %s111 = sphi 0, %s110
      %s125 = sphi 0, %s111
      %s129 = sphi 0, %s129
      %s131 = sphi 0, %s129
      %s132 = sphi 0, %s131
      %s146 = sphi 0, %s132
      %s150 = sphi 0, %s150
      %s152 = sphi 0, %s150
      %s153 = sphi 0, %s152
      %s167 = sphi 0, %s153
      %s171 = sphi 0, %s171
      %s173 = sphi 0, %s171
      %s174 = sphi 0, %s173
      %s188 = sphi 0, %s174
      %s192 = sphi 0, %s192
      %s194 = sphi 0, %s192
      %s195 = sphi 0, %s194
      %s209 = sphi 0, %s195
      %s213 = sphi 0, %s213
      %s215 = sphi 0, %s213
      %s216 = sphi 0, %s215
      %s230 = sphi 0, %s216
      %s234 = sphi 0, %s234
      %s236 = sphi 0, %s234
      %s237 = sphi 0, %s236
      %s251 = sphi 0, %s237
      %s255 = sphi 0, %s255
      %s257 = sphi 0, %s255
      %s258 = sphi 0, %s257
      %s272 = sphi 0, %s258
      %s276 = sphi 0, %s276
      %s278 = sphi 0, %s276
      %s279 = sphi 0, %s278
      %s293 = sphi 0, %s279
      %s297 = sphi 0, %s297
      %s299 = sphi 0, %s297
      %s300 = sphi 0, %s299
      %s314 = sphi 0, %s300
      %s318 = sphi 0, %s318
      %s320 = sphi 0, %s318
      %s321 = sphi 0, %s320
      %s335 = sphi 0, %s321
      %s339 = sphi 0, %s339
      %s341 = sphi 0, %s339
      %s342 = sphi 0, %s341
      %s356 = sphi 0, %s342
      %s360 = sphi 0, %s360
      %s362 = sphi 0, %s360
      %s363 = sphi 0, %s362
      %s377 = sphi 0, %s363
      %s383 = sphi 0, %s385
      %s386 = sphi 0, %s383
      %s387 = sphi 0, %s386
      %s403 = sphi 0, %s387
      %s409 = sphi 0, %s411
      %s412 = sphi 0, %s409
      %s413 = sphi 0, %s412
      %s429 = sphi 0, %s413
    $region4: #{aggregation_decoder_layer_forward.5} parent=1 // loop_header_branch
      %30 = sbr.rel (%p28) target = $region8
    $region5: #{aggregation_decoder_layer_forward.5} parent=1 // loop_body
      %s32 = ssub.s32 %s27, 1
      %s33 = ssub.s32 %s27, 2
      %s34 = sadd.s32 %s27, 1
      %s35 = ssub.s32 %s27, %s34
      %p36 = scmp.eq.s32.totalorder %s35, 0
      %s38 = sadd.s32 %s37, 1
      %s39 = scalar_select %p36, %s37, %s38
      %p42 = pneg %p36
      %p43 = scmp.eq.s32.totalorder %s27, 1
      %p44 = por %p42, %p43
      %p45 = scmp.ne.s32.totalorder %s37, %s40
      %p46 = scmp.eq.s32.totalorder %s27, 0
      %p47 = por %p45, %p46
      %p48 = scmp.ne.s32.totalorder %s37, %s40
      %p49 = scmp.eq.s32.totalorder %s32, 1
      %p50 = por %p48, %p49
      %p51 = scmp.ne.s32.totalorder %s40, %s41
      %p52 = scmp.eq.s32.totalorder %s32, 0
      %p53 = por %p51, %p52
      %p54 = scmp.ne.s32.totalorder %s40, %s41
      %p55 = scmp.eq.s32.totalorder %s33, 1
      %p56 = por %p54, %p55
      %p58 = scmp.ne.s32.totalorder %s41, %s57
      %p59 = scmp.eq.s32.totalorder %s33, 0
      %p60 = por %p58, %p59
      %s61 = ssub.s32 %s27, %s34
      %p62 = scmp.eq.s32.totalorder %s61, 0
      %s64 = sadd.s32 %s63, 1
      %s65 = scalar_select %p62, %s63, %s64
      %p68 = pneg %p62
      %p69 = scmp.eq.s32.totalorder %s27, 1
      %p70 = por %p68, %p69
      %p71 = scmp.ne.s32.totalorder %s63, %s66
      %p72 = scmp.eq.s32.totalorder %s27, 0
      %p73 = por %p71, %p72
      %p74 = scmp.ne.s32.totalorder %s63, %s66
      %p75 = scmp.eq.s32.totalorder %s32, 1
      %p76 = por %p74, %p75
      %p77 = scmp.ne.s32.totalorder %s66, %s67
      %p78 = scmp.eq.s32.totalorder %s32, 0
      %p79 = por %p77, %p78
      %p80 = scmp.ne.s32.totalorder %s66, %s67
      %p81 = scmp.eq.s32.totalorder %s33, 1
      %p82 = por %p80, %p81
      %p84 = scmp.ne.s32.totalorder %s67, %s83
      %p85 = scmp.eq.s32.totalorder %s33, 0
      %p86 = por %p84, %p85
      %s88 = sadd.s32 %s87, 1
      %p91 = scmp.eq.s32.totalorder %s27, 1
      %p92 = scmp.ne.s32.totalorder %s87, %s89
      %p93 = scmp.eq.s32.totalorder %s27, 0
      %p94 = por %p92, %p93
      %p95 = scmp.ne.s32.totalorder %s87, %s89
      %p96 = scmp.eq.s32.totalorder %s32, 1
      %p97 = por %p95, %p96
      %p98 = scmp.ne.s32.totalorder %s89, %s90
      %p99 = scmp.eq.s32.totalorder %s32, 0
      %p100 = por %p98, %p99
      %p101 = scmp.ne.s32.totalorder %s89, %s90
      %p102 = scmp.eq.s32.totalorder %s33, 1
      %p103 = por %p101, %p102
      %p105 = scmp.ne.s32.totalorder %s90, %s104
      %p106 = scmp.eq.s32.totalorder %s33, 0
      %p107 = por %p105, %p106
      %s109 = sadd.s32 %s108, 1
      %p112 = scmp.eq.s32.totalorder %s27, 1
      %p113 = scmp.ne.s32.totalorder %s108, %s110
      %p114 = scmp.eq.s32.totalorder %s27, 0
      %p115 = por %p113, %p114
      %p116 = scmp.ne.s32.totalorder %s108, %s110
      %p117 = scmp.eq.s32.totalorder %s32, 1
      %p118 = por %p116, %p117
      %p119 = scmp.ne.s32.totalorder %s110, %s111
      %p120 = scmp.eq.s32.totalorder %s32, 0
      %p121 = por %p119, %p120
      %p122 = scmp.ne.s32.totalorder %s110, %s111
      %p123 = scmp.eq.s32.totalorder %s33, 1
      %p124 = por %p122, %p123
      %p126 = scmp.ne.s32.totalorder %s111, %s125
      %p127 = scmp.eq.s32.totalorder %s33, 0
      %p128 = por %p126, %p127
      %s130 = sadd.s32 %s129, 1
      %p133 = scmp.eq.s32.totalorder %s27, 1
      %p134 = scmp.ne.s32.totalorder %s129, %s131
      %p135 = scmp.eq.s32.totalorder %s27, 0
      %p136 = por %p134, %p135
      %p137 = scmp.ne.s32.totalorder %s129, %s131
      %p138 = scmp.eq.s32.totalorder %s32, 1
      %p139 = por %p137, %p138
      %p140 = scmp.ne.s32.totalorder %s131, %s132
      %p141 = scmp.eq.s32.totalorder %s32, 0
      %p142 = por %p140, %p141
      %p143 = scmp.ne.s32.totalorder %s131, %s132
      %p144 = scmp.eq.s32.totalorder %s33, 1
      %p145 = por %p143, %p144
      %p147 = scmp.ne.s32.totalorder %s132, %s146
      %p148 = scmp.eq.s32.totalorder %s33, 0
      %p149 = por %p147, %p148
      %s151 = sadd.s32 %s150, 1
      %p154 = scmp.eq.s32.totalorder %s27, 1
      %p155 = scmp.ne.s32.totalorder %s150, %s152
      %p156 = scmp.eq.s32.totalorder %s27, 0
      %p157 = por %p155, %p156
      %p158 = scmp.ne.s32.totalorder %s150, %s152
      %p159 = scmp.eq.s32.totalorder %s32, 1
      %p160 = por %p158, %p159
      %p161 = scmp.ne.s32.totalorder %s152, %s153
      %p162 = scmp.eq.s32.totalorder %s32, 0
      %p163 = por %p161, %p162
      %p164 = scmp.ne.s32.totalorder %s152, %s153
      %p165 = scmp.eq.s32.totalorder %s33, 1
      %p166 = por %p164, %p165
      %p168 = scmp.ne.s32.totalorder %s153, %s167
      %p169 = scmp.eq.s32.totalorder %s33, 0
      %p170 = por %p168, %p169
      %s172 = sadd.s32 %s171, 1
      %p175 = scmp.eq.s32.totalorder %s27, 1
      %p176 = scmp.ne.s32.totalorder %s171, %s173
      %p177 = scmp.eq.s32.totalorder %s27, 0
      %p178 = por %p176, %p177
      %p179 = scmp.ne.s32.totalorder %s171, %s173
      %p180 = scmp.eq.s32.totalorder %s32, 1
      %p181 = por %p179, %p180
      %p182 = scmp.ne.s32.totalorder %s173, %s174
      %p183 = scmp.eq.s32.totalorder %s32, 0
      %p184 = por %p182, %p183
      %p185 = scmp.ne.s32.totalorder %s173, %s174
      %p186 = scmp.eq.s32.totalorder %s33, 1
      %p187 = por %p185, %p186
      %p189 = scmp.ne.s32.totalorder %s174, %s188
      %p190 = scmp.eq.s32.totalorder %s33, 0
      %p191 = por %p189, %p190
      %s193 = sadd.s32 %s192, 1
      %p196 = scmp.eq.s32.totalorder %s27, 1
      %p197 = scmp.ne.s32.totalorder %s192, %s194
      %p198 = scmp.eq.s32.totalorder %s27, 0
      %p199 = por %p197, %p198
      %p200 = scmp.ne.s32.totalorder %s192, %s194
      %p201 = scmp.eq.s32.totalorder %s32, 1
      %p202 = por %p200, %p201
      %p203 = scmp.ne.s32.totalorder %s194, %s195
      %p204 = scmp.eq.s32.totalorder %s32, 0
      %p205 = por %p203, %p204
      %p206 = scmp.ne.s32.totalorder %s194, %s195
      %p207 = scmp.eq.s32.totalorder %s33, 1
      %p208 = por %p206, %p207
      %p210 = scmp.ne.s32.totalorder %s195, %s209
      %p211 = scmp.eq.s32.totalorder %s33, 0
      %p212 = por %p210, %p211
      %s214 = sadd.s32 %s213, 1
      %p217 = scmp.eq.s32.totalorder %s27, 1
      %p218 = scmp.ne.s32.totalorder %s213, %s215
      %p219 = scmp.eq.s32.totalorder %s27, 0
      %p220 = por %p218, %p219
      %p221 = scmp.ne.s32.totalorder %s213, %s215
      %p222 = scmp.eq.s32.totalorder %s32, 1
      %p223 = por %p221, %p222
      %p224 = scmp.ne.s32.totalorder %s215, %s216
      %p225 = scmp.eq.s32.totalorder %s32, 0
      %p226 = por %p224, %p225
      %p227 = scmp.ne.s32.totalorder %s215, %s216
      %p228 = scmp.eq.s32.totalorder %s33, 1
      %p229 = por %p227, %p228
      %p231 = scmp.ne.s32.totalorder %s216, %s230
      %p232 = scmp.eq.s32.totalorder %s33, 0
      %p233 = por %p231, %p232
      %s235 = sadd.s32 %s234, 1
      %p238 = scmp.eq.s32.totalorder %s27, 1
      %p239 = scmp.ne.s32.totalorder %s234, %s236
      %p240 = scmp.eq.s32.totalorder %s27, 0
      %p241 = por %p239, %p240
      %p242 = scmp.ne.s32.totalorder %s234, %s236
      %p243 = scmp.eq.s32.totalorder %s32, 1
      %p244 = por %p242, %p243
      %p245 = scmp.ne.s32.totalorder %s236, %s237
      %p246 = scmp.eq.s32.totalorder %s32, 0
      %p247 = por %p245, %p246
      %p248 = scmp.ne.s32.totalorder %s236, %s237
      %p249 = scmp.eq.s32.totalorder %s33, 1
      %p250 = por %p248, %p249
      %p252 = scmp.ne.s32.totalorder %s237, %s251
      %p253 = scmp.eq.s32.totalorder %s33, 0
      %p254 = por %p252, %p253
      %s256 = sadd.s32 %s255, 1
      %p259 = scmp.eq.s32.totalorder %s27, 1
      %p260 = scmp.ne.s32.totalorder %s255, %s257
      %p261 = scmp.eq.s32.totalorder %s27, 0
      %p262 = por %p260, %p261
      %p263 = scmp.ne.s32.totalorder %s255, %s257
      %p264 = scmp.eq.s32.totalorder %s32, 1
      %p265 = por %p263, %p264
      %p266 = scmp.ne.s32.totalorder %s257, %s258
      %p267 = scmp.eq.s32.totalorder %s32, 0
      %p268 = por %p266, %p267
      %p269 = scmp.ne.s32.totalorder %s257, %s258
      %p270 = scmp.eq.s32.totalorder %s33, 1
      %p271 = por %p269, %p270
      %p273 = scmp.ne.s32.totalorder %s258, %s272
      %p274 = scmp.eq.s32.totalorder %s33, 0
      %p275 = por %p273, %p274
      %s277 = sadd.s32 %s276, 1
      %p280 = scmp.eq.s32.totalorder %s27, 1
      %p281 = scmp.ne.s32.totalorder %s276, %s278
      %p282 = scmp.eq.s32.totalorder %s27, 0
      %p283 = por %p281, %p282
      %p284 = scmp.ne.s32.totalorder %s276, %s278
      %p285 = scmp.eq.s32.totalorder %s32, 1
      %p286 = por %p284, %p285
      %p287 = scmp.ne.s32.totalorder %s278, %s279
      %p288 = scmp.eq.s32.totalorder %s32, 0
      %p289 = por %p287, %p288
      %p290 = scmp.ne.s32.totalorder %s278, %s279
      %p291 = scmp.eq.s32.totalorder %s33, 1
      %p292 = por %p290, %p291
      %p294 = scmp.ne.s32.totalorder %s279, %s293
      %p295 = scmp.eq.s32.totalorder %s33, 0
      %p296 = por %p294, %p295
      %s298 = sadd.s32 %s297, 1
      %p301 = scmp.eq.s32.totalorder %s27, 1
      %p302 = scmp.ne.s32.totalorder %s297, %s299
      %p303 = scmp.eq.s32.totalorder %s27, 0
      %p304 = por %p302, %p303
      %p305 = scmp.ne.s32.totalorder %s297, %s299
      %p306 = scmp.eq.s32.totalorder %s32, 1
      %p307 = por %p305, %p306
      %p308 = scmp.ne.s32.totalorder %s299, %s300
      %p309 = scmp.eq.s32.totalorder %s32, 0
      %p310 = por %p308, %p309
      %p311 = scmp.ne.s32.totalorder %s299, %s300
      %p312 = scmp.eq.s32.totalorder %s33, 1
      %p313 = por %p311, %p312
      %p315 = scmp.ne.s32.totalorder %s300, %s314
      %p316 = scmp.eq.s32.totalorder %s33, 0
      %p317 = por %p315, %p316
      %s319 = sadd.s32 %s318, 1
      %p322 = scmp.eq.s32.totalorder %s27, 1
      %p323 = scmp.ne.s32.totalorder %s318, %s320
      %p324 = scmp.eq.s32.totalorder %s27, 0
      %p325 = por %p323, %p324
      %p326 = scmp.ne.s32.totalorder %s318, %s320
      %p327 = scmp.eq.s32.totalorder %s32, 1
      %p328 = por %p326, %p327
      %p329 = scmp.ne.s32.totalorder %s320, %s321
      %p330 = scmp.eq.s32.totalorder %s32, 0
      %p331 = por %p329, %p330
      %p332 = scmp.ne.s32.totalorder %s320, %s321
      %p333 = scmp.eq.s32.totalorder %s33, 1
      %p334 = por %p332, %p333
      %p336 = scmp.ne.s32.totalorder %s321, %s335
      %p337 = scmp.eq.s32.totalorder %s33, 0
      %p338 = por %p336, %p337
      %s340 = sadd.s32 %s339, 1
      %p343 = scmp.eq.s32.totalorder %s27, 1
      %p344 = scmp.ne.s32.totalorder %s339, %s341
      %p345 = scmp.eq.s32.totalorder %s27, 0
      %p346 = por %p344, %p345
      %p347 = scmp.ne.s32.totalorder %s339, %s341
      %p348 = scmp.eq.s32.totalorder %s32, 1
      %p349 = por %p347, %p348
      %p350 = scmp.ne.s32.totalorder %s341, %s342
      %p351 = scmp.eq.s32.totalorder %s32, 0
      %p352 = por %p350, %p351
      %p353 = scmp.ne.s32.totalorder %s341, %s342
      %p354 = scmp.eq.s32.totalorder %s33, 1
      %p355 = por %p353, %p354
      %p357 = scmp.ne.s32.totalorder %s342, %s356
      %p358 = scmp.eq.s32.totalorder %s33, 0
      %p359 = por %p357, %p358
      %s361 = sadd.s32 %s360, 1
      %p364 = scmp.eq.s32.totalorder %s27, 1
      %p365 = scmp.ne.s32.totalorder %s360, %s362
      %p366 = scmp.eq.s32.totalorder %s27, 0
      %p367 = por %p365, %p366
      %p368 = scmp.ne.s32.totalorder %s360, %s362
      %p369 = scmp.eq.s32.totalorder %s32, 1
      %p370 = por %p368, %p369
      %p371 = scmp.ne.s32.totalorder %s362, %s363
      %p372 = scmp.eq.s32.totalorder %s32, 0
      %p373 = por %p371, %p372
      %p374 = scmp.ne.s32.totalorder %s362, %s363
      %p375 = scmp.eq.s32.totalorder %s33, 1
      %p376 = por %p374, %p375
      %p378 = scmp.ne.s32.totalorder %s363, %s377
      %p379 = scmp.eq.s32.totalorder %s33, 0
      %p380 = por %p378, %p379
      %s381 = ssub.s32 %s27, %s34
      %p382 = scmp.eq.s32.totalorder %s381, 0
      %s384 = sadd.s32 %s383, 1
      %s385 = scalar_select %p382, %s383, %s384
      %p388 = pneg %p382
      %p389 = scmp.eq.s32.totalorder %s27, 1
      %p390 = por %p388, %p389
      %p391 = scmp.ne.s32.totalorder %s383, %s386
      %p392 = scmp.eq.s32.totalorder %s27, 0
      %p393 = por %p391, %p392
      %p394 = scmp.ne.s32.totalorder %s383, %s386
      %p395 = scmp.eq.s32.totalorder %s32, 1
      %p396 = por %p394, %p395
      %p397 = scmp.ne.s32.totalorder %s386, %s387
      %p398 = scmp.eq.s32.totalorder %s32, 0
      %p399 = por %p397, %p398
      %p400 = scmp.ne.s32.totalorder %s386, %s387
      %p401 = scmp.eq.s32.totalorder %s33, 1
      %p402 = por %p400, %p401
      %p404 = scmp.ne.s32.totalorder %s387, %s403
      %p405 = scmp.eq.s32.totalorder %s33, 0
      %p406 = por %p404, %p405
      %s407 = ssub.s32 %s27, %s34
      %p408 = scmp.eq.s32.totalorder %s407, 0
      %s410 = sadd.s32 %s409, 1
      %s411 = scalar_select %p408, %s409, %s410
      %p414 = pneg %p408
      %p415 = scmp.eq.s32.totalorder %s27, 1
      %p416 = por %p414, %p415
      %p417 = scmp.ne.s32.totalorder %s409, %s412
      %p418 = scmp.eq.s32.totalorder %s27, 0
      %p419 = por %p417, %p418
      %p420 = scmp.ne.s32.totalorder %s409, %s412
      %p421 = scmp.eq.s32.totalorder %s32, 1
      %p422 = por %p420, %p421
      %p423 = scmp.ne.s32.totalorder %s412, %s413
      %p424 = scmp.eq.s32.totalorder %s32, 0
      %p425 = por %p423, %p424
      %p426 = scmp.ne.s32.totalorder %s412, %s413
      %p427 = scmp.eq.s32.totalorder %s33, 1
      %p428 = por %p426, %p427
      %p430 = scmp.ne.s32.totalorder %s413, %s429
      %p431 = scmp.eq.s32.totalorder %s33, 0
      %p432 = por %p430, %p431
      %p433 = scmp.le.s32.totalorder 1, %s27
      %p434 = scmp.lt.s32.totalorder %s27, 3
      %p435 = pnand %p433, %p434
      %p436 = pneg %p435
      // Predicated region
      $region9: #{aggregation_decoder_layer_forward.5} parent=5 // pred_check
        _
      $region10: #{aggregation_decoder_layer_forward.5} parent=5 // pred_check_branch
        %438 = sbr.rel (%p435) target = $region12
      $region11: #{aggregation_decoder_layer_forward.5} parent=5 // pred_region
        %s439 = ssub.s32 %s27, 1
        // Predicated region
        $region13: #{aggregation_decoder_layer_forward.5} parent=11 // pred_check
          %p440 = pneg %p100
        $region14: #{aggregation_decoder_layer_forward.5} parent=11 // pred_check_branch
          %442 = sbr.rel (%p440) target = $region16
        $region15: #{aggregation_decoder_layer_forward.5} parent=11 // pred_region
          _
        $region16: #{aggregation_decoder_layer_forward.5} parent=11 // pred_fallthru
          _
        // Predicated region
        $region17: #{aggregation_decoder_layer_forward.5} parent=11 // pred_check
          %p443 = pneg %p121
        $region18: #{aggregation_decoder_layer_forward.5} parent=11 // pred_check_branch
          %445 = sbr.rel (%p443) target = $region20
        $region19: #{aggregation_decoder_layer_forward.5} parent=11 // pred_region
          _
        $region20: #{aggregation_decoder_layer_forward.5} parent=11 // pred_fallthru
          _
        // Predicated region
        $region21: #{aggregation_decoder_layer_forward.5} parent=11 // pred_check
          %p446 = pneg %p142
        $region22: #{aggregation_decoder_layer_forward.5} parent=11 // pred_check_branch
          %448 = sbr.rel (%p446) target = $region24
        $region23: #{aggregation_decoder_layer_forward.5} parent=11 // pred_region
          _
        $region24: #{aggregation_decoder_layer_forward.5} parent=11 // pred_fallthru
          _
        // Predicated region
        $region25: #{aggregation_decoder_layer_forward.5} parent=11 // pred_check
          %p449 = pneg %p163
        $region26: #{aggregation_decoder_layer_forward.5} parent=11 // pred_check_branch
          %451 = sbr.rel (%p449) target = $region28
        $region27: #{aggregation_decoder_layer_forward.5} parent=11 // pred_region
          _
        $region28: #{aggregation_decoder_layer_forward.5} parent=11 // pred_fallthru
          _
        // Predicated region
        $region29: #{aggregation_decoder_layer_forward.5} parent=11 // pred_check
          %p452 = pneg %p184
        $region30: #{aggregation_decoder_layer_forward.5} parent=11 // pred_check_branch
          %454 = sbr.rel (%p452) target = $region32
        $region31: #{aggregation_decoder_layer_forward.5} parent=11 // pred_region
          _
        $region32: #{aggregation_decoder_layer_forward.5} parent=11 // pred_fallthru
          _
        // Predicated region
        $region33: #{aggregation_decoder_layer_forward.5} parent=11 // pred_check
          %p455 = pneg %p205
        $region34: #{aggregation_decoder_layer_forward.5} parent=11 // pred_check_branch
          %457 = sbr.rel (%p455) target = $region36
        $region35: #{aggregation_decoder_layer_forward.5} parent=11 // pred_region
          _
        $region36: #{aggregation_decoder_layer_forward.5} parent=11 // pred_fallthru
          _
        // Predicated region
        $region37: #{aggregation_decoder_layer_forward.5} parent=11 // pred_check
          %p458 = pneg %p226
        $region38: #{aggregation_decoder_layer_forward.5} parent=11 // pred_check_branch
          %460 = sbr.rel (%p458) target = $region40
        $region39: #{aggregation_decoder_layer_forward.5} parent=11 // pred_region
          _
        $region40: #{aggregation_decoder_layer_forward.5} parent=11 // pred_fallthru
          _
        // Predicated region
        $region41: #{aggregation_decoder_layer_forward.5} parent=11 // pred_check
          %p461 = pneg %p247
        $region42: #{aggregation_decoder_layer_forward.5} parent=11 // pred_check_branch
          %463 = sbr.rel (%p461) target = $region44
        $region43: #{aggregation_decoder_layer_forward.5} parent=11 // pred_region
          _
        $region44: #{aggregation_decoder_layer_forward.5} parent=11 // pred_fallthru
          _
        // Predicated region
        $region45: #{aggregation_decoder_layer_forward.5} parent=11 // pred_check
          %p464 = pneg %p268
        $region46: #{aggregation_decoder_layer_forward.5} parent=11 // pred_check_branch
          %466 = sbr.rel (%p464) target = $region48
        $region47: #{aggregation_decoder_layer_forward.5} parent=11 // pred_region
          _
        $region48: #{aggregation_decoder_layer_forward.5} parent=11 // pred_fallthru
          _
        // Predicated region
        $region49: #{aggregation_decoder_layer_forward.5} parent=11 // pred_check
          %p467 = pneg %p289
        $region50: #{aggregation_decoder_layer_forward.5} parent=11 // pred_check_branch
          %469 = sbr.rel (%p467) target = $region52
        $region51: #{aggregation_decoder_layer_forward.5} parent=11 // pred_region
          _
        $region52: #{aggregation_decoder_layer_forward.5} parent=11 // pred_fallthru
          _
        // Predicated region
        $region53: #{aggregation_decoder_layer_forward.5} parent=11 // pred_check
          %p470 = pneg %p310
        $region54: #{aggregation_decoder_layer_forward.5} parent=11 // pred_check_branch
          %472 = sbr.rel (%p470) target = $region56
        $region55: #{aggregation_decoder_layer_forward.5} parent=11 // pred_region
          _
        $region56: #{aggregation_decoder_layer_forward.5} parent=11 // pred_fallthru
          _
        // Predicated region
        $region57: #{aggregation_decoder_layer_forward.5} parent=11 // pred_check
          %p473 = pneg %p331
        $region58: #{aggregation_decoder_layer_forward.5} parent=11 // pred_check_branch
          %475 = sbr.rel (%p473) target = $region60
        $region59: #{aggregation_decoder_layer_forward.5} parent=11 // pred_region
          _
        $region60: #{aggregation_decoder_layer_forward.5} parent=11 // pred_fallthru
          _
        // Predicated region
        $region61: #{aggregation_decoder_layer_forward.5} parent=11 // pred_check
          %p476 = pneg %p352
        $region62: #{aggregation_decoder_layer_forward.5} parent=11 // pred_check_branch
          %478 = sbr.rel (%p476) target = $region64
        $region63: #{aggregation_decoder_layer_forward.5} parent=11 // pred_region
          _
        $region64: #{aggregation_decoder_layer_forward.5} parent=11 // pred_fallthru
          _
        // Predicated region
        $region65: #{aggregation_decoder_layer_forward.5} parent=11 // pred_check
          %p479 = pneg %p373
        $region66: #{aggregation_decoder_layer_forward.5} parent=11 // pred_check_branch
          %481 = sbr.rel (%p479) target = $region68
        $region67: #{aggregation_decoder_layer_forward.5} parent=11 // pred_region
          _
        $region68: #{aggregation_decoder_layer_forward.5} parent=11 // pred_fallthru
          _
      $region12: #{aggregation_decoder_layer_forward.5} parent=5 // pred_fallthru
        _
      %p482 = scmp.lt.s32.totalorder %s27, 2
      // Predicated region
      $region69: #{aggregation_decoder_layer_forward.5} parent=5 // pred_check
        %p483 = pneg %p482
      $region70: #{aggregation_decoder_layer_forward.5} parent=5 // pred_check_branch
        %485 = sbr.rel (%p483) target = $region72
      $region71: #{aggregation_decoder_layer_forward.5} parent=5 // pred_region
        // Predicated region
        $region73: #{aggregation_decoder_layer_forward.5} parent=71 // pred_check
          %p486 = pneg %p47
        $region74: #{aggregation_decoder_layer_forward.5} parent=71 // pred_check_branch
          %488 = sbr.rel (%p486) target = $region76
        $region75: #{aggregation_decoder_layer_forward.5} parent=71 // pred_region
          %p489 = scmp.lt.s32.totalorder %s27, 1
          %s490 = scalar_select %p489, %s27, 1
          %s491 = smul.addr %s490, 2
          %s492 = smul.addr %s491, 8
          %s493 = scalar_lea.vmem %s0, %s492
        $region76: #{aggregation_decoder_layer_forward.5} parent=71 // pred_fallthru
          _
        // Predicated region
        $region77: #{aggregation_decoder_layer_forward.5} parent=71 // pred_check
          %p494 = pneg %p73
        $region78: #{aggregation_decoder_layer_forward.5} parent=71 // pred_check_branch
          %496 = sbr.rel (%p494) target = $region80
        $region79: #{aggregation_decoder_layer_forward.5} parent=71 // pred_region
          %p497 = scmp.lt.s32.totalorder %s27, 1
          %s498 = scalar_select %p497, %s27, 1
          %s499 = smul.addr %s498, 2
          %s500 = smul.addr %s499, 8
          %s501 = scalar_lea.vmem %s1, %s500
        $region80: #{aggregation_decoder_layer_forward.5} parent=71 // pred_fallthru
          _
      $region72: #{aggregation_decoder_layer_forward.5} parent=5 // pred_fallthru
        _
      %p502 = scmp.le.s32.totalorder 1, %s27
      %p503 = scmp.lt.s32.totalorder %s27, 3
      %p504 = pnand %p502, %p503
      %p505 = pneg %p504
      // Predicated region
      $region81: #{aggregation_decoder_layer_forward.5} parent=5 // pred_check
        _
      $region82: #{aggregation_decoder_layer_forward.5} parent=5 // pred_check_branch
        %507 = sbr.rel (%p504) target = $region84
      $region83: #{aggregation_decoder_layer_forward.5} parent=5 // pred_region
        %s508 = ssub.s32 %s27, 1
        %p509 = scmp.lt.s32.totalorder %s32, 1
        %s510 = scalar_select %p509, %s32, 1
        %s511 = smul.addr %s510, 2
        %s512 = smul.addr %s511, 8
        %s513 = scalar_lea.vmem %s0, %s512
        %p514 = pneg %p53
        %p515 = pneg %p50
        %p516 = scmp.lt.s32.totalorder %s32, 1
        %s517 = scalar_select %p516, %s32, 1
        %s518 = smul.addr %s517, 2
        %s519 = smul.addr %s518, 8
        %s520 = scalar_lea.vmem %s1, %s519
        %p521 = pneg %p79
        %p522 = pneg %p76
        %p523 = pneg %p100
        %p524 = pneg %p97
        %p525 = pneg %p121
        %p526 = pneg %p118
        %p527 = pneg %p142
        %p528 = pneg %p139
        %p529 = pneg %p163
        %p530 = pneg %p160
        %p531 = pneg %p184
        %p532 = pneg %p181
        %p533 = pneg %p205
        %p534 = pneg %p202
        %p535 = pneg %p226
        %p536 = pneg %p223
        %p537 = pneg %p247
        %p538 = pneg %p244
        %p539 = pneg %p268
        %p540 = pneg %p265
        %p541 = pneg %p289
        %p542 = pneg %p286
        %p543 = pneg %p310
        %p544 = pneg %p307
        %p545 = pneg %p331
        %p546 = pneg %p328
        %p547 = pneg %p352
        %p548 = pneg %p349
        %p549 = pneg %p373
        %p550 = pneg %p370
        %p551 = pneg %p399
        %p552 = pneg %p396
        %p553 = scmp.lt.s32.totalorder %s32, 1
        %s554 = scalar_select %p553, %s32, 1
        %s555 = smul.addr %s554, 2
        %s556 = smul.addr %s555, 8
        %s557 = scalar_lea.vmem %s16, %s556
        %p558 = pneg %p425
        %p559 = pneg %p422
        %s560 = sand.u32 %s412, 1
        %s561 = scalar_lea.sflag [#allocation3], %s560
        %s562 = sand.u32 %s412, 1
        %s563 = smul.addr %s562, 16
        %s564 = scalar_lea.vmem [#allocation2], %s563
        %p565 = scmp.lt.s32.totalorder %s32, 1
        %s566 = scalar_select %p565, %s32, 1
        %s567 = smul.addr %s566, 2
        %s568 = smul.addr %s567, 8
        %s569 = scalar_lea.vmem %s0, %s568
        %p570 = scmp.lt.s32.totalorder %s32, 1
        %s571 = scalar_select %p570, %s32, 1
        %s572 = smul.addr %s571, 2
        %s573 = smul.addr %s572, 8
        %s574 = scalar_lea.vmem %s1, %s573
        %p575 = scmp.lt.s32.totalorder %s32, 1
        %s576 = scalar_select %p575, %s32, 1
        %s577 = smul.addr %s576, 2
        %s578 = smul.addr %s577, 8
        %s579 = scalar_lea.vmem %s16, %s578
        %v581 = vld [vmem:[%s569] sm:$0xff]
        %v582 = vld [vmem:[%s569 + $0x8] sm:$0xff]
        %v583 = vpack.c.bf16 %v582, %v581
        %v584 = vld [vmem:[%s574] sm:$0xff]
        %v585 = vld [vmem:[%s574 + $0x8] sm:$0xff]
        %v586 = vpack.c.bf16 %v585, %v584
        %v587 = vld [vmem:[%s2] sm:$0xf]
        %v588 = vld [vmem:[%s2 + $0x4] sm:$0xf]
        %v589 = vld [vmem:[%s2 + $0x8] sm:$0xf]
        %v590 = vld [vmem:[%s2 + $0xc] sm:$0xf]
        %v591 = vld [vmem:[%s2 + $0x10] sm:$0xf]
        %v592 = vld [vmem:[%s2 + $0x14] sm:$0xf]
        %v593 = vld [vmem:[%s2 + $0x18] sm:$0xf]
        %v594 = vld [vmem:[%s2 + $0x1c] sm:$0xf]
        %v595 = vld [vmem:[%s2 + $0x20] sm:$0xf]
        %v596 = vld [vmem:[%s2 + $0x24] sm:$0xf]
        %v597 = vld [vmem:[%s2 + $0x28] sm:$0xf]
        %v598 = vld [vmem:[%s2 + $0x2c] sm:$0xf]
        %v599 = vld [vmem:[%s2 + $0x30] sm:$0xf]
        %v600 = vld [vmem:[%s2 + $0x34] sm:$0xf]
        %v601 = vld [vmem:[%s2 + $0x38] sm:$0xf]
        %v602 = vld [vmem:[%s2 + $0x3c] sm:$0xf]
        %v603 = vld [vmem:[%s3] sm:$0x1]
        %v605 = vlaneseq
        %v606 = vshrl.u32 %v605, 7
        %v607 = vsub.s32 0, %v606
        %v608 = vrot.slane %v603, %v607
        %v626 = vunpack.c.l.b16 %v587
        %v627 = vunpack.c.l.b16 %v588
        %v628 = vunpack.c.l.b16 %v589
        %v629 = vunpack.c.l.b16 %v590
        %v630 = vunpack.c.l.b16 %v591
        %v631 = vunpack.c.l.b16 %v592
        %v632 = vunpack.c.l.b16 %v593
        %v633 = vunpack.c.l.b16 %v594
        %v634 = vunpack.c.l.b16 %v595
        %v635 = vunpack.c.l.b16 %v596
        %v636 = vunpack.c.l.b16 %v597
        %v637 = vunpack.c.l.b16 %v598
        %v638 = vunpack.c.l.b16 %v599
        %v639 = vunpack.c.l.b16 %v600
        %v640 = vunpack.c.l.b16 %v601
        %v641 = vunpack.c.l.b16 %v602
        %v642 = vpack.c.b16 %v627, %v626
        %v643 = vpack.c.b16 %v629, %v628
        %v644 = vpack.c.b16 %v631, %v630
        %v645 = vpack.c.b16 %v633, %v632
        %v646 = vpack.c.b16 %v635, %v634
        %v647 = vpack.c.b16 %v637, %v636
        %v648 = vpack.c.b16 %v639, %v638
        %v649 = vpack.c.b16 %v641, %v640
        %658 = vmatprep.subr.bf16.mxu0 0
        %659 = vmatpush1.bf16.msra.mxu0 %v642
        %660 = vmatprep.subr.bf16.mxu0 0
        %661 = vmatpush1.bf16.msra.mxu0 %v643
        %662 = vmatprep.subr.bf16.mxu0 0
        %663 = vmatpush1.bf16.msra.mxu0 %v644
        %664 = vmatprep.subr.bf16.mxu0 0
        %665 = vmatpush1.bf16.msra.mxu0 %v645
        %666 = vmatprep.subr.bf16.mxu0 0
        %667 = vmatpush1.bf16.msra.mxu0 %v646
        %668 = vmatprep.subr.bf16.mxu0 0
        %669 = vmatpush1.bf16.msra.mxu0 %v647
        %670 = vmatprep.subr.bf16.mxu0 0
        %671 = vmatpush1.bf16.msra.mxu0 %v648
        %672 = vmatprep.subr.bf16.mxu0 0
        %673 = vmatpush1.bf16.msra.mxu0 %v649
        %674 = vmatprep.subr.bf16.mxu0 0
        %675 = vmatpush1.bf16.msra.mxu0 0
        %676 = vmatprep.subr.bf16.mxu0 0
        %677 = vmatpush1.bf16.msra.mxu0 0
        %678 = vmatprep.subr.bf16.mxu0 0
        %679 = vmatpush1.bf16.msra.mxu0 0
        %680 = vmatprep.subr.bf16.mxu0 0
        %681 = vmatpush1.bf16.msra.mxu0 0
        %682 = vmatprep.subr.bf16.mxu0 0
        %683 = vmatpush1.bf16.msra.mxu0 0
        %684 = vmatprep.subr.bf16.mxu0 0
        %685 = vmatpush1.bf16.msra.mxu0 0
        %686 = vmatprep.subr.bf16.mxu0 0
        %687 = vmatpush1.bf16.msra.mxu0 0
        %688 = vmatprep.subr.bf16.mxu0 0
        %689 = vmatpush1.bf16.msra.mxu0 0
        %690 = vmatprep.mubr.bf16.mxu0 0
        %691 = vmatmul.mubr.bf16.gmra.mrb[0].mxu0 %v583
        %v692 = vpop.f32.mrb[0].mxu0
        %v693 = vadd.f32 %v608, %v692
        %v694 = vpop.f32.mrb[0].mxu0
        %v695 = vpop.f32.mrb[0].mxu0
        %v696 = vadd.f32 %v608, %v695
        %v697 = vpop.f32.mrb[0].mxu0
        %698 = vdwg.mxu0
        %v699 = vmul.f32 %v693, 0.17677669
        %v700 = vmul.f32 %v696, 0.17677669
        %v701 = vld [vmem:[%s4] sm:$0xff]
        %v702 = vld [vmem:[%s4 + $0x8] sm:$0xff]
        %v703 = vld [vmem:[%s4 + $0x10] sm:$0xff]
        %v704 = vld [vmem:[%s4 + $0x18] sm:$0xff]
        %v705 = vld [vmem:[%s4 + $0x20] sm:$0xff]
        %v706 = vld [vmem:[%s4 + $0x28] sm:$0xff]
        %v707 = vld [vmem:[%s4 + $0x30] sm:$0xff]
        %v708 = vld [vmem:[%s4 + $0x38] sm:$0xff]
        %v709 = vld [vmem:[%s4 + $0x40] sm:$0xff]
        %v710 = vld [vmem:[%s4 + $0x48] sm:$0xff]
        %v711 = vld [vmem:[%s4 + $0x50] sm:$0xff]
        %v712 = vld [vmem:[%s4 + $0x58] sm:$0xff]
        %v713 = vld [vmem:[%s4 + $0x60] sm:$0xff]
        %v714 = vld [vmem:[%s4 + $0x68] sm:$0xff]
        %v715 = vld [vmem:[%s4 + $0x70] sm:$0xff]
        %v716 = vld [vmem:[%s4 + $0x78] sm:$0xff]
        %v717 = vld [vmem:[%s5] sm:$0x3]
        %v719 = vlaneseq
        %v720 = vshrl.u32 %v719, 7
        %v721 = vsub.s32 0, %v720
        %v722 = vrot.slane %v717, %v721
        %v723 = vlaneseq
        %v724 = vshrl.u32 %v723, 7
        %v725 = vsub.s32 1, %v724
        %v726 = vrot.slane %v717, %v725
        %v745 = vunpack.c.l.b16 %v701
        %v746 = vunpack.c.h.b16 %v701
        %v747 = vunpack.c.l.b16 %v702
        %v748 = vunpack.c.h.b16 %v702
        %v749 = vunpack.c.l.b16 %v703
        %v750 = vunpack.c.h.b16 %v703
        %v751 = vunpack.c.l.b16 %v704
        %v752 = vunpack.c.h.b16 %v704
        %v753 = vunpack.c.l.b16 %v705
        %v754 = vunpack.c.h.b16 %v705
        %v755 = vunpack.c.l.b16 %v706
        %v756 = vunpack.c.h.b16 %v706
        %v757 = vunpack.c.l.b16 %v707
        %v758 = vunpack.c.h.b16 %v707
        %v759 = vunpack.c.l.b16 %v708
        %v760 = vunpack.c.h.b16 %v708
        %v761 = vunpack.c.l.b16 %v709
        %v762 = vunpack.c.h.b16 %v709
        %v763 = vunpack.c.l.b16 %v710
        %v764 = vunpack.c.h.b16 %v710
        %v765 = vunpack.c.l.b16 %v711
        %v766 = vunpack.c.h.b16 %v711
        %v767 = vunpack.c.l.b16 %v712
        %v768 = vunpack.c.h.b16 %v712
        %v769 = vunpack.c.l.b16 %v713
        %v770 = vunpack.c.h.b16 %v713
        %v771 = vunpack.c.l.b16 %v714
        %v772 = vunpack.c.h.b16 %v714
        %v773 = vunpack.c.l.b16 %v715
        %v774 = vunpack.c.h.b16 %v715
        %v775 = vunpack.c.l.b16 %v716
        %v776 = vunpack.c.h.b16 %v716
        %v777 = vpack.c.b16 %v747, %v745
        %v778 = vpack.c.b16 %v748, %v746
        %v779 = vpack.c.b16 %v751, %v749
        %v780 = vpack.c.b16 %v752, %v750
        %v781 = vpack.c.b16 %v755, %v753
        %v782 = vpack.c.b16 %v756, %v754
        %v783 = vpack.c.b16 %v759, %v757
        %v784 = vpack.c.b16 %v760, %v758
        %v785 = vpack.c.b16 %v763, %v761
        %v786 = vpack.c.b16 %v764, %v762
        %v787 = vpack.c.b16 %v767, %v765
        %v788 = vpack.c.b16 %v768, %v766
        %v789 = vpack.c.b16 %v771, %v769
        %v790 = vpack.c.b16 %v772, %v770
        %v791 = vpack.c.b16 %v775, %v773
        %v792 = vpack.c.b16 %v776, %v774
        %809 = vmatprep.subr.bf16.mxu0 %v778
        %810 = vmatpush1.bf16.msra.mxu0 %v777
        %811 = vmatprep.subr.bf16.mxu0 %v780
        %812 = vmatpush1.bf16.msra.mxu0 %v779
        %813 = vmatprep.subr.bf16.mxu0 %v782
        %814 = vmatpush1.bf16.msra.mxu0 %v781
        %815 = vmatprep.subr.bf16.mxu0 %v784
        %816 = vmatpush1.bf16.msra.mxu0 %v783
        %817 = vmatprep.subr.bf16.mxu0 %v786
        %818 = vmatpush1.bf16.msra.mxu0 %v785
        %819 = vmatprep.subr.bf16.mxu0 %v788
        %820 = vmatpush1.bf16.msra.mxu0 %v787
        %821 = vmatprep.subr.bf16.mxu0 %v790
        %822 = vmatpush1.bf16.msra.mxu0 %v789
        %823 = vmatprep.subr.bf16.mxu0 %v792
        %824 = vmatpush1.bf16.msra.mxu0 %v791
        %825 = vmatprep.subr.bf16.mxu0 0
        %826 = vmatpush1.bf16.msra.mxu0 0
        %827 = vmatprep.subr.bf16.mxu0 0
        %828 = vmatpush1.bf16.msra.mxu0 0
        %829 = vmatprep.subr.bf16.mxu0 0
        %830 = vmatpush1.bf16.msra.mxu0 0
        %831 = vmatprep.subr.bf16.mxu0 0
        %832 = vmatpush1.bf16.msra.mxu0 0
        %833 = vmatprep.subr.bf16.mxu0 0
        %834 = vmatpush1.bf16.msra.mxu0 0
        %835 = vmatprep.subr.bf16.mxu0 0
        %836 = vmatpush1.bf16.msra.mxu0 0
        %837 = vmatprep.subr.bf16.mxu0 0
        %838 = vmatpush1.bf16.msra.mxu0 0
        %839 = vmatprep.subr.bf16.mxu0 0
        %840 = vmatpush1.bf16.msra.mxu0 0
        %841 = vmatprep.mubr.bf16.mxu0 0
        %842 = vmatmul.mubr.bf16.gmra.mrb[0].mxu0 %v586
        %v843 = vpop.f32.mrb[0].mxu0
        %v844 = vadd.f32 %v722, %v843
        %v845 = vpop.f32.mrb[0].mxu0
        %v846 = vadd.f32 %v726, %v845
        %v847 = vpop.f32.mrb[0].mxu0
        %v848 = vadd.f32 %v722, %v847
        %v849 = vpop.f32.mrb[0].mxu0
        %v850 = vadd.f32 %v726, %v849
        %851 = vdwg.mxu0
        %v852 = vpack.c.bf16 %v700, %v699
        %v853 = vpack.c.bf16 %v848, %v844
        %v854 = vpack.c.bf16 %v850, %v846
        %vm855 = vcmask 261120
        %v857 = vsel %vm855, %v852, 0
        %v860 = vsel %vm855, %v853, 0
        %862 = vmatprep.subr.bf16.mxu0 0
        %863 = vmatpush1.bf16.xpose.msra.mxu0 %v860
        %864 = vmatprep.subr.bf16.mxu0 0
        %865 = vmatpush1.bf16.xpose.msra.mxu0 0
        %866 = vmatprep.subr.bf16.mxu0 0
        %867 = vmatpush1.bf16.xpose.msra.mxu0 0
        %868 = vmatprep.subr.bf16.mxu0 0
        %869 = vmatpush1.bf16.xpose.msra.mxu0 0
        %870 = vmatprep.subr.bf16.mxu0 0
        %871 = vmatpush1.bf16.xpose.msra.mxu0 0
        %872 = vmatprep.subr.bf16.mxu0 0
        %873 = vmatpush1.bf16.xpose.msra.mxu0 0
        %874 = vmatprep.subr.bf16.mxu0 0
        %875 = vmatpush1.bf16.xpose.msra.mxu0 0
        %876 = vmatprep.subr.bf16.mxu0 0
        %877 = vmatpush1.bf16.xpose.msra.mxu0 0
        %878 = vmatprep.subr.bf16.mxu0 0
        %879 = vmatpush1.bf16.xpose.msra.mxu0 0
        %880 = vmatprep.subr.bf16.mxu0 0
        %881 = vmatpush1.bf16.xpose.msra.mxu0 0
        %882 = vmatprep.subr.bf16.mxu0 0
        %883 = vmatpush1.bf16.xpose.msra.mxu0 0
        %884 = vmatprep.subr.bf16.mxu0 0
        %885 = vmatpush1.bf16.xpose.msra.mxu0 0
        %886 = vmatprep.subr.bf16.mxu0 0
        %887 = vmatpush1.bf16.xpose.msra.mxu0 0
        %888 = vmatprep.subr.bf16.mxu0 0
        %889 = vmatpush1.bf16.xpose.msra.mxu0 0
        %890 = vmatprep.subr.bf16.mxu0 0
        %891 = vmatpush1.bf16.xpose.msra.mxu0 0
        %892 = vmatprep.subr.bf16.mxu0 0
        %893 = vmatpush1.bf16.xpose.msra.mxu0 0
        %894 = vmatprep.mubr.bf16.mxu0 0
        %895 = vmatmul.mubr.bf16.gmra.mrb[0].mxu0 %v857
        %v896 = vpop.f32.mrb[0].mxu0
        %v897 = vadd.f32 0.0, %v896
        %v898 = vpop.f32.mrb[0].mxu0
        %v899 = vpop.f32.mrb[0].mxu0
        %v900 = vadd.f32 0.0, %v899
        %v901 = vpop.f32.mrb[0].mxu0
        %902 = vdwg.mxu0
        %vm903 = vcmask 130048
        %v904 = vsel %vm903, %v897, -inf
        %905 = vmax.xlane.f32.xlu0 %v904
        %v906 = vpop.xlane.xlu0 %905
        %v907 = vsel %vm903, %v900, -inf
        %908 = vmax.xlane.f32.xlu0 %v907
        %v909 = vpop.xlane.xlu0 %908
        %v910 = vsub.f32 %v897, %v906
        %v911 = vsub.f32 %v900, %v909
        %v912 = vmul.f32 %v910, 1.442695
        %v913 = vpow.pop %v912
        %v914 = vmul.f32 %v911, 1.442695
        %v915 = vpow.pop %v914
        %v916 = vsel %vm903, %v913, 0.0
        %917 = vadd.xlane.f32.xlu0 %v916
        %v918 = vpop.xlane.xlu0 %917
        %v919 = vsel %vm903, %v915, 0.0
        %920 = vadd.xlane.f32.xlu0 %v919
        %v921 = vpop.xlane.xlu0 %920
        %v922 = vrcp.pop %v918
        %v923 = vrcp.pop %v921
        %v924 = vmul.f32 %v913, %v922
        %v925 = vmul.f32 %v915, %v923
        %v926 = vpack.c.bf16 %v925, %v924
        %v928 = vsel %vm903, %v926, 0
        %930 = vmatprep.subr.bf16.mxu0 0
        %931 = vmatpush1.bf16.msra.mxu0 %v854
        %932 = vmatprep.subr.bf16.mxu0 0
        %933 = vmatpush1.bf16.msra.mxu0 0
        %934 = vmatprep.subr.bf16.mxu0 0
        %935 = vmatpush1.bf16.msra.mxu0 0
        %936 = vmatprep.subr.bf16.mxu0 0
        %937 = vmatpush1.bf16.msra.mxu0 0
        %938 = vmatprep.subr.bf16.mxu0 0
        %939 = vmatpush1.bf16.msra.mxu0 0
        %940 = vmatprep.subr.bf16.mxu0 0
        %941 = vmatpush1.bf16.msra.mxu0 0
        %942 = vmatprep.subr.bf16.mxu0 0
        %943 = vmatpush1.bf16.msra.mxu0 0
        %944 = vmatprep.subr.bf16.mxu0 0
        %945 = vmatpush1.bf16.msra.mxu0 0
        %946 = vmatprep.subr.bf16.mxu0 0
        %947 = vmatpush1.bf16.msra.mxu0 0
        %948 = vmatprep.subr.bf16.mxu0 0
        %949 = vmatpush1.bf16.msra.mxu0 0
        %950 = vmatprep.subr.bf16.mxu0 0
        %951 = vmatpush1.bf16.msra.mxu0 0
        %952 = vmatprep.subr.bf16.mxu0 0
        %953 = vmatpush1.bf16.msra.mxu0 0
        %954 = vmatprep.subr.bf16.mxu0 0
        %955 = vmatpush1.bf16.msra.mxu0 0
        %956 = vmatprep.subr.bf16.mxu0 0
        %957 = vmatpush1.bf16.msra.mxu0 0
        %958 = vmatprep.subr.bf16.mxu0 0
        %959 = vmatpush1.bf16.msra.mxu0 0
        %960 = vmatprep.subr.bf16.mxu0 0
        %961 = vmatpush1.bf16.msra.mxu0 0
        %962 = vmatprep.mubr.bf16.mxu0 0
        %963 = vmatmul.mubr.bf16.gmra.mrb[0].mxu0 %v928
        %v964 = vpop.f32.mrb[0].mxu0
        %v965 = vadd.f32 0.0, %v964
        %v966 = vpop.f32.mrb[0].mxu0
        %v967 = vpop.f32.mrb[0].mxu0
        %v968 = vadd.f32 0.0, %v967
        %v969 = vpop.f32.mrb[0].mxu0
        %970 = vdwg.mxu0
        %972 = vrot.lane.b32.xlu0 %v852, 96
        %v973 = vpop.permute.xlu0 %972
        %975 = vrot.lane.b32.xlu0 %v853, 96
        %v976 = vpop.permute.xlu0 %975
        %v978 = vsel %vm855, %v973, 0
        %v981 = vsel %vm855, %v976, 0
        %983 = vmatprep.subr.bf16.mxu0 0
        %984 = vmatpush1.bf16.xpose.msra.mxu0 %v981
        %985 = vmatprep.subr.bf16.mxu0 0
        %986 = vmatpush1.bf16.xpose.msra.mxu0 0
        %987 = vmatprep.subr.bf16.mxu0 0
        %988 = vmatpush1.bf16.xpose.msra.mxu0 0
        %989 = vmatprep.subr.bf16.mxu0 0
        %990 = vmatpush1.bf16.xpose.msra.mxu0 0
        %991 = vmatprep.subr.bf16.mxu0 0
        %992 = vmatpush1.bf16.xpose.msra.mxu0 0
        %993 = vmatprep.subr.bf16.mxu0 0
        %994 = vmatpush1.bf16.xpose.msra.mxu0 0
        %995 = vmatprep.subr.bf16.mxu0 0
        %996 = vmatpush1.bf16.xpose.msra.mxu0 0
        %997 = vmatprep.subr.bf16.mxu0 0
        %998 = vmatpush1.bf16.xpose.msra.mxu0 0
        %999 = vmatprep.subr.bf16.mxu0 0
        %1000 = vmatpush1.bf16.xpose.msra.mxu0 0
        %1001 = vmatprep.subr.bf16.mxu0 0
        %1002 = vmatpush1.bf16.xpose.msra.mxu0 0
        %1003 = vmatprep.subr.bf16.mxu0 0
        %1004 = vmatpush1.bf16.xpose.msra.mxu0 0
        %1005 = vmatprep.subr.bf16.mxu0 0
        %1006 = vmatpush1.bf16.xpose.msra.mxu0 0
        %1007 = vmatprep.subr.bf16.mxu0 0
        %1008 = vmatpush1.bf16.xpose.msra.mxu0 0
        %1009 = vmatprep.subr.bf16.mxu0 0
        %1010 = vmatpush1.bf16.xpose.msra.mxu0 0
        %1011 = vmatprep.subr.bf16.mxu0 0
        %1012 = vmatpush1.bf16.xpose.msra.mxu0 0
        %1013 = vmatprep.subr.bf16.mxu0 0
        %1014 = vmatpush1.bf16.xpose.msra.mxu0 0
        %1015 = vmatprep.mubr.bf16.mxu0 0
        %1016 = vmatmul.mubr.bf16.gmra.mrb[0].mxu0 %v978
        %v1017 = vpop.f32.mrb[0].mxu0
        %v1018 = vadd.f32 0.0, %v1017
        %v1019 = vpop.f32.mrb[0].mxu0
        %v1020 = vpop.f32.mrb[0].mxu0
        %v1021 = vadd.f32 0.0, %v1020
        %v1022 = vpop.f32.mrb[0].mxu0
        %1023 = vdwg.mxu0
        %v1024 = vsel %vm903, %v1018, -inf
        %1025 = vmax.xlane.f32.xlu0 %v1024
        %v1026 = vpop.xlane.xlu0 %1025
        %v1027 = vsel %vm903, %v1021, -inf
        %1028 = vmax.xlane.f32.xlu0 %v1027
        %v1029 = vpop.xlane.xlu0 %1028
        %v1030 = vsub.f32 %v1018, %v1026
        %v1031 = vsub.f32 %v1021, %v1029
        %v1032 = vmul.f32 %v1030, 1.442695
        %v1033 = vpow.pop %v1032
        %v1034 = vmul.f32 %v1031, 1.442695
        %v1035 = vpow.pop %v1034
        %v1036 = vsel %vm903, %v1033, 0.0
        %1037 = vadd.xlane.f32.xlu0 %v1036
        %v1038 = vpop.xlane.xlu0 %1037
        %v1039 = vsel %vm903, %v1035, 0.0
        %1040 = vadd.xlane.f32.xlu0 %v1039
        %v1041 = vpop.xlane.xlu0 %1040
        %v1042 = vrcp.pop %v1038
        %v1043 = vrcp.pop %v1041
        %v1044 = vmul.f32 %v1033, %v1042
        %v1045 = vmul.f32 %v1035, %v1043
        %v1046 = vadd.f32 %v924, %v1044
        %v1047 = vadd.f32 %v925, %v1045
        %v1048 = vpack.c.bf16 %v1045, %v1044
        %1050 = vrot.lane.b32.xlu0 %v854, 96
        %v1051 = vpop.permute.xlu0 %1050
        %v1054 = vsel %vm903, %v1048, 0
        %1056 = vmatprep.subr.bf16.mxu0 0
        %1057 = vmatpush1.bf16.msra.mxu0 %v1051
        %1058 = vmatprep.subr.bf16.mxu0 0
        %1059 = vmatpush1.bf16.msra.mxu0 0
        %1060 = vmatprep.subr.bf16.mxu0 0
        %1061 = vmatpush1.bf16.msra.mxu0 0
        %1062 = vmatprep.subr.bf16.mxu0 0
        %1063 = vmatpush1.bf16.msra.mxu0 0
        %1064 = vmatprep.subr.bf16.mxu0 0
        %1065 = vmatpush1.bf16.msra.mxu0 0
        %1066 = vmatprep.subr.bf16.mxu0 0
        %1067 = vmatpush1.bf16.msra.mxu0 0
        %1068 = vmatprep.subr.bf16.mxu0 0
        %1069 = vmatpush1.bf16.msra.mxu0 0
        %1070 = vmatprep.subr.bf16.mxu0 0
        %1071 = vmatpush1.bf16.msra.mxu0 0
        %1072 = vmatprep.subr.bf16.mxu0 0
        %1073 = vmatpush1.bf16.msra.mxu0 0
        %1074 = vmatprep.subr.bf16.mxu0 0
        %1075 = vmatpush1.bf16.msra.mxu0 0
        %1076 = vmatprep.subr.bf16.mxu0 0
        %1077 = vmatpush1.bf16.msra.mxu0 0
        %1078 = vmatprep.subr.bf16.mxu0 0
        %1079 = vmatpush1.bf16.msra.mxu0 0
        %1080 = vmatprep.subr.bf16.mxu0 0
        %1081 = vmatpush1.bf16.msra.mxu0 0
        %1082 = vmatprep.subr.bf16.mxu0 0
        %1083 = vmatpush1.bf16.msra.mxu0 0
        %1084 = vmatprep.subr.bf16.mxu0 0
        %1085 = vmatpush1.bf16.msra.mxu0 0
        %1086 = vmatprep.subr.bf16.mxu0 0
        %1087 = vmatpush1.bf16.msra.mxu0 0
        %1088 = vmatprep.mubr.bf16.mxu0 0
        %1089 = vmatmul.mubr.bf16.gmra.mrb[0].mxu0 %v1054
        %v1090 = vpop.f32.mrb[0].mxu0
        %v1091 = vadd.f32 0.0, %v1090
        %v1092 = vpop.f32.mrb[0].mxu0
        %v1093 = vpop.f32.mrb[0].mxu0
        %v1094 = vadd.f32 0.0, %v1093
        %v1095 = vpop.f32.mrb[0].mxu0
        %1096 = vdwg.mxu0
        %1097 = vrot.lane.b32.xlu0 %v852, 64
        %v1098 = vpop.permute.xlu0 %1097
        %1099 = vrot.lane.b32.xlu0 %v853, 64
        %v1100 = vpop.permute.xlu0 %1099
        %v1102 = vsel %vm855, %v1098, 0
        %v1105 = vsel %vm855, %v1100, 0
        %1107 = vmatprep.subr.bf16.mxu0 0
        %1108 = vmatpush1.bf16.xpose.msra.mxu0 %v1105
        %1109 = vmatprep.subr.bf16.mxu0 0
        %1110 = vmatpush1.bf16.xpose.msra.mxu0 0
        %1111 = vmatprep.subr.bf16.mxu0 0
        %1112 = vmatpush1.bf16.xpose.msra.mxu0 0
        %1113 = vmatprep.subr.bf16.mxu0 0
        %1114 = vmatpush1.bf16.xpose.msra.mxu0 0
        %1115 = vmatprep.subr.bf16.mxu0 0
        %1116 = vmatpush1.bf16.xpose.msra.mxu0 0
        %1117 = vmatprep.subr.bf16.mxu0 0
        %1118 = vmatpush1.bf16.xpose.msra.mxu0 0
        %1119 = vmatprep.subr.bf16.mxu0 0
        %1120 = vmatpush1.bf16.xpose.msra.mxu0 0
        %1121 = vmatprep.subr.bf16.mxu0 0
        %1122 = vmatpush1.bf16.xpose.msra.mxu0 0
        %1123 = vmatprep.subr.bf16.mxu0 0
        %1124 = vmatpush1.bf16.xpose.msra.mxu0 0
        %1125 = vmatprep.subr.bf16.mxu0 0
        %1126 = vmatpush1.bf16.xpose.msra.mxu0 0
        %1127 = vmatprep.subr.bf16.mxu0 0
        %1128 = vmatpush1.bf16.xpose.msra.mxu0 0
        %1129 = vmatprep.subr.bf16.mxu0 0
        %1130 = vmatpush1.bf16.xpose.msra.mxu0 0
        %1131 = vmatprep.subr.bf16.mxu0 0
        %1132 = vmatpush1.bf16.xpose.msra.mxu0 0
        %1133 = vmatprep.subr.bf16.mxu0 0
        %1134 = vmatpush1.bf16.xpose.msra.mxu0 0
        %1135 = vmatprep.subr.bf16.mxu0 0
        %1136 = vmatpush1.bf16.xpose.msra.mxu0 0
        %1137 = vmatprep.subr.bf16.mxu0 0
        %1138 = vmatpush1.bf16.xpose.msra.mxu0 0
        %1139 = vmatprep.mubr.bf16.mxu0 0
        %1140 = vmatmul.mubr.bf16.gmra.mrb[0].mxu0 %v1102
        %v1141 = vpop.f32.mrb[0].mxu0
        %v1142 = vadd.f32 0.0, %v1141
        %v1143 = vpop.f32.mrb[0].mxu0
        %v1144 = vpop.f32.mrb[0].mxu0
        %v1145 = vadd.f32 0.0, %v1144
        %v1146 = vpop.f32.mrb[0].mxu0
        %1147 = vdwg.mxu0
        %v1148 = vsel %vm903, %v1142, -inf
        %1149 = vmax.xlane.f32.xlu0 %v1148
        %v1150 = vpop.xlane.xlu0 %1149
        %v1151 = vsel %vm903, %v1145, -inf
        %1152 = vmax.xlane.f32.xlu0 %v1151
        %v1153 = vpop.xlane.xlu0 %1152
        %v1154 = vsub.f32 %v1142, %v1150
        %v1155 = vsub.f32 %v1145, %v1153
        %v1156 = vmul.f32 %v1154, 1.442695
        %v1157 = vpow.pop %v1156
        %v1158 = vmul.f32 %v1155, 1.442695
        %v1159 = vpow.pop %v1158
        %v1160 = vsel %vm903, %v1157, 0.0
        %1161 = vadd.xlane.f32.xlu0 %v1160
        %v1162 = vpop.xlane.xlu0 %1161
        %v1163 = vsel %vm903, %v1159, 0.0
        %1164 = vadd.xlane.f32.xlu0 %v1163
        %v1165 = vpop.xlane.xlu0 %1164
        %v1166 = vrcp.pop %v1162
        %v1167 = vrcp.pop %v1165
        %v1168 = vmul.f32 %v1157, %v1166
        %v1169 = vmul.f32 %v1159, %v1167
        %v1170 = vadd.f32 %v1046, %v1168
        %v1171 = vadd.f32 %v1047, %v1169
        %v1172 = vpack.c.bf16 %v1169, %v1168
        %1173 = vrot.lane.b32.xlu0 %v854, 64
        %v1174 = vpop.permute.xlu0 %1173
        %v1177 = vsel %vm903, %v1172, 0
        %1179 = vmatprep.subr.bf16.mxu0 0
        %1180 = vmatpush1.bf16.msra.mxu0 %v1174
        %1181 = vmatprep.subr.bf16.mxu0 0
        %1182 = vmatpush1.bf16.msra.mxu0 0
        %1183 = vmatprep.subr.bf16.mxu0 0
        %1184 = vmatpush1.bf16.msra.mxu0 0
        %1185 = vmatprep.subr.bf16.mxu0 0
        %1186 = vmatpush1.bf16.msra.mxu0 0
        %1187 = vmatprep.subr.bf16.mxu0 0
        %1188 = vmatpush1.bf16.msra.mxu0 0
        %1189 = vmatprep.subr.bf16.mxu0 0
        %1190 = vmatpush1.bf16.msra.mxu0 0
        %1191 = vmatprep.subr.bf16.mxu0 0
        %1192 = vmatpush1.bf16.msra.mxu0 0
        %1193 = vmatprep.subr.bf16.mxu0 0
        %1194 = vmatpush1.bf16.msra.mxu0 0
        %1195 = vmatprep.subr.bf16.mxu0 0
        %1196 = vmatpush1.bf16.msra.mxu0 0
        %1197 = vmatprep.subr.bf16.mxu0 0
        %1198 = vmatpush1.bf16.msra.mxu0 0
        %1199 = vmatprep.subr.bf16.mxu0 0
        %1200 = vmatpush1.bf16.msra.mxu0 0
        %1201 = vmatprep.subr.bf16.mxu0 0
        %1202 = vmatpush1.bf16.msra.mxu0 0
        %1203 = vmatprep.subr.bf16.mxu0 0
        %1204 = vmatpush1.bf16.msra.mxu0 0
        %1205 = vmatprep.subr.bf16.mxu0 0
        %1206 = vmatpush1.bf16.msra.mxu0 0
        %1207 = vmatprep.subr.bf16.mxu0 0
        %1208 = vmatpush1.bf16.msra.mxu0 0
        %1209 = vmatprep.subr.bf16.mxu0 0
        %1210 = vmatpush1.bf16.msra.mxu0 0
        %1211 = vmatprep.mubr.bf16.mxu0 0
        %1212 = vmatmul.mubr.bf16.gmra.mrb[0].mxu0 %v1177
        %v1213 = vpop.f32.mrb[0].mxu0
        %v1214 = vadd.f32 0.0, %v1213
        %v1215 = vpop.f32.mrb[0].mxu0
        %v1216 = vpop.f32.mrb[0].mxu0
        %v1217 = vadd.f32 0.0, %v1216
        %v1218 = vpop.f32.mrb[0].mxu0
        %1219 = vdwg.mxu0
        %1220 = vrot.lane.b32.xlu0 %v852, 32
        %v1221 = vpop.permute.xlu0 %1220
        %1222 = vrot.lane.b32.xlu0 %v853, 32
        %v1223 = vpop.permute.xlu0 %1222
        %v1225 = vsel %vm855, %v1221, 0
        %v1228 = vsel %vm855, %v1223, 0
        %1230 = vmatprep.subr.bf16.mxu0 0
        %1231 = vmatpush1.bf16.xpose.msra.mxu0 %v1228
        %1232 = vmatprep.subr.bf16.mxu0 0
        %1233 = vmatpush1.bf16.xpose.msra.mxu0 0
        %1234 = vmatprep.subr.bf16.mxu0 0
        %1235 = vmatpush1.bf16.xpose.msra.mxu0 0
        %1236 = vmatprep.subr.bf16.mxu0 0
        %1237 = vmatpush1.bf16.xpose.msra.mxu0 0
        %1238 = vmatprep.subr.bf16.mxu0 0
        %1239 = vmatpush1.bf16.xpose.msra.mxu0 0
        %1240 = vmatprep.subr.bf16.mxu0 0
        %1241 = vmatpush1.bf16.xpose.msra.mxu0 0
        %1242 = vmatprep.subr.bf16.mxu0 0
        %1243 = vmatpush1.bf16.xpose.msra.mxu0 0
        %1244 = vmatprep.subr.bf16.mxu0 0
        %1245 = vmatpush1.bf16.xpose.msra.mxu0 0
        %1246 = vmatprep.subr.bf16.mxu0 0
        %1247 = vmatpush1.bf16.xpose.msra.mxu0 0
        %1248 = vmatprep.subr.bf16.mxu0 0
        %1249 = vmatpush1.bf16.xpose.msra.mxu0 0
        %1250 = vmatprep.subr.bf16.mxu0 0
        %1251 = vmatpush1.bf16.xpose.msra.mxu0 0
        %1252 = vmatprep.subr.bf16.mxu0 0
        %1253 = vmatpush1.bf16.xpose.msra.mxu0 0
        %1254 = vmatprep.subr.bf16.mxu0 0
        %1255 = vmatpush1.bf16.xpose.msra.mxu0 0
        %1256 = vmatprep.subr.bf16.mxu0 0
        %1257 = vmatpush1.bf16.xpose.msra.mxu0 0
        %1258 = vmatprep.subr.bf16.mxu0 0
        %1259 = vmatpush1.bf16.xpose.msra.mxu0 0
        %1260 = vmatprep.subr.bf16.mxu0 0
        %1261 = vmatpush1.bf16.xpose.msra.mxu0 0
        %1262 = vmatprep.mubr.bf16.mxu0 0
        %1263 = vmatmul.mubr.bf16.gmra.mrb[0].mxu0 %v1225
        %v1264 = vpop.f32.mrb[0].mxu0
        %v1265 = vadd.f32 0.0, %v1264
        %v1266 = vpop.f32.mrb[0].mxu0
        %v1267 = vpop.f32.mrb[0].mxu0
        %v1268 = vadd.f32 0.0, %v1267
        %v1269 = vpop.f32.mrb[0].mxu0
        %1270 = vdwg.mxu0
        %v1271 = vsel %vm903, %v1265, -inf
        %1272 = vmax.xlane.f32.xlu0 %v1271
        %v1273 = vpop.xlane.xlu0 %1272
        %v1274 = vsel %vm903, %v1268, -inf
        %1275 = vmax.xlane.f32.xlu0 %v1274
        %v1276 = vpop.xlane.xlu0 %1275
        %v1277 = vsub.f32 %v1265, %v1273
        %v1278 = vsub.f32 %v1268, %v1276
        %v1279 = vmul.f32 %v1277, 1.442695
        %v1280 = vpow.pop %v1279
        %v1281 = vmul.f32 %v1278, 1.442695
        %v1282 = vpow.pop %v1281
        %v1283 = vsel %vm903, %v1280, 0.0
        %1284 = vadd.xlane.f32.xlu0 %v1283
        %v1285 = vpop.xlane.xlu0 %1284
        %v1286 = vsel %vm903, %v1282, 0.0
        %1287 = vadd.xlane.f32.xlu0 %v1286
        %v1288 = vpop.xlane.xlu0 %1287
        %v1289 = vrcp.pop %v1285
        %v1290 = vrcp.pop %v1288
        %v1291 = vmul.f32 %v1280, %v1289
        %v1292 = vmul.f32 %v1282, %v1290
        %v1293 = vadd.f32 %v1170, %v1291
        %v1294 = vadd.f32 %v1171, %v1292
        %v1295 = vpack.c.bf16 %v1292, %v1291
        %1296 = vrot.lane.b32.xlu0 %v854, 32
        %v1297 = vpop.permute.xlu0 %1296
        %v1300 = vsel %vm903, %v1295, 0
        %1302 = vmatprep.subr.bf16.mxu0 0
        %1303 = vmatpush1.bf16.msra.mxu0 %v1297
        %1304 = vmatprep.subr.bf16.mxu0 0
        %1305 = vmatpush1.bf16.msra.mxu0 0
        %1306 = vmatprep.subr.bf16.mxu0 0
        %1307 = vmatpush1.bf16.msra.mxu0 0
        %1308 = vmatprep.subr.bf16.mxu0 0
        %1309 = vmatpush1.bf16.msra.mxu0 0
        %1310 = vmatprep.subr.bf16.mxu0 0
        %1311 = vmatpush1.bf16.msra.mxu0 0
        %1312 = vmatprep.subr.bf16.mxu0 0
        %1313 = vmatpush1.bf16.msra.mxu0 0
        %1314 = vmatprep.subr.bf16.mxu0 0
        %1315 = vmatpush1.bf16.msra.mxu0 0
        %1316 = vmatprep.subr.bf16.mxu0 0
        %1317 = vmatpush1.bf16.msra.mxu0 0
        %1318 = vmatprep.subr.bf16.mxu0 0
        %1319 = vmatpush1.bf16.msra.mxu0 0
        %1320 = vmatprep.subr.bf16.mxu0 0
        %1321 = vmatpush1.bf16.msra.mxu0 0
        %1322 = vmatprep.subr.bf16.mxu0 0
        %1323 = vmatpush1.bf16.msra.mxu0 0
        %1324 = vmatprep.subr.bf16.mxu0 0
        %1325 = vmatpush1.bf16.msra.mxu0 0
        %1326 = vmatprep.subr.bf16.mxu0 0
        %1327 = vmatpush1.bf16.msra.mxu0 0
        %1328 = vmatprep.subr.bf16.mxu0 0
        %1329 = vmatpush1.bf16.msra.mxu0 0
        %1330 = vmatprep.subr.bf16.mxu0 0
        %1331 = vmatpush1.bf16.msra.mxu0 0
        %1332 = vmatprep.subr.bf16.mxu0 0
        %1333 = vmatpush1.bf16.msra.mxu0 0
        %1334 = vmatprep.mubr.bf16.mxu0 0
        %1335 = vmatmul.mubr.bf16.gmra.mrb[0].mxu0 %v1300
        %v1336 = vpop.f32.mrb[0].mxu0
        %v1337 = vadd.f32 0.0, %v1336
        %v1338 = vpop.f32.mrb[0].mxu0
        %v1339 = vpop.f32.mrb[0].mxu0
        %v1340 = vadd.f32 0.0, %v1339
        %v1341 = vpop.f32.mrb[0].mxu0
        %1342 = vdwg.mxu0
        %1345 = vrot.lane.b32.xlu0 %v1091, 32
        %v1346 = vpop.permute.xlu0 %1345
        %1347 = vrot.lane.b32.xlu0 %v1094, 32
        %v1348 = vpop.permute.xlu0 %1347
        %1353 = vrot.lane.b32.xlu0 %v1214, 64
        %v1354 = vpop.permute.xlu0 %1353
        %1355 = vrot.lane.b32.xlu0 %v1217, 64
        %v1356 = vpop.permute.xlu0 %1355
        %1361 = vrot.lane.b32.xlu0 %v1337, 96
        %v1362 = vpop.permute.xlu0 %1361
        %1363 = vrot.lane.b32.xlu0 %v1340, 96
        %v1364 = vpop.permute.xlu0 %1363
        %v1367 = vsel %vm855, %v965, %v1346
        %v1368 = vsel %vm855, %v968, %v1348
        %vm1369 = vcmask 523264
        %v1370 = vsel %vm1369, %v1367, %v1354
        %v1371 = vsel %vm1369, %v1368, %v1356
        %vm1372 = vcmask 785408
        %v1373 = vsel %vm1372, %v1370, %v1362
        %v1374 = vsel %vm1372, %v1371, %v1364
        %v1375 = vmul.f32 %v1293, 0.25
        %v1376 = vmul.f32 %v1294, 0.25
        %1377 = vst.msk [vmem:[%s564] sm:$0xff] %vm903, %v1375
        %1378 = vst.msk [vmem:[%s564 + $0x8] sm:$0xff] %vm903, %v1376
        %v1379 = vpack.c.bf16 %v1374, %v1373
        %v1380 = vld [vmem:[%s6] sm:$0xf]
        %v1381 = vld [vmem:[%s6 + $0x4] sm:$0xf]
        %v1382 = vld [vmem:[%s6 + $0x8] sm:$0xf]
        %v1383 = vld [vmem:[%s6 + $0xc] sm:$0xf]
        %v1384 = vld [vmem:[%s6 + $0x10] sm:$0xf]
        %v1385 = vld [vmem:[%s6 + $0x14] sm:$0xf]
        %v1386 = vld [vmem:[%s6 + $0x18] sm:$0xf]
        %v1387 = vld [vmem:[%s6 + $0x1c] sm:$0xf]
        %v1388 = vld [vmem:[%s6 + $0x20] sm:$0xf]
        %v1389 = vld [vmem:[%s6 + $0x24] sm:$0xf]
        %v1390 = vld [vmem:[%s6 + $0x28] sm:$0xf]
        %v1391 = vld [vmem:[%s6 + $0x2c] sm:$0xf]
        %v1392 = vld [vmem:[%s6 + $0x30] sm:$0xf]
        %v1393 = vld [vmem:[%s6 + $0x34] sm:$0xf]
        %v1394 = vld [vmem:[%s6 + $0x38] sm:$0xf]
        %v1395 = vld [vmem:[%s6 + $0x3c] sm:$0xf]
        %v1396 = vld [vmem:[%s7] sm:$0x1]
        %v1398 = vlaneseq
        %v1399 = vshrl.u32 %v1398, 7
        %v1400 = vsub.s32 0, %v1399
        %v1401 = vrot.slane %v1396, %v1400
        %v1419 = vunpack.c.l.b16 %v1380
        %v1420 = vunpack.c.l.b16 %v1381
        %v1421 = vunpack.c.l.b16 %v1382
        %v1422 = vunpack.c.l.b16 %v1383
        %v1423 = vunpack.c.l.b16 %v1384
        %v1424 = vunpack.c.l.b16 %v1385
        %v1425 = vunpack.c.l.b16 %v1386
        %v1426 = vunpack.c.l.b16 %v1387
        %v1427 = vunpack.c.l.b16 %v1388
        %v1428 = vunpack.c.l.b16 %v1389
        %v1429 = vunpack.c.l.b16 %v1390
        %v1430 = vunpack.c.l.b16 %v1391
        %v1431 = vunpack.c.l.b16 %v1392
        %v1432 = vunpack.c.l.b16 %v1393
        %v1433 = vunpack.c.l.b16 %v1394
        %v1434 = vunpack.c.l.b16 %v1395
        %v1435 = vpack.c.b16 %v1420, %v1419
        %v1436 = vpack.c.b16 %v1422, %v1421
        %v1437 = vpack.c.b16 %v1424, %v1423
        %v1438 = vpack.c.b16 %v1426, %v1425
        %v1439 = vpack.c.b16 %v1428, %v1427
        %v1440 = vpack.c.b16 %v1430, %v1429
        %v1441 = vpack.c.b16 %v1432, %v1431
        %v1442 = vpack.c.b16 %v1434, %v1433
        %1451 = vmatprep.subr.bf16.mxu0 0
        %1452 = vmatpush1.bf16.msra.mxu0 %v1435
        %1453 = vmatprep.subr.bf16.mxu0 0
        %1454 = vmatpush1.bf16.msra.mxu0 %v1436
        %1455 = vmatprep.subr.bf16.mxu0 0
        %1456 = vmatpush1.bf16.msra.mxu0 %v1437
        %1457 = vmatprep.subr.bf16.mxu0 0
        %1458 = vmatpush1.bf16.msra.mxu0 %v1438
        %1459 = vmatprep.subr.bf16.mxu0 0
        %1460 = vmatpush1.bf16.msra.mxu0 %v1439
        %1461 = vmatprep.subr.bf16.mxu0 0
        %1462 = vmatpush1.bf16.msra.mxu0 %v1440
        %1463 = vmatprep.subr.bf16.mxu0 0
        %1464 = vmatpush1.bf16.msra.mxu0 %v1441
        %1465 = vmatprep.subr.bf16.mxu0 0
        %1466 = vmatpush1.bf16.msra.mxu0 %v1442
        %1467 = vmatprep.subr.bf16.mxu0 0
        %1468 = vmatpush1.bf16.msra.mxu0 0
        %1469 = vmatprep.subr.bf16.mxu0 0
        %1470 = vmatpush1.bf16.msra.mxu0 0
        %1471 = vmatprep.subr.bf16.mxu0 0
        %1472 = vmatpush1.bf16.msra.mxu0 0
        %1473 = vmatprep.subr.bf16.mxu0 0
        %1474 = vmatpush1.bf16.msra.mxu0 0
        %1475 = vmatprep.subr.bf16.mxu0 0
        %1476 = vmatpush1.bf16.msra.mxu0 0
        %1477 = vmatprep.subr.bf16.mxu0 0
        %1478 = vmatpush1.bf16.msra.mxu0 0
        %1479 = vmatprep.subr.bf16.mxu0 0
        %1480 = vmatpush1.bf16.msra.mxu0 0
        %1481 = vmatprep.subr.bf16.mxu0 0
        %1482 = vmatpush1.bf16.msra.mxu0 0
        %1483 = vmatprep.mubr.bf16.mxu0 0
        %1484 = vmatmul.mubr.bf16.gmra.mrb[0].mxu0 %v1379
        %v1485 = vpop.f32.mrb[0].mxu0
        %v1486 = vadd.f32 %v1401, %v1485
        %v1487 = vpop.f32.mrb[0].mxu0
        %v1488 = vpop.f32.mrb[0].mxu0
        %v1489 = vadd.f32 %v1401, %v1488
        %v1490 = vpop.f32.mrb[0].mxu0
        %1491 = vdwg.mxu0
        %v1492 = vadd.f32 %v1486, %v581
        %v1493 = vadd.f32 %v1489, %v582
        %v1494 = vld [vmem:[%s8] sm:$0x1]
        %v1495 = vld [vmem:[%s9] sm:$0x1]
        %1496 = vadd.xlane.f32.xlu0 %v1492
        %v1497 = vpop.xlane.xlu0 %1496
        %1498 = vadd.xlane.f32.xlu0 %v1493
        %v1499 = vpop.xlane.xlu0 %1498
        %v1500 = vrcp.pop 128.0
        %v1501 = vmul.f32 %v1497, %v1500
        %v1502 = vmul.f32 %v1499, %v1500
        %v1503 = vsub.f32 %v1492, %v1501
        %v1504 = vsub.f32 %v1493, %v1502
        %v1505 = vmul.f32 %v1503, %v1503
        %v1506 = vmul.f32 %v1504, %v1504
        %1507 = vadd.xlane.f32.xlu0 %v1505
        %v1508 = vpop.xlane.xlu0 %1507
        %1509 = vadd.xlane.f32.xlu0 %v1506
        %v1510 = vpop.xlane.xlu0 %1509
        %v1511 = vmul.f32 %v1508, %v1500
        %v1512 = vmul.f32 %v1510, %v1500
        %v1513 = vadd.f32 %v1511, 1e-05
        %v1514 = vadd.f32 %v1512, 1e-05
        %v1515 = vrsqrt.pop %v1513
        %v1516 = vrsqrt.pop %v1514
        %v1517 = vmul.f32 %v1503, %v1515
        %v1518 = vmul.f32 %v1504, %v1516
        %v1520 = vlaneseq
        %v1521 = vshrl.u32 %v1520, 7
        %v1522 = vsub.s32 0, %v1521
        %v1523 = vrot.slane %v1494, %v1522
        %v1525 = vmul.f32 %v1517, %v1523
        %v1526 = vmul.f32 %v1518, %v1523
        %v1528 = vlaneseq
        %v1529 = vshrl.u32 %v1528, 7
        %v1530 = vsub.s32 0, %v1529
        %v1531 = vrot.slane %v1495, %v1530
        %v1533 = vadd.f32 %v1525, %v1531
        %v1534 = vadd.f32 %v1526, %v1531
        %v1535 = vpack.c.bf16 %v1534, %v1533
        %v1536 = vld [vmem:[%s10] sm:$0xff]
        %v1537 = vld [vmem:[%s10 + $0x8] sm:$0xff]
        %v1538 = vld [vmem:[%s10 + $0x10] sm:$0xff]
        %v1539 = vld [vmem:[%s10 + $0x18] sm:$0xff]
        %v1540 = vld [vmem:[%s10 + $0x20] sm:$0xff]
        %v1541 = vld [vmem:[%s10 + $0x28] sm:$0xff]
        %v1542 = vld [vmem:[%s10 + $0x30] sm:$0xff]
        %v1543 = vld [vmem:[%s10 + $0x38] sm:$0xff]
        %v1544 = vld [vmem:[%s10 + $0x40] sm:$0xff]
        %v1545 = vld [vmem:[%s10 + $0x48] sm:$0xff]
        %v1546 = vld [vmem:[%s10 + $0x50] sm:$0xff]
        %v1547 = vld [vmem:[%s10 + $0x58] sm:$0xff]
        %v1548 = vld [vmem:[%s10 + $0x60] sm:$0xff]
        %v1549 = vld [vmem:[%s10 + $0x68] sm:$0xff]
        %v1550 = vld [vmem:[%s10 + $0x70] sm:$0xff]
        %v1551 = vld [vmem:[%s10 + $0x78] sm:$0xff]
        %v1552 = vld [vmem:[%s11] sm:$0x3]
        %v1554 = vlaneseq
        %v1555 = vshrl.u32 %v1554, 7
        %v1556 = vsub.s32 0, %v1555
        %v1557 = vrot.slane %v1552, %v1556
        %v1558 = vlaneseq
        %v1559 = vshrl.u32 %v1558, 7
        %v1560 = vsub.s32 1, %v1559
        %v1561 = vrot.slane %v1552, %v1560
        %v1580 = vunpack.c.l.b16 %v1536
        %v1581 = vunpack.c.h.b16 %v1536
        %v1582 = vunpack.c.l.b16 %v1537
        %v1583 = vunpack.c.h.b16 %v1537
        %v1584 = vunpack.c.l.b16 %v1538
        %v1585 = vunpack.c.h.b16 %v1538
        %v1586 = vunpack.c.l.b16 %v1539
        %v1587 = vunpack.c.h.b16 %v1539
        %v1588 = vunpack.c.l.b16 %v1540
        %v1589 = vunpack.c.h.b16 %v1540
        %v1590 = vunpack.c.l.b16 %v1541
        %v1591 = vunpack.c.h.b16 %v1541
        %v1592 = vunpack.c.l.b16 %v1542
        %v1593 = vunpack.c.h.b16 %v1542
        %v1594 = vunpack.c.l.b16 %v1543
        %v1595 = vunpack.c.h.b16 %v1543
        %v1596 = vunpack.c.l.b16 %v1544
        %v1597 = vunpack.c.h.b16 %v1544
        %v1598 = vunpack.c.l.b16 %v1545
        %v1599 = vunpack.c.h.b16 %v1545
        %v1600 = vunpack.c.l.b16 %v1546
        %v1601 = vunpack.c.h.b16 %v1546
        %v1602 = vunpack.c.l.b16 %v1547
        %v1603 = vunpack.c.h.b16 %v1547
        %v1604 = vunpack.c.l.b16 %v1548
        %v1605 = vunpack.c.h.b16 %v1548
        %v1606 = vunpack.c.l.b16 %v1549
        %v1607 = vunpack.c.h.b16 %v1549
        %v1608 = vunpack.c.l.b16 %v1550
        %v1609 = vunpack.c.h.b16 %v1550
        %v1610 = vunpack.c.l.b16 %v1551
        %v1611 = vunpack.c.h.b16 %v1551
        %v1612 = vpack.c.b16 %v1582, %v1580
        %v1613 = vpack.c.b16 %v1583, %v1581
        %v1614 = vpack.c.b16 %v1586, %v1584
        %v1615 = vpack.c.b16 %v1587, %v1585
        %v1616 = vpack.c.b16 %v1590, %v1588
        %v1617 = vpack.c.b16 %v1591, %v1589
        %v1618 = vpack.c.b16 %v1594, %v1592
        %v1619 = vpack.c.b16 %v1595, %v1593
        %v1620 = vpack.c.b16 %v1598, %v1596
        %v1621 = vpack.c.b16 %v1599, %v1597
        %v1622 = vpack.c.b16 %v1602, %v1600
        %v1623 = vpack.c.b16 %v1603, %v1601
        %v1624 = vpack.c.b16 %v1606, %v1604
        %v1625 = vpack.c.b16 %v1607, %v1605
        %v1626 = vpack.c.b16 %v1610, %v1608
        %v1627 = vpack.c.b16 %v1611, %v1609
        %1644 = vmatprep.subr.bf16.mxu0 %v1613
        %1645 = vmatpush1.bf16.msra.mxu0 %v1612
        %1646 = vmatprep.subr.bf16.mxu0 %v1615
        %1647 = vmatpush1.bf16.msra.mxu0 %v1614
        %1648 = vmatprep.subr.bf16.mxu0 %v1617
        %1649 = vmatpush1.bf16.msra.mxu0 %v1616
        %1650 = vmatprep.subr.bf16.mxu0 %v1619
        %1651 = vmatpush1.bf16.msra.mxu0 %v1618
        %1652 = vmatprep.subr.bf16.mxu0 %v1621
        %1653 = vmatpush1.bf16.msra.mxu0 %v1620
        %1654 = vmatprep.subr.bf16.mxu0 %v1623
        %1655 = vmatpush1.bf16.msra.mxu0 %v1622
        %1656 = vmatprep.subr.bf16.mxu0 %v1625
        %1657 = vmatpush1.bf16.msra.mxu0 %v1624
        %1658 = vmatprep.subr.bf16.mxu0 %v1627
        %1659 = vmatpush1.bf16.msra.mxu0 %v1626
        %1660 = vmatprep.subr.bf16.mxu0 0
        %1661 = vmatpush1.bf16.msra.mxu0 0
        %1662 = vmatprep.subr.bf16.mxu0 0
        %1663 = vmatpush1.bf16.msra.mxu0 0
        %1664 = vmatprep.subr.bf16.mxu0 0
        %1665 = vmatpush1.bf16.msra.mxu0 0
        %1666 = vmatprep.subr.bf16.mxu0 0
        %1667 = vmatpush1.bf16.msra.mxu0 0
        %1668 = vmatprep.subr.bf16.mxu0 0
        %1669 = vmatpush1.bf16.msra.mxu0 0
        %1670 = vmatprep.subr.bf16.mxu0 0
        %1671 = vmatpush1.bf16.msra.mxu0 0
        %1672 = vmatprep.subr.bf16.mxu0 0
        %1673 = vmatpush1.bf16.msra.mxu0 0
        %1674 = vmatprep.subr.bf16.mxu0 0
        %1675 = vmatpush1.bf16.msra.mxu0 0
        %1676 = vmatprep.mubr.bf16.mxu0 0
        %1677 = vmatmul.mubr.bf16.gmra.mrb[0].mxu0 %v1535
        %v1678 = vpop.f32.mrb[0].mxu0
        %v1679 = vadd.f32 %v1557, %v1678
        %v1680 = vpop.f32.mrb[0].mxu0
        %v1681 = vadd.f32 %v1561, %v1680
        %v1682 = vpop.f32.mrb[0].mxu0
        %v1683 = vadd.f32 %v1557, %v1682
        %v1684 = vpop.f32.mrb[0].mxu0
        %v1685 = vadd.f32 %v1561, %v1684
        %1686 = vdwg.mxu0
        %v1687 = vmax.f32 %v1679, 0.0
        %v1688 = vmax.f32 %v1681, 0.0
        %v1689 = vmax.f32 %v1683, 0.0
        %v1690 = vmax.f32 %v1685, 0.0
        %v1691 = vpack.c.bf16 %v1689, %v1687
        %v1692 = vpack.c.bf16 %v1690, %v1688
        %v1693 = vld [vmem:[%s12] sm:$0xf]
        %v1694 = vld [vmem:[%s12 + $0x4] sm:$0xf]
        %v1695 = vld [vmem:[%s12 + $0x8] sm:$0xf]
        %v1696 = vld [vmem:[%s12 + $0xc] sm:$0xf]
        %v1697 = vld [vmem:[%s12 + $0x10] sm:$0xf]
        %v1698 = vld [vmem:[%s12 + $0x14] sm:$0xf]
        %v1699 = vld [vmem:[%s12 + $0x18] sm:$0xf]
        %v1700 = vld [vmem:[%s12 + $0x1c] sm:$0xf]
        %v1701 = vld [vmem:[%s12 + $0x20] sm:$0xf]
        %v1702 = vld [vmem:[%s12 + $0x24] sm:$0xf]
        %v1703 = vld [vmem:[%s12 + $0x28] sm:$0xf]
        %v1704 = vld [vmem:[%s12 + $0x2c] sm:$0xf]
        %v1705 = vld [vmem:[%s12 + $0x30] sm:$0xf]
        %v1706 = vld [vmem:[%s12 + $0x34] sm:$0xf]
        %v1707 = vld [vmem:[%s12 + $0x38] sm:$0xf]
        %v1708 = vld [vmem:[%s12 + $0x3c] sm:$0xf]
        %v1709 = vld [vmem:[%s12 + $0x40] sm:$0xf]
        %v1710 = vld [vmem:[%s12 + $0x44] sm:$0xf]
        %v1711 = vld [vmem:[%s12 + $0x48] sm:$0xf]
        %v1712 = vld [vmem:[%s12 + $0x4c] sm:$0xf]
        %v1713 = vld [vmem:[%s12 + $0x50] sm:$0xf]
        %v1714 = vld [vmem:[%s12 + $0x54] sm:$0xf]
        %v1715 = vld [vmem:[%s12 + $0x58] sm:$0xf]
        %v1716 = vld [vmem:[%s12 + $0x5c] sm:$0xf]
        %v1717 = vld [vmem:[%s12 + $0x60] sm:$0xf]
        %v1718 = vld [vmem:[%s12 + $0x64] sm:$0xf]
        %v1719 = vld [vmem:[%s12 + $0x68] sm:$0xf]
        %v1720 = vld [vmem:[%s12 + $0x6c] sm:$0xf]
        %v1721 = vld [vmem:[%s12 + $0x70] sm:$0xf]
        %v1722 = vld [vmem:[%s12 + $0x74] sm:$0xf]
        %v1723 = vld [vmem:[%s12 + $0x78] sm:$0xf]
        %v1724 = vld [vmem:[%s12 + $0x7c] sm:$0xf]
        %v1725 = vld [vmem:[%s13] sm:$0x1]
        %v1727 = vlaneseq
        %v1728 = vshrl.u32 %v1727, 7
        %v1729 = vsub.s32 0, %v1728
        %v1730 = vrot.slane %v1725, %v1729
        %v1764 = vunpack.c.l.b16 %v1693
        %v1765 = vunpack.c.l.b16 %v1694
        %v1766 = vunpack.c.l.b16 %v1695
        %v1767 = vunpack.c.l.b16 %v1696
        %v1768 = vunpack.c.l.b16 %v1697
        %v1769 = vunpack.c.l.b16 %v1698
        %v1770 = vunpack.c.l.b16 %v1699
        %v1771 = vunpack.c.l.b16 %v1700
        %v1772 = vunpack.c.l.b16 %v1701
        %v1773 = vunpack.c.l.b16 %v1702
        %v1774 = vunpack.c.l.b16 %v1703
        %v1775 = vunpack.c.l.b16 %v1704
        %v1776 = vunpack.c.l.b16 %v1705
        %v1777 = vunpack.c.l.b16 %v1706
        %v1778 = vunpack.c.l.b16 %v1707
        %v1779 = vunpack.c.l.b16 %v1708
        %v1780 = vunpack.c.l.b16 %v1709
        %v1781 = vunpack.c.l.b16 %v1710
        %v1782 = vunpack.c.l.b16 %v1711
        %v1783 = vunpack.c.l.b16 %v1712
        %v1784 = vunpack.c.l.b16 %v1713
        %v1785 = vunpack.c.l.b16 %v1714
        %v1786 = vunpack.c.l.b16 %v1715
        %v1787 = vunpack.c.l.b16 %v1716
        %v1788 = vunpack.c.l.b16 %v1717
        %v1789 = vunpack.c.l.b16 %v1718
        %v1790 = vunpack.c.l.b16 %v1719
        %v1791 = vunpack.c.l.b16 %v1720
        %v1792 = vunpack.c.l.b16 %v1721
        %v1793 = vunpack.c.l.b16 %v1722
        %v1794 = vunpack.c.l.b16 %v1723
        %v1795 = vunpack.c.l.b16 %v1724
        %v1796 = vpack.c.b16 %v1765, %v1764
        %v1797 = vpack.c.b16 %v1767, %v1766
        %v1798 = vpack.c.b16 %v1769, %v1768
        %v1799 = vpack.c.b16 %v1771, %v1770
        %v1800 = vpack.c.b16 %v1773, %v1772
        %v1801 = vpack.c.b16 %v1775, %v1774
        %v1802 = vpack.c.b16 %v1777, %v1776
        %v1803 = vpack.c.b16 %v1779, %v1778
        %v1804 = vpack.c.b16 %v1781, %v1780
        %v1805 = vpack.c.b16 %v1783, %v1782
        %v1806 = vpack.c.b16 %v1785, %v1784
        %v1807 = vpack.c.b16 %v1787, %v1786
        %v1808 = vpack.c.b16 %v1789, %v1788
        %v1809 = vpack.c.b16 %v1791, %v1790
        %v1810 = vpack.c.b16 %v1793, %v1792
        %v1811 = vpack.c.b16 %v1795, %v1794
        %1828 = vmatprep.subr.bf16.mxu0 0
        %1829 = vmatpush1.bf16.msra.mxu0 %v1796
        %1830 = vmatprep.subr.bf16.mxu0 0
        %1831 = vmatpush1.bf16.msra.mxu0 %v1797
        %1832 = vmatprep.subr.bf16.mxu0 0
        %1833 = vmatpush1.bf16.msra.mxu0 %v1798
        %1834 = vmatprep.subr.bf16.mxu0 0
        %1835 = vmatpush1.bf16.msra.mxu0 %v1799
        %1836 = vmatprep.subr.bf16.mxu0 0
        %1837 = vmatpush1.bf16.msra.mxu0 %v1800
        %1838 = vmatprep.subr.bf16.mxu0 0
        %1839 = vmatpush1.bf16.msra.mxu0 %v1801
        %1840 = vmatprep.subr.bf16.mxu0 0
        %1841 = vmatpush1.bf16.msra.mxu0 %v1802
        %1842 = vmatprep.subr.bf16.mxu0 0
        %1843 = vmatpush1.bf16.msra.mxu0 %v1803
        %1844 = vmatprep.subr.bf16.mxu0 0
        %1845 = vmatpush1.bf16.msra.mxu0 %v1804
        %1846 = vmatprep.subr.bf16.mxu0 0
        %1847 = vmatpush1.bf16.msra.mxu0 %v1805
        %1848 = vmatprep.subr.bf16.mxu0 0
        %1849 = vmatpush1.bf16.msra.mxu0 %v1806
        %1850 = vmatprep.subr.bf16.mxu0 0
        %1851 = vmatpush1.bf16.msra.mxu0 %v1807
        %1852 = vmatprep.subr.bf16.mxu0 0
        %1853 = vmatpush1.bf16.msra.mxu0 %v1808
        %1854 = vmatprep.subr.bf16.mxu0 0
        %1855 = vmatpush1.bf16.msra.mxu0 %v1809
        %1856 = vmatprep.subr.bf16.mxu0 0
        %1857 = vmatpush1.bf16.msra.mxu0 %v1810
        %1858 = vmatprep.subr.bf16.mxu0 0
        %1859 = vmatpush1.bf16.msra.mxu0 %v1811
        %1860 = vmatprep.mubr.bf16.mxu0 %v1692
        %1861 = vmatmul.mubr.bf16.gmra.mrb[0].mxu0 %v1691
        %v1862 = vpop.f32.mrb[0].mxu0
        %v1863 = vadd.f32 %v1730, %v1862
        %v1864 = vpop.f32.mrb[0].mxu0
        %v1865 = vpop.f32.mrb[0].mxu0
        %v1866 = vadd.f32 %v1730, %v1865
        %v1867 = vpop.f32.mrb[0].mxu0
        %1868 = vdwg.mxu0
        %v1869 = vadd.f32 %v1863, %v1533
        %v1870 = vadd.f32 %v1866, %v1534
        %v1871 = vld [vmem:[%s14] sm:$0x1]
        %v1872 = vld [vmem:[%s15] sm:$0x1]
        %1873 = vadd.xlane.f32.xlu0 %v1869
        %v1874 = vpop.xlane.xlu0 %1873
        %1875 = vadd.xlane.f32.xlu0 %v1870
        %v1876 = vpop.xlane.xlu0 %1875
        %v1877 = vmul.f32 %v1874, %v1500
        %v1878 = vmul.f32 %v1876, %v1500
        %v1879 = vsub.f32 %v1869, %v1877
        %v1880 = vsub.f32 %v1870, %v1878
        %v1881 = vmul.f32 %v1879, %v1879
        %v1882 = vmul.f32 %v1880, %v1880
        %1883 = vadd.xlane.f32.xlu0 %v1881
        %v1884 = vpop.xlane.xlu0 %1883
        %1885 = vadd.xlane.f32.xlu0 %v1882
        %v1886 = vpop.xlane.xlu0 %1885
        %v1887 = vmul.f32 %v1884, %v1500
        %v1888 = vmul.f32 %v1886, %v1500
        %v1889 = vadd.f32 %v1887, 1e-05
        %v1890 = vadd.f32 %v1888, 1e-05
        %v1891 = vrsqrt.pop %v1889
        %v1892 = vrsqrt.pop %v1890
        %v1893 = vmul.f32 %v1879, %v1891
        %v1894 = vmul.f32 %v1880, %v1892
        %v1896 = vlaneseq
        %v1897 = vshrl.u32 %v1896, 7
        %v1898 = vsub.s32 0, %v1897
        %v1899 = vrot.slane %v1871, %v1898
        %v1901 = vmul.f32 %v1893, %v1899
        %v1902 = vmul.f32 %v1894, %v1899
        %v1904 = vlaneseq
        %v1905 = vshrl.u32 %v1904, 7
        %v1906 = vsub.s32 0, %v1905
        %v1907 = vrot.slane %v1872, %v1906
        %v1909 = vadd.f32 %v1901, %v1907
        %v1910 = vadd.f32 %v1902, %v1907
        %1911 = vst [vmem:[%s579] sm:$0xff] %v1909
        %1912 = vst [vmem:[%s579 + $0x8] sm:$0xff] %v1910
        %p1913 = scmp.lt.s32.totalorder %s32, 1
        %s1914 = scalar_select %p1913, %s32, 1
        %s1915 = smul.addr %s1914, 2
        %s1916 = smul.addr %s1915, 8
        %s1917 = scalar_lea.vmem %s16, %s1916
        %s1918 = sand.u32 %s412, 1
        %s1919 = scalar_lea.sflag [#allocation3], %s1918
        %s1920 = sand.u32 %s412, 1
        %s1921 = smul.addr %s1920, 16
        %s1922 = scalar_lea.vmem [#allocation2], %s1921
        // Predicated region
        $region85: #{aggregation_decoder_layer_forward.5} parent=83 // pred_check
          %p1923 = pneg %p396
        $region86: #{aggregation_decoder_layer_forward.5} parent=83 // pred_check_branch
          %1925 = sbr.rel (%p1923) target = $region88
        $region87: #{aggregation_decoder_layer_forward.5} parent=83 // pred_region
          _
        $region88: #{aggregation_decoder_layer_forward.5} parent=83 // pred_fallthru
          _
        // Predicated region
        $region89: #{aggregation_decoder_layer_forward.5} parent=83 // pred_check
          %p1926 = pneg %p422
        $region90: #{aggregation_decoder_layer_forward.5} parent=83 // pred_check_branch
          %1928 = sbr.rel (%p1926) target = $region92
        $region91: #{aggregation_decoder_layer_forward.5} parent=83 // pred_region
          %s1930 = ssub.s32 256, 256
          %1931 = vsyncadd %s1919, %s1930
          %s1932 = smul.addr %s32, 2
          %s1933 = smul.addr %s1932, 128
          %s1934 = scalar_lea.hbm %s17, %s1933
          %s1935 = sshll.u32 %s1922, 4
          %s1936 = int_to_ptr.vmem [resolvable:$true] %s1935
          %1941 = dma.vmem_to_hbm [thread:$0]  %s1936, 256, %s1934, %s1919, 128, 128, 8
        $region92: #{aggregation_decoder_layer_forward.5} parent=83 // pred_fallthru
          _
      $region84: #{aggregation_decoder_layer_forward.5} parent=5 // pred_fallthru
        _
      %p1942 = scmp.le.s32.totalorder 2, %s27
      // Predicated region
      $region93: #{aggregation_decoder_layer_forward.5} parent=5 // pred_check
        %p1943 = pneg %p1942
      $region94: #{aggregation_decoder_layer_forward.5} parent=5 // pred_check_branch
        %1945 = sbr.rel (%p1943) target = $region96
      $region95: #{aggregation_decoder_layer_forward.5} parent=5 // pred_region
        %s1946 = ssub.s32 %s27, 2
        // Predicated region
        $region97: #{aggregation_decoder_layer_forward.5} parent=95 // pred_check
          %p1947 = pneg %p402
        $region98: #{aggregation_decoder_layer_forward.5} parent=95 // pred_check_branch
          %1949 = sbr.rel (%p1947) target = $region100
        $region99: #{aggregation_decoder_layer_forward.5} parent=95 // pred_region
          %p1950 = scmp.lt.s32.totalorder %s33, 1
          %s1951 = scalar_select %p1950, %s33, 1
          %s1952 = smul.addr %s1951, 2
          %s1953 = smul.addr %s1952, 8
          %s1954 = scalar_lea.vmem %s16, %s1953
        $region100: #{aggregation_decoder_layer_forward.5} parent=95 // pred_fallthru
          _
        // Predicated region
        $region101: #{aggregation_decoder_layer_forward.5} parent=95 // pred_check
          %p1955 = pneg %p428
        $region102: #{aggregation_decoder_layer_forward.5} parent=95 // pred_check_branch
          %1957 = sbr.rel (%p1955) target = $region104
        $region103: #{aggregation_decoder_layer_forward.5} parent=95 // pred_region
          %s1958 = sand.u32 %s413, 1
          %s1959 = scalar_lea.sflag [#allocation3], %s1958
          %s1960 = sand.u32 %s413, 1
          %s1961 = smul.addr %s1960, 16
          %s1962 = scalar_lea.vmem [#allocation2], %s1961
          %1963 = dma.done %s1959, 256
        $region104: #{aggregation_decoder_layer_forward.5} parent=95 // pred_fallthru
          _
      $region96: #{aggregation_decoder_layer_forward.5} parent=5 // pred_fallthru
        _
    $region6: #{aggregation_decoder_layer_forward.5} parent=1 // loop_footer
      %s31 = sadd.s32 1, %s27
    $region7: #{aggregation_decoder_layer_forward.5} parent=1 // loop_footer_branch
      %26 = sbr.rel target = $region3
    $region8: #{aggregation_decoder_layer_forward.5} parent=1 // loop_exit
      _
    %1964 = vsyncpa [#allocation3], 1
    %s1965 = scalar_lea.sflag [#allocation3], 1
    %1966 = vsyncpa %s1965, 1

</llo_original>
